<compile_context>
chip_gen: v6e
topology: v6e:2x2x1
jax: 0.10.0
libtpu: 0.0.40
codegen_flags: <defaults>
</compile_context>

<pallas_src>
import jax
import jax.numpy as jnp
import numpy as np
from jax import lax
from jax.experimental import pallas as pl
from jax.experimental.pallas import tpu as pltpu


# ---------------- fused kernel: GRU recurrence + output projection ------------

def _predictor_fused_kernel(gi_ref,     # (T, Bp, 3H) precomputed x@W_ih + merged biases
                            w_hh_ref,   # (H, 3H)     recurrent weights, gate order [r, z, n]
                            b_hn_ref,   # (1, H)      hidden bias of the n gate
                            init_ref,   # (1, H)      learned initial state
                            w_lin_ref,  # (H, J)      output projection weights
                            b_lin_ref,  # (1, J)      output projection bias
                            o_ref,      # (T*Bp, J)   logits (lane-dense output)
                            h_hist):    # VMEM scratch (T*Bp, H) hidden-state history
    T, Bp, _ = gi_ref.shape
    H = w_hh_ref.shape[0]

    # Hoist loop-invariant broadcasts out of the recurrence (JAX doesn't CSE them).
    b_hn = jnp.broadcast_to(b_hn_ref[...], (Bp, H))
    h0 = jnp.broadcast_to(init_ref[...], (Bp, H))

    def step(u, h):
        gi = gi_ref[u]                                                       # (Bp, 3H)
        gh = jnp.dot(h, w_hh_ref[...], preferred_element_type=jnp.float32)   # (Bp, 3H)
        # PyTorch GRUCell semantics:
        #   r = sigmoid(W_ir x + b_ir + W_hr h + b_hr)   (input-side bias already merged)
        #   z = sigmoid(W_iz x + b_iz + W_hz h + b_hz)
        #   n = tanh  (W_in x + b_in + r * (W_hn h + b_hn))
        #   h' = (1 - z) * n + z * h   ==  n + z * (h - n)
        r = jax.nn.sigmoid(gi[:, :H] + gh[:, :H])
        z = jax.nn.sigmoid(gi[:, H:2 * H] + gh[:, H:2 * H])
        n = jnp.tanh(gi[:, 2 * H:] + r * (gh[:, 2 * H:] + b_hn))
        h_new = n + z * (h - n)
        row = pl.multiple_of(u * Bp, 8)                # sublane-aligned store
        h_hist[pl.ds(row, Bp), :] = h_new
        return h_new

    # Fully unroll short (static) sequences so the LLO scheduler sees the whole
    # recurrence; partial unroll keeps compile time bounded for long prod T.
    unroll = T if T <= 32 else 8
    lax.fori_loop(0, T, step, h0, unroll=unroll)

    # Output projection on the still-VMEM-resident hidden history: ONE matmul,
    # no HBM round trip of h_all and no second kernel launch.
    o_ref[...] = (jnp.dot(h_hist[...], w_lin_ref[...],
                          preferred_element_type=jnp.float32) + b_lin_ref[...])


# --------------------------------- wrapper ------------------------------------

def predictor_forward(y, params):
    """y: int32 (B, U) label sequence. Returns (B, U+1, joiner_dim) float32."""
    B, U = y.shape
    embed = params["embed"]          # (V, E)
    w_ih_t = params["w_ih_t"]        # (E, 3H)
    w_hh_t = params["w_hh_t"]        # (H, 3H)
    b_ih = params["b_ih"]            # (1, 3H)
    b_hh = params["b_hh"]            # (1, 3H)
    w_lin_t = params["w_lin_t"]      # (H, J)
    b_lin = params["b_lin"]          # (1, J)
    init_state = params["init"]      # (1, H)
    start_symbol = params["start_symbol"]

    H = w_hh_t.shape[0]
    J = w_lin_t.shape[1]
    T = U + 1
    Bp = max(8, -(-B // 8) * 8)      # pad batch to f32 sublane count for dense vregs

    # --------------- glue (all outside the sequential loop) -------------------
    dec = jnp.concatenate(
        [jnp.full((B, 1), start_symbol, dtype=jnp.int32), y.astype(jnp.int32)], axis=1
    ).T                                                            # (T, B) time-major
    dec = jnp.pad(dec, ((0, 0), (0, Bp - B)))                      # pad batch (idx 0 is valid)

    # Input-side matmul hoisted out of the recurrence: per-token gate table.
    gi_table = jnp.dot(embed, w_ih_t, preferred_element_type=jnp.float32)  # (V, 3H)
    # Pre-sum b_ih + b_hh for the r/z gates; b_hn must stay inside r*(...).
    bias = jnp.concatenate(
        [b_ih[:, : 2 * H] + b_hh[:, : 2 * H], b_ih[:, 2 * H:]], axis=1)    # (1, 3H)
    gi_all = jnp.take(gi_table, dec, axis=0) + bias                # (T, Bp, 3H)
    b_hn = b_hh[:, 2 * H:]                                         # (1, H)

    # --------------- fused recurrence + projection: single invocation ---------
    logits = pl.pallas_call(
        _predictor_fused_kernel,
        out_shape=jax.ShapeDtypeStruct((T * Bp, J), jnp.float32),
        grid=(1,),
        in_specs=[
            pl.BlockSpec((T, Bp, 3 * H), lambda i: (0, 0, 0)),     # gi_all, fully resident
            pl.BlockSpec((H, 3 * H), lambda i: (0, 0)),            # w_hh_t (loaded once)
            pl.BlockSpec((1, H), lambda i: (0, 0)),                # b_hn
            pl.BlockSpec((1, H), lambda i: (0, 0)),                # initial state
            pl.BlockSpec((H, J), lambda i: (0, 0)),                # w_lin_t
            pl.BlockSpec((1, J), lambda i: (0, 0)),                # b_lin
        ],
        out_specs=pl.BlockSpec((T * Bp, J), lambda i: (0, 0)),
        scratch_shapes=[pltpu.VMEM((T * Bp, H), jnp.float32)],     # hidden history (VMEM only)
        compiler_params=pltpu.CompilerParams(
            dimension_semantics=("arbitrary",),                    # sequential recurrence
            vmem_limit_bytes=32 * 1024 * 1024,
        ),
    )(gi_all, w_hh_t, b_hn, init_state, w_lin_t, b_lin)

    out = logits.reshape(T, Bp, J)[:, :B, :]                       # (T, B, J), drop pad rows
    return jnp.transpose(out, (1, 0, 2))                           # PyTorch (B, U+1, J)


# --------------------------- pure-JAX reference -------------------------------

def predictor_reference(y, params):
    B, U = y.shape
    H = params["w_hh_t"].shape[0]
    dec = jnp.concatenate(
        [jnp.full((B, 1), params["start_symbol"], dtype=jnp.int32), y.astype(jnp.int32)],
        axis=1,
    )

    def step(h, idx):
        x = params["embed"][idx]
        gi = x @ params["w_ih_t"] + params["b_ih"]
        gh = h @ params["w_hh_t"] + params["b_hh"]
        r = jax.nn.sigmoid(gi[:, :H] + gh[:, :H])
        z = jax.nn.sigmoid(gi[:, H:2 * H] + gh[:, H:2 * H])
        n = jnp.tanh(gi[:, 2 * H:] + r * gh[:, 2 * H:])
        h_new = (1.0 - z) * n + z * h
        out = h_new @ params["w_lin_t"] + params["b_lin"]
        return h_new, out

    h0 = jnp.broadcast_to(params["init"], (B, H))
    _, outs = lax.scan(step, h0, dec.T)        # (U+1, B, J)
    return jnp.transpose(outs, (1, 0, 2))


# --------------------------------- main ---------------------------------------

if __name__ == "__main__":
    # Small test configuration (original module: predictor_dim = joiner_dim = 1024).
    num_outputs = 16
    embed_dim = 32
    predictor_dim = 256
    joiner_dim = 384
    B, U = 2, 8

    # TODO(synk): the reference module builds Embedding(num_outputs, 32) but feeds
    # start_symbol == num_outputs (out-of-range in PyTorch); we allocate V = num_outputs+1
    # rows so the start/blank symbol has a well-defined embedding.
    V = num_outputs + 1
    H, J, E = predictor_dim, joiner_dim, embed_dim

    key = jax.random.PRNGKey(0)
    ks = jax.random.split(key, 9)
    scale = 0.1
    params = {
        "embed":  scale * jax.random.normal(ks[0], (V, E), jnp.float32),
        "w_ih_t": scale * jax.random.normal(ks[1], (E, 3 * H), jnp.float32),
        "w_hh_t": scale * jax.random.normal(ks[2], (H, 3 * H), jnp.float32),
        "b_ih":   scale * jax.random.normal(ks[3], (1, 3 * H), jnp.float32),
        "b_hh":   scale * jax.random.normal(ks[4], (1, 3 * H), jnp.float32),
        "w_lin_t": scale * jax.random.normal(ks[5], (H, J), jnp.float32),
        "b_lin":  scale * jax.random.normal(ks[6], (1, J), jnp.float32),
        "init":   jax.random.normal(ks[7], (1, H), jnp.float32),
        "start_symbol": num_outputs,   # blank index
    }

    y = jax.random.randint(ks[8], (B, U), 0, num_outputs, dtype=jnp.int32)

    out = jax.block_until_ready(predictor_forward(y, params))
    assert out.shape == (B, U + 1, J), out.shape

    ref = jax.block_until_ready(predictor_reference(y, params))
    np.testing.assert_allclose(np.asarray(out), np.asarray(ref), rtol=2e-5, atol=2e-5)

    print("KERNEL_OK")
</pallas_src>

<mosaic_0001>
module attributes {stable_mosaic.version = 11 : i64} {
  func.func @_predictor_fused_kernel(%arg0: i32, %arg1: memref<9x8x768xf32, #tpu.memory_space<vmem>>, %arg2: memref<256x768xf32, #tpu.memory_space<vmem>>, %arg3: memref<1x256xf32, #tpu.memory_space<vmem>>, %arg4: memref<1x256xf32, #tpu.memory_space<vmem>>, %arg5: memref<256x384xf32, #tpu.memory_space<vmem>>, %arg6: memref<1x384xf32, #tpu.memory_space<vmem>>, %arg7: memref<72x384xf32, #tpu.memory_space<vmem>>, %arg8: memref<72x256xf32, #tpu.memory_space<vmem>>) attributes {dimension_semantics = [#tpu.dimension_semantics<arbitrary>], iteration_bounds = array<i64: 1>, scalar_prefetch = 0 : i64, scratch_operands = 1 : i64, tpu.core_type = #tpu.core_type<tc>, window_params = [{pipeline_mode = #tpu.pipeline_mode<synchronous>, transform_indices = @transform_0, window_bounds = array<i64: 9, 8, 768>}, {pipeline_mode = #tpu.pipeline_mode<synchronous>, transform_indices = @transform_1, window_bounds = array<i64: 256, 768>}, {pipeline_mode = #tpu.pipeline_mode<synchronous>, transform_indices = @transform_2, window_bounds = array<i64: 1, 256>}, {pipeline_mode = #tpu.pipeline_mode<synchronous>, transform_indices = @transform_3, window_bounds = array<i64: 1, 256>}, {pipeline_mode = #tpu.pipeline_mode<synchronous>, transform_indices = @transform_4, window_bounds = array<i64: 256, 384>}, {pipeline_mode = #tpu.pipeline_mode<synchronous>, transform_indices = @transform_5, window_bounds = array<i64: 1, 384>}, {pipeline_mode = #tpu.pipeline_mode<synchronous>, transform_indices = @transform_6, window_bounds = array<i64: 72, 384>}]} {
    %c0 = arith.constant 0 : index
    %c0_0 = arith.constant 0 : index
    %0 = vector.load %arg3[%c0, %c0_0] : memref<1x256xf32, #tpu.memory_space<vmem>>, vector<1x256xf32>
    %1 = vector.shape_cast %0 : vector<1x256xf32> to vector<1x256xf32>
    %2 = vector.broadcast %1 : vector<1x256xf32> to vector<8x256xf32>
    %c0_1 = arith.constant 0 : index
    %c0_2 = arith.constant 0 : index
    %3 = vector.load %arg4[%c0_1, %c0_2] : memref<1x256xf32, #tpu.memory_space<vmem>>, vector<1x256xf32>
    %4 = vector.shape_cast %3 : vector<1x256xf32> to vector<1x256xf32>
    %5 = vector.broadcast %4 : vector<1x256xf32> to vector<8x256xf32>
    %c0_i32 = arith.constant 0 : i32
    %6 = arith.index_cast %c0_i32 : i32 to index
    %c0_3 = arith.constant 0 : index
    %c0_4 = arith.constant 0 : index
    %7 = vector.load %arg1[%6, %c0_3, %c0_4] : memref<9x8x768xf32, #tpu.memory_space<vmem>>, vector<1x8x768xf32>
    %8 = vector.shape_cast %7 : vector<1x8x768xf32> to vector<8x768xf32>
    %c0_5 = arith.constant 0 : index
    %c0_6 = arith.constant 0 : index
    %9 = vector.load %arg2[%c0_5, %c0_6] : memref<256x768xf32, #tpu.memory_space<vmem>>, vector<256x768xf32>
    %cst = arith.constant dense<0.000000e+00> : vector<8x768xf32>
    %10 = tpu.matmul %5, %9, %cst {dimension_numbers = #tpu.dot_dimension_numbers<[1], [0], [0], [1], [0, 0, 1, 1], [], []>} : vector<8x256xf32>, vector<256x768xf32>, vector<8x768xf32> -> vector<8x768xf32>
    %11 = vector.extract_strided_slice %8 {offsets = [0, 0], sizes = [8, 256], strides = [1, 1]} : vector<8x768xf32> to vector<8x256xf32>
    %12 = vector.extract_strided_slice %10 {offsets = [0, 0], sizes = [8, 256], strides = [1, 1]} : vector<8x768xf32> to vector<8x256xf32>
    %13 = arith.addf %11, %12 : vector<8x256xf32>
    %14 = arith.negf %13 : vector<8x256xf32>
    %15 = math.exp %14 : vector<8x256xf32>
    %cst_7 = arith.constant 1.000000e+00 : f32
    %16 = vector.broadcast %cst_7 : f32 to vector<8x256xf32>
    %17 = arith.addf %16, %15 : vector<8x256xf32>
    %18 = arith.divf %16, %17 : vector<8x256xf32>
    %19 = vector.extract_strided_slice %8 {offsets = [0, 256], sizes = [8, 256], strides = [1, 1]} : vector<8x768xf32> to vector<8x256xf32>
    %20 = vector.extract_strided_slice %10 {offsets = [0, 256], sizes = [8, 256], strides = [1, 1]} : vector<8x768xf32> to vector<8x256xf32>
    %21 = arith.addf %19, %20 : vector<8x256xf32>
    %22 = arith.negf %21 : vector<8x256xf32>
    %23 = math.exp %22 : vector<8x256xf32>
    %cst_8 = arith.constant 1.000000e+00 : f32
    %24 = vector.broadcast %cst_8 : f32 to vector<8x256xf32>
    %25 = arith.addf %24, %23 : vector<8x256xf32>
    %26 = arith.divf %24, %25 : vector<8x256xf32>
    %27 = vector.extract_strided_slice %8 {offsets = [0, 512], sizes = [8, 256], strides = [1, 1]} : vector<8x768xf32> to vector<8x256xf32>
    %28 = vector.extract_strided_slice %10 {offsets = [0, 512], sizes = [8, 256], strides = [1, 1]} : vector<8x768xf32> to vector<8x256xf32>
    %29 = arith.addf %28, %2 : vector<8x256xf32>
    %30 = arith.mulf %18, %29 : vector<8x256xf32>
    %31 = arith.addf %27, %30 : vector<8x256xf32>
    %32 = math.tanh %31 : vector<8x256xf32>
    %33 = arith.subf %5, %32 : vector<8x256xf32>
    %34 = arith.mulf %26, %33 : vector<8x256xf32>
    %35 = arith.addf %32, %34 : vector<8x256xf32>
    %c8_i32 = arith.constant 8 : i32
    %36 = arith.muli %c0_i32, %c8_i32 : i32
    %37 = tpu.assume_multiple %36, 8 : i32
    %38 = arith.index_cast %37 : i32 to index
    %c0_9 = arith.constant 0 : index
    %39 = vector.load %arg8[%38, %c0_9] : memref<72x256xf32, #tpu.memory_space<vmem>>, vector<8x256xf32>
    tpu.vector_store %arg8[%38, %c0_9], %35 {strides = array<i32>} : memref<72x256xf32, #tpu.memory_space<vmem>>, vector<8x256xf32>,
    %c1_i32 = arith.constant 1 : i32
    %40 = arith.index_cast %c1_i32 : i32 to index
    %c0_10 = arith.constant 0 : index
    %c0_11 = arith.constant 0 : index
    %41 = vector.load %arg1[%40, %c0_10, %c0_11] : memref<9x8x768xf32, #tpu.memory_space<vmem>>, vector<1x8x768xf32>
    %42 = vector.shape_cast %41 : vector<1x8x768xf32> to vector<8x768xf32>
    %c0_12 = arith.constant 0 : index
    %c0_13 = arith.constant 0 : index
    %43 = vector.load %arg2[%c0_12, %c0_13] : memref<256x768xf32, #tpu.memory_space<vmem>>, vector<256x768xf32>
    %cst_14 = arith.constant dense<0.000000e+00> : vector<8x768xf32>
    %44 = tpu.matmul %35, %43, %cst_14 {dimension_numbers = #tpu.dot_dimension_numbers<[1], [0], [0], [1], [0, 0, 1, 1], [], []>} : vector<8x256xf32>, vector<256x768xf32>, vector<8x768xf32> -> vector<8x768xf32>
    %45 = vector.extract_strided_slice %42 {offsets = [0, 0], sizes = [8, 256], strides = [1, 1]} : vector<8x768xf32> to vector<8x256xf32>
    %46 = vector.extract_strided_slice %44 {offsets = [0, 0], sizes = [8, 256], strides = [1, 1]} : vector<8x768xf32> to vector<8x256xf32>
    %47 = arith.addf %45, %46 : vector<8x256xf32>
    %48 = arith.negf %47 : vector<8x256xf32>
    %49 = math.exp %48 : vector<8x256xf32>
    %cst_15 = arith.constant 1.000000e+00 : f32
    %50 = vector.broadcast %cst_15 : f32 to vector<8x256xf32>
    %51 = arith.addf %50, %49 : vector<8x256xf32>
    %52 = arith.divf %50, %51 : vector<8x256xf32>
    %53 = vector.extract_strided_slice %42 {offsets = [0, 256], sizes = [8, 256], strides = [1, 1]} : vector<8x768xf32> to vector<8x256xf32>
    %54 = vector.extract_strided_slice %44 {offsets = [0, 256], sizes = [8, 256], strides = [1, 1]} : vector<8x768xf32> to vector<8x256xf32>
    %55 = arith.addf %53, %54 : vector<8x256xf32>
    %56 = arith.negf %55 : vector<8x256xf32>
    %57 = math.exp %56 : vector<8x256xf32>
    %cst_16 = arith.constant 1.000000e+00 : f32
    %58 = vector.broadcast %cst_16 : f32 to vector<8x256xf32>
    %59 = arith.addf %58, %57 : vector<8x256xf32>
    %60 = arith.divf %58, %59 : vector<8x256xf32>
    %61 = vector.extract_strided_slice %42 {offsets = [0, 512], sizes = [8, 256], strides = [1, 1]} : vector<8x768xf32> to vector<8x256xf32>
    %62 = vector.extract_strided_slice %44 {offsets = [0, 512], sizes = [8, 256], strides = [1, 1]} : vector<8x768xf32> to vector<8x256xf32>
    %63 = arith.addf %62, %2 : vector<8x256xf32>
    %64 = arith.mulf %52, %63 : vector<8x256xf32>
    %65 = arith.addf %61, %64 : vector<8x256xf32>
    %66 = math.tanh %65 : vector<8x256xf32>
    %67 = arith.subf %35, %66 : vector<8x256xf32>
    %68 = arith.mulf %60, %67 : vector<8x256xf32>
    %69 = arith.addf %66, %68 : vector<8x256xf32>
    %c8_i32_17 = arith.constant 8 : i32
    %70 = arith.muli %c1_i32, %c8_i32_17 : i32
    %71 = tpu.assume_multiple %70, 8 : i32
    %72 = arith.index_cast %71 : i32 to index
    %c0_18 = arith.constant 0 : index
    %73 = vector.load %arg8[%72, %c0_18] : memref<72x256xf32, #tpu.memory_space<vmem>>, vector<8x256xf32>
    tpu.vector_store %arg8[%72, %c0_18], %69 {strides = array<i32>} : memref<72x256xf32, #tpu.memory_space<vmem>>, vector<8x256xf32>,
    %c2_i32 = arith.constant 2 : i32
    %74 = arith.index_cast %c2_i32 : i32 to index
    %c0_19 = arith.constant 0 : index
    %c0_20 = arith.constant 0 : index
    %75 = vector.load %arg1[%74, %c0_19, %c0_20] : memref<9x8x768xf32, #tpu.memory_space<vmem>>, vector<1x8x768xf32>
    %76 = vector.shape_cast %75 : vector<1x8x768xf32> to vector<8x768xf32>
    %c0_21 = arith.constant 0 : index
    %c0_22 = arith.constant 0 : index
    %77 = vector.load %arg2[%c0_21, %c0_22] : memref<256x768xf32, #tpu.memory_space<vmem>>, vector<256x768xf32>
    %cst_23 = arith.constant dense<0.000000e+00> : vector<8x768xf32>
    %78 = tpu.matmul %69, %77, %cst_23 {dimension_numbers = #tpu.dot_dimension_numbers<[1], [0], [0], [1], [0, 0, 1, 1], [], []>} : vector<8x256xf32>, vector<256x768xf32>, vector<8x768xf32> -> vector<8x768xf32>
    %79 = vector.extract_strided_slice %76 {offsets = [0, 0], sizes = [8, 256], strides = [1, 1]} : vector<8x768xf32> to vector<8x256xf32>
    %80 = vector.extract_strided_slice %78 {offsets = [0, 0], sizes = [8, 256], strides = [1, 1]} : vector<8x768xf32> to vector<8x256xf32>
    %81 = arith.addf %79, %80 : vector<8x256xf32>
    %82 = arith.negf %81 : vector<8x256xf32>
    %83 = math.exp %82 : vector<8x256xf32>
    %cst_24 = arith.constant 1.000000e+00 : f32
    %84 = vector.broadcast %cst_24 : f32 to vector<8x256xf32>
    %85 = arith.addf %84, %83 : vector<8x256xf32>
    %86 = arith.divf %84, %85 : vector<8x256xf32>
    %87 = vector.extract_strided_slice %76 {offsets = [0, 256], sizes = [8, 256], strides = [1, 1]} : vector<8x768xf32> to vector<8x256xf32>
    %88 = vector.extract_strided_slice %78 {offsets = [0, 256], sizes = [8, 256], strides = [1, 1]} : vector<8x768xf32> to vector<8x256xf32>
    %89 = arith.addf %87, %88 : vector<8x256xf32>
    %90 = arith.negf %89 : vector<8x256xf32>
    %91 = math.exp %90 : vector<8x256xf32>
    %cst_25 = arith.constant 1.000000e+00 : f32
    %92 = vector.broadcast %cst_25 : f32 to vector<8x256xf32>
    %93 = arith.addf %92, %91 : vector<8x256xf32>
    %94 = arith.divf %92, %93 : vector<8x256xf32>
    %95 = vector.extract_strided_slice %76 {offsets = [0, 512], sizes = [8, 256], strides = [1, 1]} : vector<8x768xf32> to vector<8x256xf32>
    %96 = vector.extract_strided_slice %78 {offsets = [0, 512], sizes = [8, 256], strides = [1, 1]} : vector<8x768xf32> to vector<8x256xf32>
    %97 = arith.addf %96, %2 : vector<8x256xf32>
    %98 = arith.mulf %86, %97 : vector<8x256xf32>
    %99 = arith.addf %95, %98 : vector<8x256xf32>
    %100 = math.tanh %99 : vector<8x256xf32>
    %101 = arith.subf %69, %100 : vector<8x256xf32>
    %102 = arith.mulf %94, %101 : vector<8x256xf32>
    %103 = arith.addf %100, %102 : vector<8x256xf32>
    %c8_i32_26 = arith.constant 8 : i32
    %104 = arith.muli %c2_i32, %c8_i32_26 : i32
    %105 = tpu.assume_multiple %104, 8 : i32
    %106 = arith.index_cast %105 : i32 to index
    %c0_27 = arith.constant 0 : index
    %107 = vector.load %arg8[%106, %c0_27] : memref<72x256xf32, #tpu.memory_space<vmem>>, vector<8x256xf32>
    tpu.vector_store %arg8[%106, %c0_27], %103 {strides = array<i32>} : memref<72x256xf32, #tpu.memory_space<vmem>>, vector<8x256xf32>,
    %c3_i32 = arith.constant 3 : i32
    %108 = arith.index_cast %c3_i32 : i32 to index
    %c0_28 = arith.constant 0 : index
    %c0_29 = arith.constant 0 : index
    %109 = vector.load %arg1[%108, %c0_28, %c0_29] : memref<9x8x768xf32, #tpu.memory_space<vmem>>, vector<1x8x768xf32>
    %110 = vector.shape_cast %109 : vector<1x8x768xf32> to vector<8x768xf32>
    %c0_30 = arith.constant 0 : index
    %c0_31 = arith.constant 0 : index
    %111 = vector.load %arg2[%c0_30, %c0_31] : memref<256x768xf32, #tpu.memory_space<vmem>>, vector<256x768xf32>
    %cst_32 = arith.constant dense<0.000000e+00> : vector<8x768xf32>
    %112 = tpu.matmul %103, %111, %cst_32 {dimension_numbers = #tpu.dot_dimension_numbers<[1], [0], [0], [1], [0, 0, 1, 1], [], []>} : vector<8x256xf32>, vector<256x768xf32>, vector<8x768xf32> -> vector<8x768xf32>
    %113 = vector.extract_strided_slice %110 {offsets = [0, 0], sizes = [8, 256], strides = [1, 1]} : vector<8x768xf32> to vector<8x256xf32>
    %114 = vector.extract_strided_slice %112 {offsets = [0, 0], sizes = [8, 256], strides = [1, 1]} : vector<8x768xf32> to vector<8x256xf32>
    %115 = arith.addf %113, %114 : vector<8x256xf32>
    %116 = arith.negf %115 : vector<8x256xf32>
    %117 = math.exp %116 : vector<8x256xf32>
    %cst_33 = arith.constant 1.000000e+00 : f32
    %118 = vector.broadcast %cst_33 : f32 to vector<8x256xf32>
    %119 = arith.addf %118, %117 : vector<8x256xf32>
    %120 = arith.divf %118, %119 : vector<8x256xf32>
    %121 = vector.extract_strided_slice %110 {offsets = [0, 256], sizes = [8, 256], strides = [1, 1]} : vector<8x768xf32> to vector<8x256xf32>
    %122 = vector.extract_strided_slice %112 {offsets = [0, 256], sizes = [8, 256], strides = [1, 1]} : vector<8x768xf32> to vector<8x256xf32>
    %123 = arith.addf %121, %122 : vector<8x256xf32>
    %124 = arith.negf %123 : vector<8x256xf32>
    %125 = math.exp %124 : vector<8x256xf32>
    %cst_34 = arith.constant 1.000000e+00 : f32
    %126 = vector.broadcast %cst_34 : f32 to vector<8x256xf32>
    %127 = arith.addf %126, %125 : vector<8x256xf32>
    %128 = arith.divf %126, %127 : vector<8x256xf32>
    %129 = vector.extract_strided_slice %110 {offsets = [0, 512], sizes = [8, 256], strides = [1, 1]} : vector<8x768xf32> to vector<8x256xf32>
    %130 = vector.extract_strided_slice %112 {offsets = [0, 512], sizes = [8, 256], strides = [1, 1]} : vector<8x768xf32> to vector<8x256xf32>
    %131 = arith.addf %130, %2 : vector<8x256xf32>
    %132 = arith.mulf %120, %131 : vector<8x256xf32>
    %133 = arith.addf %129, %132 : vector<8x256xf32>
    %134 = math.tanh %133 : vector<8x256xf32>
    %135 = arith.subf %103, %134 : vector<8x256xf32>
    %136 = arith.mulf %128, %135 : vector<8x256xf32>
    %137 = arith.addf %134, %136 : vector<8x256xf32>
    %c8_i32_35 = arith.constant 8 : i32
    %138 = arith.muli %c3_i32, %c8_i32_35 : i32
    %139 = tpu.assume_multiple %138, 8 : i32
    %140 = arith.index_cast %139 : i32 to index
    %c0_36 = arith.constant 0 : index
    %141 = vector.load %arg8[%140, %c0_36] : memref<72x256xf32, #tpu.memory_space<vmem>>, vector<8x256xf32>
    tpu.vector_store %arg8[%140, %c0_36], %137 {strides = array<i32>} : memref<72x256xf32, #tpu.memory_space<vmem>>, vector<8x256xf32>,
    %c4_i32 = arith.constant 4 : i32
    %142 = arith.index_cast %c4_i32 : i32 to index
    %c0_37 = arith.constant 0 : index
    %c0_38 = arith.constant 0 : index
    %143 = vector.load %arg1[%142, %c0_37, %c0_38] : memref<9x8x768xf32, #tpu.memory_space<vmem>>, vector<1x8x768xf32>
    %144 = vector.shape_cast %143 : vector<1x8x768xf32> to vector<8x768xf32>
    %c0_39 = arith.constant 0 : index
    %c0_40 = arith.constant 0 : index
    %145 = vector.load %arg2[%c0_39, %c0_40] : memref<256x768xf32, #tpu.memory_space<vmem>>, vector<256x768xf32>
    %cst_41 = arith.constant dense<0.000000e+00> : vector<8x768xf32>
    %146 = tpu.matmul %137, %145, %cst_41 {dimension_numbers = #tpu.dot_dimension_numbers<[1], [0], [0], [1], [0, 0, 1, 1], [], []>} : vector<8x256xf32>, vector<256x768xf32>, vector<8x768xf32> -> vector<8x768xf32>
    %147 = vector.extract_strided_slice %144 {offsets = [0, 0], sizes = [8, 256], strides = [1, 1]} : vector<8x768xf32> to vector<8x256xf32>
    %148 = vector.extract_strided_slice %146 {offsets = [0, 0], sizes = [8, 256], strides = [1, 1]} : vector<8x768xf32> to vector<8x256xf32>
    %149 = arith.addf %147, %148 : vector<8x256xf32>
    %150 = arith.negf %149 : vector<8x256xf32>
    %151 = math.exp %150 : vector<8x256xf32>
    %cst_42 = arith.constant 1.000000e+00 : f32
    %152 = vector.broadcast %cst_42 : f32 to vector<8x256xf32>
    %153 = arith.addf %152, %151 : vector<8x256xf32>
    %154 = arith.divf %152, %153 : vector<8x256xf32>
    %155 = vector.extract_strided_slice %144 {offsets = [0, 256], sizes = [8, 256], strides = [1, 1]} : vector<8x768xf32> to vector<8x256xf32>
    %156 = vector.extract_strided_slice %146 {offsets = [0, 256], sizes = [8, 256], strides = [1, 1]} : vector<8x768xf32> to vector<8x256xf32>
    %157 = arith.addf %155, %156 : vector<8x256xf32>
    %158 = arith.negf %157 : vector<8x256xf32>
    %159 = math.exp %158 : vector<8x256xf32>
    %cst_43 = arith.constant 1.000000e+00 : f32
    %160 = vector.broadcast %cst_43 : f32 to vector<8x256xf32>
    %161 = arith.addf %160, %159 : vector<8x256xf32>
    %162 = arith.divf %160, %161 : vector<8x256xf32>
    %163 = vector.extract_strided_slice %144 {offsets = [0, 512], sizes = [8, 256], strides = [1, 1]} : vector<8x768xf32> to vector<8x256xf32>
    %164 = vector.extract_strided_slice %146 {offsets = [0, 512], sizes = [8, 256], strides = [1, 1]} : vector<8x768xf32> to vector<8x256xf32>
    %165 = arith.addf %164, %2 : vector<8x256xf32>
    %166 = arith.mulf %154, %165 : vector<8x256xf32>
    %167 = arith.addf %163, %166 : vector<8x256xf32>
    %168 = math.tanh %167 : vector<8x256xf32>
    %169 = arith.subf %137, %168 : vector<8x256xf32>
    %170 = arith.mulf %162, %169 : vector<8x256xf32>
    %171 = arith.addf %168, %170 : vector<8x256xf32>
    %c8_i32_44 = arith.constant 8 : i32
    %172 = arith.muli %c4_i32, %c8_i32_44 : i32
    %173 = tpu.assume_multiple %172, 8 : i32
    %174 = arith.index_cast %173 : i32 to index
    %c0_45 = arith.constant 0 : index
    %175 = vector.load %arg8[%174, %c0_45] : memref<72x256xf32, #tpu.memory_space<vmem>>, vector<8x256xf32>
    tpu.vector_store %arg8[%174, %c0_45], %171 {strides = array<i32>} : memref<72x256xf32, #tpu.memory_space<vmem>>, vector<8x256xf32>,
    %c5_i32 = arith.constant 5 : i32
    %176 = arith.index_cast %c5_i32 : i32 to index
    %c0_46 = arith.constant 0 : index
    %c0_47 = arith.constant 0 : index
    %177 = vector.load %arg1[%176, %c0_46, %c0_47] : memref<9x8x768xf32, #tpu.memory_space<vmem>>, vector<1x8x768xf32>
    %178 = vector.shape_cast %177 : vector<1x8x768xf32> to vector<8x768xf32>
    %c0_48 = arith.constant 0 : index
    %c0_49 = arith.constant 0 : index
    %179 = vector.load %arg2[%c0_48, %c0_49] : memref<256x768xf32, #tpu.memory_space<vmem>>, vector<256x768xf32>
    %cst_50 = arith.constant dense<0.000000e+00> : vector<8x768xf32>
    %180 = tpu.matmul %171, %179, %cst_50 {dimension_numbers = #tpu.dot_dimension_numbers<[1], [0], [0], [1], [0, 0, 1, 1], [], []>} : vector<8x256xf32>, vector<256x768xf32>, vector<8x768xf32> -> vector<8x768xf32>
    %181 = vector.extract_strided_slice %178 {offsets = [0, 0], sizes = [8, 256], strides = [1, 1]} : vector<8x768xf32> to vector<8x256xf32>
    %182 = vector.extract_strided_slice %180 {offsets = [0, 0], sizes = [8, 256], strides = [1, 1]} : vector<8x768xf32> to vector<8x256xf32>
    %183 = arith.addf %181, %182 : vector<8x256xf32>
    %184 = arith.negf %183 : vector<8x256xf32>
    %185 = math.exp %184 : vector<8x256xf32>
    %cst_51 = arith.constant 1.000000e+00 : f32
    %186 = vector.broadcast %cst_51 : f32 to vector<8x256xf32>
    %187 = arith.addf %186, %185 : vector<8x256xf32>
    %188 = arith.divf %186, %187 : vector<8x256xf32>
    %189 = vector.extract_strided_slice %178 {offsets = [0, 256], sizes = [8, 256], strides = [1, 1]} : vector<8x768xf32> to vector<8x256xf32>
    %190 = vector.extract_strided_slice %180 {offsets = [0, 256], sizes = [8, 256], strides = [1, 1]} : vector<8x768xf32> to vector<8x256xf32>
    %191 = arith.addf %189, %190 : vector<8x256xf32>
    %192 = arith.negf %191 : vector<8x256xf32>
    %193 = math.exp %192 : vector<8x256xf32>
    %cst_52 = arith.constant 1.000000e+00 : f32
    %194 = vector.broadcast %cst_52 : f32 to vector<8x256xf32>
    %195 = arith.addf %194, %193 : vector<8x256xf32>
    %196 = arith.divf %194, %195 : vector<8x256xf32>
    %197 = vector.extract_strided_slice %178 {offsets = [0, 512], sizes = [8, 256], strides = [1, 1]} : vector<8x768xf32> to vector<8x256xf32>
    %198 = vector.extract_strided_slice %180 {offsets = [0, 512], sizes = [8, 256], strides = [1, 1]} : vector<8x768xf32> to vector<8x256xf32>
    %199 = arith.addf %198, %2 : vector<8x256xf32>
    %200 = arith.mulf %188, %199 : vector<8x256xf32>
    %201 = arith.addf %197, %200 : vector<8x256xf32>
    %202 = math.tanh %201 : vector<8x256xf32>
    %203 = arith.subf %171, %202 : vector<8x256xf32>
    %204 = arith.mulf %196, %203 : vector<8x256xf32>
    %205 = arith.addf %202, %204 : vector<8x256xf32>
    %c8_i32_53 = arith.constant 8 : i32
    %206 = arith.muli %c5_i32, %c8_i32_53 : i32
    %207 = tpu.assume_multiple %206, 8 : i32
    %208 = arith.index_cast %207 : i32 to index
    %c0_54 = arith.constant 0 : index
    %209 = vector.load %arg8[%208, %c0_54] : memref<72x256xf32, #tpu.memory_space<vmem>>, vector<8x256xf32>
    tpu.vector_store %arg8[%208, %c0_54], %205 {strides = array<i32>} : memref<72x256xf32, #tpu.memory_space<vmem>>, vector<8x256xf32>,
    %c6_i32 = arith.constant 6 : i32
    %210 = arith.index_cast %c6_i32 : i32 to index
    %c0_55 = arith.constant 0 : index
    %c0_56 = arith.constant 0 : index
    %211 = vector.load %arg1[%210, %c0_55, %c0_56] : memref<9x8x768xf32, #tpu.memory_space<vmem>>, vector<1x8x768xf32>
    %212 = vector.shape_cast %211 : vector<1x8x768xf32> to vector<8x768xf32>
    %c0_57 = arith.constant 0 : index
    %c0_58 = arith.constant 0 : index
    %213 = vector.load %arg2[%c0_57, %c0_58] : memref<256x768xf32, #tpu.memory_space<vmem>>, vector<256x768xf32>
    %cst_59 = arith.constant dense<0.000000e+00> : vector<8x768xf32>
    %214 = tpu.matmul %205, %213, %cst_59 {dimension_numbers = #tpu.dot_dimension_numbers<[1], [0], [0], [1], [0, 0, 1, 1], [], []>} : vector<8x256xf32>, vector<256x768xf32>, vector<8x768xf32> -> vector<8x768xf32>
    %215 = vector.extract_strided_slice %212 {offsets = [0, 0], sizes = [8, 256], strides = [1, 1]} : vector<8x768xf32> to vector<8x256xf32>
    %216 = vector.extract_strided_slice %214 {offsets = [0, 0], sizes = [8, 256], strides = [1, 1]} : vector<8x768xf32> to vector<8x256xf32>
    %217 = arith.addf %215, %216 : vector<8x256xf32>
    %218 = arith.negf %217 : vector<8x256xf32>
    %219 = math.exp %218 : vector<8x256xf32>
    %cst_60 = arith.constant 1.000000e+00 : f32
    %220 = vector.broadcast %cst_60 : f32 to vector<8x256xf32>
    %221 = arith.addf %220, %219 : vector<8x256xf32>
    %222 = arith.divf %220, %221 : vector<8x256xf32>
    %223 = vector.extract_strided_slice %212 {offsets = [0, 256], sizes = [8, 256], strides = [1, 1]} : vector<8x768xf32> to vector<8x256xf32>
    %224 = vector.extract_strided_slice %214 {offsets = [0, 256], sizes = [8, 256], strides = [1, 1]} : vector<8x768xf32> to vector<8x256xf32>
    %225 = arith.addf %223, %224 : vector<8x256xf32>
    %226 = arith.negf %225 : vector<8x256xf32>
    %227 = math.exp %226 : vector<8x256xf32>
    %cst_61 = arith.constant 1.000000e+00 : f32
    %228 = vector.broadcast %cst_61 : f32 to vector<8x256xf32>
    %229 = arith.addf %228, %227 : vector<8x256xf32>
    %230 = arith.divf %228, %229 : vector<8x256xf32>
    %231 = vector.extract_strided_slice %212 {offsets = [0, 512], sizes = [8, 256], strides = [1, 1]} : vector<8x768xf32> to vector<8x256xf32>
    %232 = vector.extract_strided_slice %214 {offsets = [0, 512], sizes = [8, 256], strides = [1, 1]} : vector<8x768xf32> to vector<8x256xf32>
    %233 = arith.addf %232, %2 : vector<8x256xf32>
    %234 = arith.mulf %222, %233 : vector<8x256xf32>
    %235 = arith.addf %231, %234 : vector<8x256xf32>
    %236 = math.tanh %235 : vector<8x256xf32>
    %237 = arith.subf %205, %236 : vector<8x256xf32>
    %238 = arith.mulf %230, %237 : vector<8x256xf32>
    %239 = arith.addf %236, %238 : vector<8x256xf32>
    %c8_i32_62 = arith.constant 8 : i32
    %240 = arith.muli %c6_i32, %c8_i32_62 : i32
    %241 = tpu.assume_multiple %240, 8 : i32
    %242 = arith.index_cast %241 : i32 to index
    %c0_63 = arith.constant 0 : index
    %243 = vector.load %arg8[%242, %c0_63] : memref<72x256xf32, #tpu.memory_space<vmem>>, vector<8x256xf32>
    tpu.vector_store %arg8[%242, %c0_63], %239 {strides = array<i32>} : memref<72x256xf32, #tpu.memory_space<vmem>>, vector<8x256xf32>,
    %c7_i32 = arith.constant 7 : i32
    %244 = arith.index_cast %c7_i32 : i32 to index
    %c0_64 = arith.constant 0 : index
    %c0_65 = arith.constant 0 : index
    %245 = vector.load %arg1[%244, %c0_64, %c0_65] : memref<9x8x768xf32, #tpu.memory_space<vmem>>, vector<1x8x768xf32>
    %246 = vector.shape_cast %245 : vector<1x8x768xf32> to vector<8x768xf32>
    %c0_66 = arith.constant 0 : index
    %c0_67 = arith.constant 0 : index
    %247 = vector.load %arg2[%c0_66, %c0_67] : memref<256x768xf32, #tpu.memory_space<vmem>>, vector<256x768xf32>
    %cst_68 = arith.constant dense<0.000000e+00> : vector<8x768xf32>
    %248 = tpu.matmul %239, %247, %cst_68 {dimension_numbers = #tpu.dot_dimension_numbers<[1], [0], [0], [1], [0, 0, 1, 1], [], []>} : vector<8x256xf32>, vector<256x768xf32>, vector<8x768xf32> -> vector<8x768xf32>
    %249 = vector.extract_strided_slice %246 {offsets = [0, 0], sizes = [8, 256], strides = [1, 1]} : vector<8x768xf32> to vector<8x256xf32>
    %250 = vector.extract_strided_slice %248 {offsets = [0, 0], sizes = [8, 256], strides = [1, 1]} : vector<8x768xf32> to vector<8x256xf32>
    %251 = arith.addf %249, %250 : vector<8x256xf32>
    %252 = arith.negf %251 : vector<8x256xf32>
    %253 = math.exp %252 : vector<8x256xf32>
    %cst_69 = arith.constant 1.000000e+00 : f32
    %254 = vector.broadcast %cst_69 : f32 to vector<8x256xf32>
    %255 = arith.addf %254, %253 : vector<8x256xf32>
    %256 = arith.divf %254, %255 : vector<8x256xf32>
    %257 = vector.extract_strided_slice %246 {offsets = [0, 256], sizes = [8, 256], strides = [1, 1]} : vector<8x768xf32> to vector<8x256xf32>
    %258 = vector.extract_strided_slice %248 {offsets = [0, 256], sizes = [8, 256], strides = [1, 1]} : vector<8x768xf32> to vector<8x256xf32>
    %259 = arith.addf %257, %258 : vector<8x256xf32>
    %260 = arith.negf %259 : vector<8x256xf32>
    %261 = math.exp %260 : vector<8x256xf32>
    %cst_70 = arith.constant 1.000000e+00 : f32
    %262 = vector.broadcast %cst_70 : f32 to vector<8x256xf32>
    %263 = arith.addf %262, %261 : vector<8x256xf32>
    %264 = arith.divf %262, %263 : vector<8x256xf32>
    %265 = vector.extract_strided_slice %246 {offsets = [0, 512], sizes = [8, 256], strides = [1, 1]} : vector<8x768xf32> to vector<8x256xf32>
    %266 = vector.extract_strided_slice %248 {offsets = [0, 512], sizes = [8, 256], strides = [1, 1]} : vector<8x768xf32> to vector<8x256xf32>
    %267 = arith.addf %266, %2 : vector<8x256xf32>
    %268 = arith.mulf %256, %267 : vector<8x256xf32>
    %269 = arith.addf %265, %268 : vector<8x256xf32>
    %270 = math.tanh %269 : vector<8x256xf32>
    %271 = arith.subf %239, %270 : vector<8x256xf32>
    %272 = arith.mulf %264, %271 : vector<8x256xf32>
    %273 = arith.addf %270, %272 : vector<8x256xf32>
    %c8_i32_71 = arith.constant 8 : i32
    %274 = arith.muli %c7_i32, %c8_i32_71 : i32
    %275 = tpu.assume_multiple %274, 8 : i32
    %276 = arith.index_cast %275 : i32 to index
    %c0_72 = arith.constant 0 : index
    %277 = vector.load %arg8[%276, %c0_72] : memref<72x256xf32, #tpu.memory_space<vmem>>, vector<8x256xf32>
    tpu.vector_store %arg8[%276, %c0_72], %273 {strides = array<i32>} : memref<72x256xf32, #tpu.memory_space<vmem>>, vector<8x256xf32>,
    %c8_i32_73 = arith.constant 8 : i32
    %278 = arith.index_cast %c8_i32_73 : i32 to index
    %c0_74 = arith.constant 0 : index
    %c0_75 = arith.constant 0 : index
    %279 = vector.load %arg1[%278, %c0_74, %c0_75] : memref<9x8x768xf32, #tpu.memory_space<vmem>>, vector<1x8x768xf32>
    %280 = vector.shape_cast %279 : vector<1x8x768xf32> to vector<8x768xf32>
    %c0_76 = arith.constant 0 : index
    %c0_77 = arith.constant 0 : index
    %281 = vector.load %arg2[%c0_76, %c0_77] : memref<256x768xf32, #tpu.memory_space<vmem>>, vector<256x768xf32>
    %cst_78 = arith.constant dense<0.000000e+00> : vector<8x768xf32>
    %282 = tpu.matmul %273, %281, %cst_78 {dimension_numbers = #tpu.dot_dimension_numbers<[1], [0], [0], [1], [0, 0, 1, 1], [], []>} : vector<8x256xf32>, vector<256x768xf32>, vector<8x768xf32> -> vector<8x768xf32>
    %283 = vector.extract_strided_slice %280 {offsets = [0, 0], sizes = [8, 256], strides = [1, 1]} : vector<8x768xf32> to vector<8x256xf32>
    %284 = vector.extract_strided_slice %282 {offsets = [0, 0], sizes = [8, 256], strides = [1, 1]} : vector<8x768xf32> to vector<8x256xf32>
    %285 = arith.addf %283, %284 : vector<8x256xf32>
    %286 = arith.negf %285 : vector<8x256xf32>
    %287 = math.exp %286 : vector<8x256xf32>
    %cst_79 = arith.constant 1.000000e+00 : f32
    %288 = vector.broadcast %cst_79 : f32 to vector<8x256xf32>
    %289 = arith.addf %288, %287 : vector<8x256xf32>
    %290 = arith.divf %288, %289 : vector<8x256xf32>
    %291 = vector.extract_strided_slice %280 {offsets = [0, 256], sizes = [8, 256], strides = [1, 1]} : vector<8x768xf32> to vector<8x256xf32>
    %292 = vector.extract_strided_slice %282 {offsets = [0, 256], sizes = [8, 256], strides = [1, 1]} : vector<8x768xf32> to vector<8x256xf32>
    %293 = arith.addf %291, %292 : vector<8x256xf32>
    %294 = arith.negf %293 : vector<8x256xf32>
    %295 = math.exp %294 : vector<8x256xf32>
    %cst_80 = arith.constant 1.000000e+00 : f32
    %296 = vector.broadcast %cst_80 : f32 to vector<8x256xf32>
    %297 = arith.addf %296, %295 : vector<8x256xf32>
    %298 = arith.divf %296, %297 : vector<8x256xf32>
    %299 = vector.extract_strided_slice %280 {offsets = [0, 512], sizes = [8, 256], strides = [1, 1]} : vector<8x768xf32> to vector<8x256xf32>
    %300 = vector.extract_strided_slice %282 {offsets = [0, 512], sizes = [8, 256], strides = [1, 1]} : vector<8x768xf32> to vector<8x256xf32>
    %301 = arith.addf %300, %2 : vector<8x256xf32>
    %302 = arith.mulf %290, %301 : vector<8x256xf32>
    %303 = arith.addf %299, %302 : vector<8x256xf32>
    %304 = math.tanh %303 : vector<8x256xf32>
    %305 = arith.subf %273, %304 : vector<8x256xf32>
    %306 = arith.mulf %298, %305 : vector<8x256xf32>
    %307 = arith.addf %304, %306 : vector<8x256xf32>
    %c8_i32_81 = arith.constant 8 : i32
    %308 = arith.muli %c8_i32_73, %c8_i32_81 : i32
    %309 = tpu.assume_multiple %308, 8 : i32
    %310 = arith.index_cast %309 : i32 to index
    %c0_82 = arith.constant 0 : index
    %311 = vector.load %arg8[%310, %c0_82] : memref<72x256xf32, #tpu.memory_space<vmem>>, vector<8x256xf32>
    tpu.vector_store %arg8[%310, %c0_82], %307 {strides = array<i32>} : memref<72x256xf32, #tpu.memory_space<vmem>>, vector<8x256xf32>,
    %c9_i32 = arith.constant 9 : i32
    %c0_83 = arith.constant 0 : index
    %c0_84 = arith.constant 0 : index
    %312 = vector.load %arg8[%c0_83, %c0_84] : memref<72x256xf32, #tpu.memory_space<vmem>>, vector<72x256xf32>
    %c0_85 = arith.constant 0 : index
    %c0_86 = arith.constant 0 : index
    %313 = vector.load %arg5[%c0_85, %c0_86] : memref<256x384xf32, #tpu.memory_space<vmem>>, vector<256x384xf32>
    %cst_87 = arith.constant dense<0.000000e+00> : vector<72x384xf32>
    %314 = tpu.matmul %312, %313, %cst_87 {dimension_numbers = #tpu.dot_dimension_numbers<[1], [0], [0], [1], [0, 0, 1, 1], [], []>} : vector<72x256xf32>, vector<256x384xf32>, vector<72x384xf32> -> vector<72x384xf32>
    %c0_88 = arith.constant 0 : index
    %c0_89 = arith.constant 0 : index
    %315 = vector.load %arg6[%c0_88, %c0_89] : memref<1x384xf32, #tpu.memory_space<vmem>>, vector<1x384xf32>
    %316 = vector.broadcast %315 : vector<1x384xf32> to vector<72x384xf32>
    %317 = arith.addf %314, %316 : vector<72x384xf32>
    %c0_90 = arith.constant 0 : index
    %c0_91 = arith.constant 0 : index
    %318 = vector.load %arg7[%c0_90, %c0_91] : memref<72x384xf32, #tpu.memory_space<vmem>>, vector<72x384xf32>
    tpu.vector_store %arg7[%c0_90, %c0_91], %317 {strides = array<i32>} : memref<72x384xf32, #tpu.memory_space<vmem>>, vector<72x384xf32>,
    return
  }
  func.func @transform_0(%arg0: i32) -> (i32, i32, i32) {
    %c0_i32 = arith.constant 0 : i32
    %c0_i32_0 = arith.constant 0 : i32
    %c0_i32_1 = arith.constant 0 : i32
    %c0_i32_2 = arith.constant 0 : i32
    return %c0_i32, %c0_i32_0, %c0_i32_1 : i32, i32, i32
  }
  func.func @transform_1(%arg0: i32) -> (i32, i32) {
    %c0_i32 = arith.constant 0 : i32
    %c0_i32_0 = arith.constant 0 : i32
    %c0_i32_1 = arith.constant 0 : i32
    return %c0_i32, %c0_i32_0 : i32, i32
  }
  func.func @transform_2(%arg0: i32) -> (i32, i32) {
    %c0_i32 = arith.constant 0 : i32
    %c0_i32_0 = arith.constant 0 : i32
    %c0_i32_1 = arith.constant 0 : i32
    return %c0_i32, %c0_i32_0 : i32, i32
  }
  func.func @transform_3(%arg0: i32) -> (i32, i32) {
    %c0_i32 = arith.constant 0 : i32
    %c0_i32_0 = arith.constant 0 : i32
    %c0_i32_1 = arith.constant 0 : i32
    return %c0_i32, %c0_i32_0 : i32, i32
  }
  func.func @transform_4(%arg0: i32) -> (i32, i32) {
    %c0_i32 = arith.constant 0 : i32
    %c0_i32_0 = arith.constant 0 : i32
    %c0_i32_1 = arith.constant 0 : i32
    return %c0_i32, %c0_i32_0 : i32, i32
  }
  func.func @transform_5(%arg0: i32) -> (i32, i32) {
    %c0_i32 = arith.constant 0 : i32
    %c0_i32_0 = arith.constant 0 : i32
    %c0_i32_1 = arith.constant 0 : i32
    return %c0_i32, %c0_i32_0 : i32, i32
  }
  func.func @transform_6(%arg0: i32) -> (i32, i32) {
    %c0_i32 = arith.constant 0 : i32
    %c0_i32_0 = arith.constant 0 : i32
    %c0_i32_1 = arith.constant 0 : i32
    return %c0_i32, %c0_i32_0 : i32, i32
  }
}

</mosaic_0001>

<llo_original>
// kernel: tpu_custom_call.1
$region0: #{tpu_custom_call.1}
  #allocation0 [shape = 'u32[]', space=smem, size = 0x4, offset = 0x4, fixed_abs, tag = 'smem constant byte address 0x4 - core index']
  #allocation1 [shape = 'u32[144,128]{1,0:T(1,128)}', space=vmem, size = 0x12000, scoped, tag = 'internal scratch']
  #allocation2 [shape = 'f32[72,256]{1,0:T(8,128)}', space=vmem, size = 0x12000, scoped, tag = 'scratch operand']
  %s0 = inlined_call_operand.hbm [shape: f32[9,8,768], index: 0, kind: input, shape index: {}]
  %s1 = inlined_call_operand.hbm [shape: f32[256,768], index: 1, kind: input, shape index: {}]
  %s2 = inlined_call_operand.vmem [shape: f32[1,256], index: 2, kind: input, shape index: {}]
  %s3 = inlined_call_operand.hbm [shape: f32[1,256], index: 3, kind: input, shape index: {}]
  %s4 = inlined_call_operand.hbm [shape: f32[256,384], index: 4, kind: input, shape index: {}]
  %s5 = inlined_call_operand.vmem [shape: f32[1,384], index: 5, kind: input, shape index: {}]
  %s6 = inlined_call_operand.hbm [shape: f32[72,384], index: 6, kind: output, shape index: {}]
  %s7 = sld [smem:[#allocation0]]
  $region50: #{tpu_custom_call.1} parent=0
    _
  %s9 = ssub.s32 1, %s7
  %s10 = scalar_select 0, %s9, %s7
  $region1: #{tpu_custom_call.1} parent=0
    #allocation3 [shape = 'u8[221184]{0}', space=vmem, size = 0x36000, scoped, tag = 'input window, operand 0, single buffered']
    #allocation4 [shape = 's32[1]{0}', space=sflag, size = 0x4, scoped, tag = 'scoped memory for tpu_custom_call.1']
    #allocation5 [shape = 's32[1]{0}', space=sflag, size = 0x4, scoped, tag = 'scoped memory for tpu_custom_call.1']
    #allocation6 [shape = 'u8[786432]{0}', space=vmem, size = 0xc0000, scoped, tag = 'input window, operand 1, single buffered']
    #allocation7 [shape = 's32[1]{0}', space=sflag, size = 0x4, scoped, tag = 'scoped memory for tpu_custom_call.1']
    #allocation8 [shape = 'u8[1024]{0}', space=vmem, size = 0x400, scoped, tag = 'input window, operand 3, single buffered']
    #allocation9 [shape = 'u8[393216]{0}', space=vmem, size = 0x60000, scoped, tag = 'input window, operand 4, single buffered']
    #allocation10 [shape = 's32[1]{0}', space=sflag, size = 0x4, scoped, tag = 'scoped memory for tpu_custom_call.1']
    #allocation11 [shape = 'u8[110592]{0}', space=vmem, size = 0x1b000, scoped, tag = 'output window, operand 0, single buffered']
    %11 = vsyncpa [#allocation4], 0
    %12 = vsyncpa [#allocation7], 0
    %13 = vsyncpa [#allocation10], 0
    %14 = vsyncpa [#allocation5], 0
    // Predicated region
    $region2: #{tpu_custom_call.1} parent=1 // pred_check
      _
    $region3: #{tpu_custom_call.1} parent=1 // pred_check_branch
      %16 = sbr.rel (0) target = $region5
    $region4: #{tpu_custom_call.1} parent=1 // pred_region
      %s18 = ssub.s32 6912, 6912
      %19 = vsyncadd [#allocation4], %s18
      %s20 = sshll.u32 [#allocation3], 4
      %s21 = int_to_ptr.vmem [resolvable:$true] %s20
      %26 = dma.hbm_to_vmem [thread:$0]  %s0, 6912, %s21, [#allocation4], 768, 768, 48
    $region5: #{tpu_custom_call.1} parent=1 // pred_fallthru
      _
    // Predicated region
    $region6: #{tpu_custom_call.1} parent=1 // pred_check
      _
    $region7: #{tpu_custom_call.1} parent=1 // pred_check_branch
      %28 = sbr.rel (0) target = $region9
    $region8: #{tpu_custom_call.1} parent=1 // pred_region
      %s30 = ssub.s32 24576, 24576
      %31 = vsyncadd [#allocation7], %s30
      %s32 = sshll.u32 [#allocation6], 4
      %s33 = int_to_ptr.vmem [resolvable:$true] %s32
      %38 = dma.hbm_to_vmem [thread:$0]  %s1, 24576, %s33, [#allocation7], 768, 768, 48
    $region9: #{tpu_custom_call.1} parent=1 // pred_fallthru
      _
    // Predicated region
    $region10: #{tpu_custom_call.1} parent=1 // pred_check
      _
    $region11: #{tpu_custom_call.1} parent=1 // pred_check_branch
      %40 = sbr.rel (0) target = $region13
    $region12: #{tpu_custom_call.1} parent=1 // pred_region
      _
    $region13: #{tpu_custom_call.1} parent=1 // pred_fallthru
      _
    // Predicated region
    $region14: #{tpu_custom_call.1} parent=1 // pred_check
      _
    $region15: #{tpu_custom_call.1} parent=1 // pred_check_branch
      %42 = sbr.rel (0) target = $region17
    $region16: #{tpu_custom_call.1} parent=1 // pred_region
      %s44 = ssub.s32 32, 32
      %45 = vsyncadd [#allocation7], %s44
      %s47 = sshll.u32 [#allocation8], 4
      %s48 = int_to_ptr.vmem [resolvable:$true] %s47
      %50 = dma.hbm_to_vmem [thread:$0]  %s3, 32, %s48, [#allocation7]
    $region17: #{tpu_custom_call.1} parent=1 // pred_fallthru
      _
    // Predicated region
    $region18: #{tpu_custom_call.1} parent=1 // pred_check
      _
    $region19: #{tpu_custom_call.1} parent=1 // pred_check_branch
      %52 = sbr.rel (0) target = $region21
    $region20: #{tpu_custom_call.1} parent=1 // pred_region
      %s54 = ssub.s32 12288, 12288
      %55 = vsyncadd [#allocation10], %s54
      %s56 = sshll.u32 [#allocation9], 4
      %s57 = int_to_ptr.vmem [resolvable:$true] %s56
      %62 = dma.hbm_to_vmem [thread:$0]  %s4, 12288, %s57, [#allocation10], 384, 384, 24
    $region21: #{tpu_custom_call.1} parent=1 // pred_fallthru
      _
    // Predicated region
    $region22: #{tpu_custom_call.1} parent=1 // pred_check
      _
    $region23: #{tpu_custom_call.1} parent=1 // pred_check_branch
      %64 = sbr.rel (0) target = $region25
    $region24: #{tpu_custom_call.1} parent=1 // pred_region
      _
    $region25: #{tpu_custom_call.1} parent=1 // pred_fallthru
      _
    // Predicated region
    $region26: #{tpu_custom_call.1} parent=1 // pred_check
      _
    $region27: #{tpu_custom_call.1} parent=1 // pred_check_branch
      %66 = sbr.rel (0) target = $region29
    $region28: #{tpu_custom_call.1} parent=1 // pred_region
      %67 = dma.done [#allocation4], 6912
    $region29: #{tpu_custom_call.1} parent=1 // pred_fallthru
      _
    // Predicated region
    $region30: #{tpu_custom_call.1} parent=1 // pred_check
      _
    $region31: #{tpu_custom_call.1} parent=1 // pred_check_branch
      %69 = sbr.rel (0) target = $region33
    $region32: #{tpu_custom_call.1} parent=1 // pred_region
      %70 = dma.done [#allocation7], 24576
    $region33: #{tpu_custom_call.1} parent=1 // pred_fallthru
      _
    // Predicated region
    $region34: #{tpu_custom_call.1} parent=1 // pred_check
      _
    $region35: #{tpu_custom_call.1} parent=1 // pred_check_branch
      %72 = sbr.rel (0) target = $region37
    $region36: #{tpu_custom_call.1} parent=1 // pred_region
      %73 = dma.done [#allocation7], 32
    $region37: #{tpu_custom_call.1} parent=1 // pred_fallthru
      _
    // Predicated region
    $region38: #{tpu_custom_call.1} parent=1 // pred_check
      _
    $region39: #{tpu_custom_call.1} parent=1 // pred_check_branch
      %75 = sbr.rel (0) target = $region41
    $region40: #{tpu_custom_call.1} parent=1 // pred_region
      %76 = dma.done [#allocation10], 12288
    $region41: #{tpu_custom_call.1} parent=1 // pred_fallthru
      _
    %v77 = vld [vmem:[%s2] sm:$0x3]
    %v79 = vlaneseq
    %v80 = vshrl.u32 %v79, 7
    %v81 = vsub.s32 0, %v80
    %v82 = vrot.slane %v77, %v81
    %v83 = vlaneseq
    %v84 = vshrl.u32 %v83, 7
    %v85 = vsub.s32 1, %v84
    %v86 = vrot.slane %v77, %v85
    %v89 = vld [vmem:[#allocation8] sm:$0x3]
    %v91 = vlaneseq
    %v92 = vshrl.u32 %v91, 7
    %v93 = vsub.s32 0, %v92
    %v94 = vrot.slane %v89, %v93
    %v95 = vlaneseq
    %v96 = vshrl.u32 %v95, 7
    %v97 = vsub.s32 1, %v96
    %v98 = vrot.slane %v89, %v97
    %v101 = vld [vmem:[#allocation3] sm:$0xff]
    %v102 = vld [vmem:[#allocation3 + $0x8] sm:$0xff]
    %v103 = vld [vmem:[#allocation3 + $0x10] sm:$0xff]
    %v104 = vld [vmem:[#allocation3 + $0x18] sm:$0xff]
    %v105 = vld [vmem:[#allocation3 + $0x20] sm:$0xff]
    %v106 = vld [vmem:[#allocation3 + $0x28] sm:$0xff]
    %v107 = vld [vmem:[#allocation6] sm:$0xff]
    %v108 = vld [vmem:[#allocation6 + $0x8] sm:$0xff]
    %v109 = vld [vmem:[#allocation6 + $0x10] sm:$0xff]
    %v110 = vld [vmem:[#allocation6 + $0x18] sm:$0xff]
    %v111 = vld [vmem:[#allocation6 + $0x20] sm:$0xff]
    %v112 = vld [vmem:[#allocation6 + $0x28] sm:$0xff]
    %v113 = vld [vmem:[#allocation6 + $0x30] sm:$0xff]
    %v114 = vld [vmem:[#allocation6 + $0x38] sm:$0xff]
    %v115 = vld [vmem:[#allocation6 + $0x40] sm:$0xff]
    %v116 = vld [vmem:[#allocation6 + $0x48] sm:$0xff]
    %v117 = vld [vmem:[#allocation6 + $0x50] sm:$0xff]
    %v118 = vld [vmem:[#allocation6 + $0x58] sm:$0xff]
    %v119 = vld [vmem:[#allocation6 + $0x60] sm:$0xff]
    %v120 = vld [vmem:[#allocation6 + $0x68] sm:$0xff]
    %v121 = vld [vmem:[#allocation6 + $0x70] sm:$0xff]
    %v122 = vld [vmem:[#allocation6 + $0x78] sm:$0xff]
    %v123 = vld [vmem:[#allocation6 + $0x80] sm:$0xff]
    %v124 = vld [vmem:[#allocation6 + $0x88] sm:$0xff]
    %v125 = vld [vmem:[#allocation6 + $0x90] sm:$0xff]
    %v126 = vld [vmem:[#allocation6 + $0x98] sm:$0xff]
    %v127 = vld [vmem:[#allocation6 + $0xa0] sm:$0xff]
    %v128 = vld [vmem:[#allocation6 + $0xa8] sm:$0xff]
    %v129 = vld [vmem:[#allocation6 + $0xb0] sm:$0xff]
    %v130 = vld [vmem:[#allocation6 + $0xb8] sm:$0xff]
    %v131 = vld [vmem:[#allocation6 + $0xc0] sm:$0xff]
    %v132 = vld [vmem:[#allocation6 + $0xc8] sm:$0xff]
    %v133 = vld [vmem:[#allocation6 + $0xd0] sm:$0xff]
    %v134 = vld [vmem:[#allocation6 + $0xd8] sm:$0xff]
    %v135 = vld [vmem:[#allocation6 + $0xe0] sm:$0xff]
    %v136 = vld [vmem:[#allocation6 + $0xe8] sm:$0xff]
    %v137 = vld [vmem:[#allocation6 + $0xf0] sm:$0xff]
    %v138 = vld [vmem:[#allocation6 + $0xf8] sm:$0xff]
    %v139 = vld [vmem:[#allocation6 + $0x100] sm:$0xff]
    %v140 = vld [vmem:[#allocation6 + $0x108] sm:$0xff]
    %v141 = vld [vmem:[#allocation6 + $0x110] sm:$0xff]
    %v142 = vld [vmem:[#allocation6 + $0x118] sm:$0xff]
    %v143 = vld [vmem:[#allocation6 + $0x120] sm:$0xff]
    %v144 = vld [vmem:[#allocation6 + $0x128] sm:$0xff]
    %v145 = vld [vmem:[#allocation6 + $0x130] sm:$0xff]
    %v146 = vld [vmem:[#allocation6 + $0x138] sm:$0xff]
    %v147 = vld [vmem:[#allocation6 + $0x140] sm:$0xff]
    %v148 = vld [vmem:[#allocation6 + $0x148] sm:$0xff]
    %v149 = vld [vmem:[#allocation6 + $0x150] sm:$0xff]
    %v150 = vld [vmem:[#allocation6 + $0x158] sm:$0xff]
    %v151 = vld [vmem:[#allocation6 + $0x160] sm:$0xff]
    %v152 = vld [vmem:[#allocation6 + $0x168] sm:$0xff]
    %v153 = vld [vmem:[#allocation6 + $0x170] sm:$0xff]
    %v154 = vld [vmem:[#allocation6 + $0x178] sm:$0xff]
    %v155 = vld [vmem:[#allocation6 + $0x180] sm:$0xff]
    %v156 = vld [vmem:[#allocation6 + $0x188] sm:$0xff]
    %v157 = vld [vmem:[#allocation6 + $0x190] sm:$0xff]
    %v158 = vld [vmem:[#allocation6 + $0x198] sm:$0xff]
    %v159 = vld [vmem:[#allocation6 + $0x1a0] sm:$0xff]
    %v160 = vld [vmem:[#allocation6 + $0x1a8] sm:$0xff]
    %v161 = vld [vmem:[#allocation6 + $0x1b0] sm:$0xff]
    %v162 = vld [vmem:[#allocation6 + $0x1b8] sm:$0xff]
    %v163 = vld [vmem:[#allocation6 + $0x1c0] sm:$0xff]
    %v164 = vld [vmem:[#allocation6 + $0x1c8] sm:$0xff]
    %v165 = vld [vmem:[#allocation6 + $0x1d0] sm:$0xff]
    %v166 = vld [vmem:[#allocation6 + $0x1d8] sm:$0xff]
    %v167 = vld [vmem:[#allocation6 + $0x1e0] sm:$0xff]
    %v168 = vld [vmem:[#allocation6 + $0x1e8] sm:$0xff]
    %v169 = vld [vmem:[#allocation6 + $0x1f0] sm:$0xff]
    %v170 = vld [vmem:[#allocation6 + $0x1f8] sm:$0xff]
    %v171 = vld [vmem:[#allocation6 + $0x200] sm:$0xff]
    %v172 = vld [vmem:[#allocation6 + $0x208] sm:$0xff]
    %v173 = vld [vmem:[#allocation6 + $0x210] sm:$0xff]
    %v174 = vld [vmem:[#allocation6 + $0x218] sm:$0xff]
    %v175 = vld [vmem:[#allocation6 + $0x220] sm:$0xff]
    %v176 = vld [vmem:[#allocation6 + $0x228] sm:$0xff]
    %v177 = vld [vmem:[#allocation6 + $0x230] sm:$0xff]
    %v178 = vld [vmem:[#allocation6 + $0x238] sm:$0xff]
    %v179 = vld [vmem:[#allocation6 + $0x240] sm:$0xff]
    %v180 = vld [vmem:[#allocation6 + $0x248] sm:$0xff]
    %v181 = vld [vmem:[#allocation6 + $0x250] sm:$0xff]
    %v182 = vld [vmem:[#allocation6 + $0x258] sm:$0xff]
    %v183 = vld [vmem:[#allocation6 + $0x260] sm:$0xff]
    %v184 = vld [vmem:[#allocation6 + $0x268] sm:$0xff]
    %v185 = vld [vmem:[#allocation6 + $0x270] sm:$0xff]
    %v186 = vld [vmem:[#allocation6 + $0x278] sm:$0xff]
    %v187 = vld [vmem:[#allocation6 + $0x280] sm:$0xff]
    %v188 = vld [vmem:[#allocation6 + $0x288] sm:$0xff]
    %v189 = vld [vmem:[#allocation6 + $0x290] sm:$0xff]
    %v190 = vld [vmem:[#allocation6 + $0x298] sm:$0xff]
    %v191 = vld [vmem:[#allocation6 + $0x2a0] sm:$0xff]
    %v192 = vld [vmem:[#allocation6 + $0x2a8] sm:$0xff]
    %v193 = vld [vmem:[#allocation6 + $0x2b0] sm:$0xff]
    %v194 = vld [vmem:[#allocation6 + $0x2b8] sm:$0xff]
    %v195 = vld [vmem:[#allocation6 + $0x2c0] sm:$0xff]
    %v196 = vld [vmem:[#allocation6 + $0x2c8] sm:$0xff]
    %v197 = vld [vmem:[#allocation6 + $0x2d0] sm:$0xff]
    %v198 = vld [vmem:[#allocation6 + $0x2d8] sm:$0xff]
    %v199 = vld [vmem:[#allocation6 + $0x2e0] sm:$0xff]
    %v200 = vld [vmem:[#allocation6 + $0x2e8] sm:$0xff]
    %v201 = vld [vmem:[#allocation6 + $0x2f0] sm:$0xff]
    %v202 = vld [vmem:[#allocation6 + $0x2f8] sm:$0xff]
    %v203 = vld [vmem:[#allocation6 + $0x300] sm:$0xff]
    %v204 = vld [vmem:[#allocation6 + $0x308] sm:$0xff]
    %v205 = vld [vmem:[#allocation6 + $0x310] sm:$0xff]
    %v206 = vld [vmem:[#allocation6 + $0x318] sm:$0xff]
    %v207 = vld [vmem:[#allocation6 + $0x320] sm:$0xff]
    %v208 = vld [vmem:[#allocation6 + $0x328] sm:$0xff]
    %v209 = vld [vmem:[#allocation6 + $0x330] sm:$0xff]
    %v210 = vld [vmem:[#allocation6 + $0x338] sm:$0xff]
    %v211 = vld [vmem:[#allocation6 + $0x340] sm:$0xff]
    %v212 = vld [vmem:[#allocation6 + $0x348] sm:$0xff]
    %v213 = vld [vmem:[#allocation6 + $0x350] sm:$0xff]
    %v214 = vld [vmem:[#allocation6 + $0x358] sm:$0xff]
    %v215 = vld [vmem:[#allocation6 + $0x360] sm:$0xff]
    %v216 = vld [vmem:[#allocation6 + $0x368] sm:$0xff]
    %v217 = vld [vmem:[#allocation6 + $0x370] sm:$0xff]
    %v218 = vld [vmem:[#allocation6 + $0x378] sm:$0xff]
    %v219 = vld [vmem:[#allocation6 + $0x380] sm:$0xff]
    %v220 = vld [vmem:[#allocation6 + $0x388] sm:$0xff]
    %v221 = vld [vmem:[#allocation6 + $0x390] sm:$0xff]
    %v222 = vld [vmem:[#allocation6 + $0x398] sm:$0xff]
    %v223 = vld [vmem:[#allocation6 + $0x3a0] sm:$0xff]
    %v224 = vld [vmem:[#allocation6 + $0x3a8] sm:$0xff]
    %v225 = vld [vmem:[#allocation6 + $0x3b0] sm:$0xff]
    %v226 = vld [vmem:[#allocation6 + $0x3b8] sm:$0xff]
    %v227 = vld [vmem:[#allocation6 + $0x3c0] sm:$0xff]
    %v228 = vld [vmem:[#allocation6 + $0x3c8] sm:$0xff]
    %v229 = vld [vmem:[#allocation6 + $0x3d0] sm:$0xff]
    %v230 = vld [vmem:[#allocation6 + $0x3d8] sm:$0xff]
    %v231 = vld [vmem:[#allocation6 + $0x3e0] sm:$0xff]
    %v232 = vld [vmem:[#allocation6 + $0x3e8] sm:$0xff]
    %v233 = vld [vmem:[#allocation6 + $0x3f0] sm:$0xff]
    %v234 = vld [vmem:[#allocation6 + $0x3f8] sm:$0xff]
    %v235 = vld [vmem:[#allocation6 + $0x400] sm:$0xff]
    %v236 = vld [vmem:[#allocation6 + $0x408] sm:$0xff]
    %v237 = vld [vmem:[#allocation6 + $0x410] sm:$0xff]
    %v238 = vld [vmem:[#allocation6 + $0x418] sm:$0xff]
    %v239 = vld [vmem:[#allocation6 + $0x420] sm:$0xff]
    %v240 = vld [vmem:[#allocation6 + $0x428] sm:$0xff]
    %v241 = vld [vmem:[#allocation6 + $0x430] sm:$0xff]
    %v242 = vld [vmem:[#allocation6 + $0x438] sm:$0xff]
    %v243 = vld [vmem:[#allocation6 + $0x440] sm:$0xff]
    %v244 = vld [vmem:[#allocation6 + $0x448] sm:$0xff]
    %v245 = vld [vmem:[#allocation6 + $0x450] sm:$0xff]
    %v246 = vld [vmem:[#allocation6 + $0x458] sm:$0xff]
    %v247 = vld [vmem:[#allocation6 + $0x460] sm:$0xff]
    %v248 = vld [vmem:[#allocation6 + $0x468] sm:$0xff]
    %v249 = vld [vmem:[#allocation6 + $0x470] sm:$0xff]
    %v250 = vld [vmem:[#allocation6 + $0x478] sm:$0xff]
    %v251 = vld [vmem:[#allocation6 + $0x480] sm:$0xff]
    %v252 = vld [vmem:[#allocation6 + $0x488] sm:$0xff]
    %v253 = vld [vmem:[#allocation6 + $0x490] sm:$0xff]
    %v254 = vld [vmem:[#allocation6 + $0x498] sm:$0xff]
    %v255 = vld [vmem:[#allocation6 + $0x4a0] sm:$0xff]
    %v256 = vld [vmem:[#allocation6 + $0x4a8] sm:$0xff]
    %v257 = vld [vmem:[#allocation6 + $0x4b0] sm:$0xff]
    %v258 = vld [vmem:[#allocation6 + $0x4b8] sm:$0xff]
    %v259 = vld [vmem:[#allocation6 + $0x4c0] sm:$0xff]
    %v260 = vld [vmem:[#allocation6 + $0x4c8] sm:$0xff]
    %v261 = vld [vmem:[#allocation6 + $0x4d0] sm:$0xff]
    %v262 = vld [vmem:[#allocation6 + $0x4d8] sm:$0xff]
    %v263 = vld [vmem:[#allocation6 + $0x4e0] sm:$0xff]
    %v264 = vld [vmem:[#allocation6 + $0x4e8] sm:$0xff]
    %v265 = vld [vmem:[#allocation6 + $0x4f0] sm:$0xff]
    %v266 = vld [vmem:[#allocation6 + $0x4f8] sm:$0xff]
    %v267 = vld [vmem:[#allocation6 + $0x500] sm:$0xff]
    %v268 = vld [vmem:[#allocation6 + $0x508] sm:$0xff]
    %v269 = vld [vmem:[#allocation6 + $0x510] sm:$0xff]
    %v270 = vld [vmem:[#allocation6 + $0x518] sm:$0xff]
    %v271 = vld [vmem:[#allocation6 + $0x520] sm:$0xff]
    %v272 = vld [vmem:[#allocation6 + $0x528] sm:$0xff]
    %v273 = vld [vmem:[#allocation6 + $0x530] sm:$0xff]
    %v274 = vld [vmem:[#allocation6 + $0x538] sm:$0xff]
    %v275 = vld [vmem:[#allocation6 + $0x540] sm:$0xff]
    %v276 = vld [vmem:[#allocation6 + $0x548] sm:$0xff]
    %v277 = vld [vmem:[#allocation6 + $0x550] sm:$0xff]
    %v278 = vld [vmem:[#allocation6 + $0x558] sm:$0xff]
    %v279 = vld [vmem:[#allocation6 + $0x560] sm:$0xff]
    %v280 = vld [vmem:[#allocation6 + $0x568] sm:$0xff]
    %v281 = vld [vmem:[#allocation6 + $0x570] sm:$0xff]
    %v282 = vld [vmem:[#allocation6 + $0x578] sm:$0xff]
    %v283 = vld [vmem:[#allocation6 + $0x580] sm:$0xff]
    %v284 = vld [vmem:[#allocation6 + $0x588] sm:$0xff]
    %v285 = vld [vmem:[#allocation6 + $0x590] sm:$0xff]
    %v286 = vld [vmem:[#allocation6 + $0x598] sm:$0xff]
    %v287 = vld [vmem:[#allocation6 + $0x5a0] sm:$0xff]
    %v288 = vld [vmem:[#allocation6 + $0x5a8] sm:$0xff]
    %v289 = vld [vmem:[#allocation6 + $0x5b0] sm:$0xff]
    %v290 = vld [vmem:[#allocation6 + $0x5b8] sm:$0xff]
    %v291 = vld [vmem:[#allocation6 + $0x5c0] sm:$0xff]
    %v292 = vld [vmem:[#allocation6 + $0x5c8] sm:$0xff]
    %v293 = vld [vmem:[#allocation6 + $0x5d0] sm:$0xff]
    %v294 = vld [vmem:[#allocation6 + $0x5d8] sm:$0xff]
    %v295 = vld [vmem:[#allocation6 + $0x5e0] sm:$0xff]
    %v296 = vld [vmem:[#allocation6 + $0x5e8] sm:$0xff]
    %v297 = vld [vmem:[#allocation6 + $0x5f0] sm:$0xff]
    %v298 = vld [vmem:[#allocation6 + $0x5f8] sm:$0xff]
    %299 = vmatprep.subr.mxu0 %v198
    %300 = vmatpush1.msra.mxu0 %v197
    %301 = vmatprep.subr.mxu0 %v192
    %302 = vmatpush1.msra.mxu0 %v191
    %303 = vmatprep.subr.mxu0 %v186
    %304 = vmatpush1.msra.mxu0 %v185
    %305 = vmatprep.subr.mxu0 %v180
    %306 = vmatpush1.msra.mxu0 %v179
    %307 = vmatprep.subr.mxu0 %v174
    %308 = vmatpush1.msra.mxu0 %v173
    %309 = vmatprep.subr.mxu0 %v168
    %310 = vmatpush1.msra.mxu0 %v167
    %311 = vmatprep.subr.mxu0 %v162
    %312 = vmatpush1.msra.mxu0 %v161
    %313 = vmatprep.subr.mxu0 %v156
    %314 = vmatpush1.msra.mxu0 %v155
    %315 = vmatprep.subr.mxu0 %v150
    %316 = vmatpush1.msra.mxu0 %v149
    %317 = vmatprep.subr.mxu0 %v144
    %318 = vmatpush1.msra.mxu0 %v143
    %319 = vmatprep.subr.mxu0 %v138
    %320 = vmatpush1.msra.mxu0 %v137
    %321 = vmatprep.subr.mxu0 %v132
    %322 = vmatpush1.msra.mxu0 %v131
    %323 = vmatprep.subr.mxu0 %v126
    %324 = vmatpush1.msra.mxu0 %v125
    %325 = vmatprep.subr.mxu0 %v120
    %326 = vmatpush1.msra.mxu0 %v119
    %327 = vmatprep.subr.mxu0 %v114
    %328 = vmatpush1.msra.mxu0 %v113
    %329 = vmatprep.subr.mxu0 %v108
    %330 = vmatpush1.msra.mxu0 %v107
    %331 = vmatprep.subr.mxu0 %v294
    %332 = vmatpush2.msra.mxu0 %v293
    %333 = vmatprep.subr.mxu0 %v288
    %334 = vmatpush2.msra.mxu0 %v287
    %335 = vmatprep.subr.mxu0 %v282
    %336 = vmatpush2.msra.mxu0 %v281
    %337 = vmatprep.subr.mxu0 %v276
    %338 = vmatpush2.msra.mxu0 %v275
    %339 = vmatprep.subr.mxu0 %v270
    %340 = vmatpush2.msra.mxu0 %v269
    %341 = vmatprep.subr.mxu0 %v264
    %342 = vmatpush2.msra.mxu0 %v263
    %343 = vmatprep.subr.mxu0 %v258
    %344 = vmatpush2.msra.mxu0 %v257
    %345 = vmatprep.subr.mxu0 %v252
    %346 = vmatpush2.msra.mxu0 %v251
    %347 = vmatprep.subr.mxu0 %v246
    %348 = vmatpush2.msra.mxu0 %v245
    %349 = vmatprep.subr.mxu0 %v240
    %350 = vmatpush2.msra.mxu0 %v239
    %351 = vmatprep.subr.mxu0 %v234
    %352 = vmatpush2.msra.mxu0 %v233
    %353 = vmatprep.subr.mxu0 %v228
    %354 = vmatpush2.msra.mxu0 %v227
    %355 = vmatprep.subr.mxu0 %v222
    %356 = vmatpush2.msra.mxu0 %v221
    %357 = vmatprep.subr.mxu0 %v216
    %358 = vmatpush2.msra.mxu0 %v215
    %359 = vmatprep.subr.mxu0 %v210
    %360 = vmatpush2.msra.mxu0 %v209
    %361 = vmatprep.subr.mxu0 %v204
    %362 = vmatpush2.msra.mxu0 %v203
    %363 = vmatprep.mubr.f32.mxu0 %v98
    %364 = vmatmul.mubr.f32.gmra.mxu0 %v94
    %v365 = vpop.f32.mrf.mxu0
    %v366 = vadd.f32 0.0, %v365
    %v367 = vpop.f32.mrf.mxu0
    %v368 = vadd.f32 0.0, %v367
    %369 = vdwg.mxu0
    %370 = vmatprep.subr.mxu0 %v200
    %371 = vmatpush1.msra.mxu0 %v199
    %372 = vmatprep.subr.mxu0 %v194
    %373 = vmatpush1.msra.mxu0 %v193
    %374 = vmatprep.subr.mxu0 %v188
    %375 = vmatpush1.msra.mxu0 %v187
    %376 = vmatprep.subr.mxu0 %v182
    %377 = vmatpush1.msra.mxu0 %v181
    %378 = vmatprep.subr.mxu0 %v176
    %379 = vmatpush1.msra.mxu0 %v175
    %380 = vmatprep.subr.mxu0 %v170
    %381 = vmatpush1.msra.mxu0 %v169
    %382 = vmatprep.subr.mxu0 %v164
    %383 = vmatpush1.msra.mxu0 %v163
    %384 = vmatprep.subr.mxu0 %v158
    %385 = vmatpush1.msra.mxu0 %v157
    %386 = vmatprep.subr.mxu0 %v152
    %387 = vmatpush1.msra.mxu0 %v151
    %388 = vmatprep.subr.mxu0 %v146
    %389 = vmatpush1.msra.mxu0 %v145
    %390 = vmatprep.subr.mxu0 %v140
    %391 = vmatpush1.msra.mxu0 %v139
    %392 = vmatprep.subr.mxu0 %v134
    %393 = vmatpush1.msra.mxu0 %v133
    %394 = vmatprep.subr.mxu0 %v128
    %395 = vmatpush1.msra.mxu0 %v127
    %396 = vmatprep.subr.mxu0 %v122
    %397 = vmatpush1.msra.mxu0 %v121
    %398 = vmatprep.subr.mxu0 %v116
    %399 = vmatpush1.msra.mxu0 %v115
    %400 = vmatprep.subr.mxu0 %v110
    %401 = vmatpush1.msra.mxu0 %v109
    %402 = vmatprep.subr.mxu0 %v296
    %403 = vmatpush2.msra.mxu0 %v295
    %404 = vmatprep.subr.mxu0 %v290
    %405 = vmatpush2.msra.mxu0 %v289
    %406 = vmatprep.subr.mxu0 %v284
    %407 = vmatpush2.msra.mxu0 %v283
    %408 = vmatprep.subr.mxu0 %v278
    %409 = vmatpush2.msra.mxu0 %v277
    %410 = vmatprep.subr.mxu0 %v272
    %411 = vmatpush2.msra.mxu0 %v271
    %412 = vmatprep.subr.mxu0 %v266
    %413 = vmatpush2.msra.mxu0 %v265
    %414 = vmatprep.subr.mxu0 %v260
    %415 = vmatpush2.msra.mxu0 %v259
    %416 = vmatprep.subr.mxu0 %v254
    %417 = vmatpush2.msra.mxu0 %v253
    %418 = vmatprep.subr.mxu0 %v248
    %419 = vmatpush2.msra.mxu0 %v247
    %420 = vmatprep.subr.mxu0 %v242
    %421 = vmatpush2.msra.mxu0 %v241
    %422 = vmatprep.subr.mxu0 %v236
    %423 = vmatpush2.msra.mxu0 %v235
    %424 = vmatprep.subr.mxu0 %v230
    %425 = vmatpush2.msra.mxu0 %v229
    %426 = vmatprep.subr.mxu0 %v224
    %427 = vmatpush2.msra.mxu0 %v223
    %428 = vmatprep.subr.mxu0 %v218
    %429 = vmatpush2.msra.mxu0 %v217
    %430 = vmatprep.subr.mxu0 %v212
    %431 = vmatpush2.msra.mxu0 %v211
    %432 = vmatprep.subr.mxu0 %v206
    %433 = vmatpush2.msra.mxu0 %v205
    %434 = vmatprep.mubr.f32.mxu0 %v98
    %435 = vmatmul.mubr.f32.gmra.mxu0 %v94
    %v436 = vpop.f32.mrf.mxu0
    %v437 = vadd.f32 0.0, %v436
    %v438 = vpop.f32.mrf.mxu0
    %v439 = vadd.f32 0.0, %v438
    %440 = vdwg.mxu0
    %441 = vmatprep.subr.mxu0 %v202
    %442 = vmatpush1.msra.mxu0 %v201
    %443 = vmatprep.subr.mxu0 %v196
    %444 = vmatpush1.msra.mxu0 %v195
    %445 = vmatprep.subr.mxu0 %v190
    %446 = vmatpush1.msra.mxu0 %v189
    %447 = vmatprep.subr.mxu0 %v184
    %448 = vmatpush1.msra.mxu0 %v183
    %449 = vmatprep.subr.mxu0 %v178
    %450 = vmatpush1.msra.mxu0 %v177
    %451 = vmatprep.subr.mxu0 %v172
    %452 = vmatpush1.msra.mxu0 %v171
    %453 = vmatprep.subr.mxu0 %v166
    %454 = vmatpush1.msra.mxu0 %v165
    %455 = vmatprep.subr.mxu0 %v160
    %456 = vmatpush1.msra.mxu0 %v159
    %457 = vmatprep.subr.mxu0 %v154
    %458 = vmatpush1.msra.mxu0 %v153
    %459 = vmatprep.subr.mxu0 %v148
    %460 = vmatpush1.msra.mxu0 %v147
    %461 = vmatprep.subr.mxu0 %v142
    %462 = vmatpush1.msra.mxu0 %v141
    %463 = vmatprep.subr.mxu0 %v136
    %464 = vmatpush1.msra.mxu0 %v135
    %465 = vmatprep.subr.mxu0 %v130
    %466 = vmatpush1.msra.mxu0 %v129
    %467 = vmatprep.subr.mxu0 %v124
    %468 = vmatpush1.msra.mxu0 %v123
    %469 = vmatprep.subr.mxu0 %v118
    %470 = vmatpush1.msra.mxu0 %v117
    %471 = vmatprep.subr.mxu0 %v112
    %472 = vmatpush1.msra.mxu0 %v111
    %473 = vmatprep.subr.mxu0 %v298
    %474 = vmatpush2.msra.mxu0 %v297
    %475 = vmatprep.subr.mxu0 %v292
    %476 = vmatpush2.msra.mxu0 %v291
    %477 = vmatprep.subr.mxu0 %v286
    %478 = vmatpush2.msra.mxu0 %v285
    %479 = vmatprep.subr.mxu0 %v280
    %480 = vmatpush2.msra.mxu0 %v279
    %481 = vmatprep.subr.mxu0 %v274
    %482 = vmatpush2.msra.mxu0 %v273
    %483 = vmatprep.subr.mxu0 %v268
    %484 = vmatpush2.msra.mxu0 %v267
    %485 = vmatprep.subr.mxu0 %v262
    %486 = vmatpush2.msra.mxu0 %v261
    %487 = vmatprep.subr.mxu0 %v256
    %488 = vmatpush2.msra.mxu0 %v255
    %489 = vmatprep.subr.mxu0 %v250
    %490 = vmatpush2.msra.mxu0 %v249
    %491 = vmatprep.subr.mxu0 %v244
    %492 = vmatpush2.msra.mxu0 %v243
    %493 = vmatprep.subr.mxu0 %v238
    %494 = vmatpush2.msra.mxu0 %v237
    %495 = vmatprep.subr.mxu0 %v232
    %496 = vmatpush2.msra.mxu0 %v231
    %497 = vmatprep.subr.mxu0 %v226
    %498 = vmatpush2.msra.mxu0 %v225
    %499 = vmatprep.subr.mxu0 %v220
    %500 = vmatpush2.msra.mxu0 %v219
    %501 = vmatprep.subr.mxu0 %v214
    %502 = vmatpush2.msra.mxu0 %v213
    %503 = vmatprep.subr.mxu0 %v208
    %504 = vmatpush2.msra.mxu0 %v207
    %505 = vmatprep.mubr.f32.mxu0 %v98
    %506 = vmatmul.mubr.f32.gmra.mxu0 %v94
    %v507 = vpop.f32.mrf.mxu0
    %v508 = vadd.f32 0.0, %v507
    %v509 = vpop.f32.mrf.mxu0
    %v510 = vadd.f32 0.0, %v509
    %511 = vdwg.mxu0
    %v512 = vadd.f32 %v101, %v366
    %v513 = vadd.f32 %v102, %v368
    %v514 = vxor.u32 %v512, 2147483648
    %v515 = vxor.u32 %v513, 2147483648
    %v516 = vmul.f32 %v514, 1.442695
    %v517 = vpow.pop %v516
    %v518 = vmul.f32 %v515, 1.442695
    %v519 = vpow.pop %v518
    %v520 = vadd.f32 %v517, 1.0
    %v521 = vadd.f32 %v519, 1.0
    %v522 = vrcp.pop %v520
    %v523 = vmul.f32 1.0, %v522
    %v524 = vrcp.pop %v521
    %v525 = vmul.f32 1.0, %v524
    %v526 = vadd.f32 %v103, %v437
    %v527 = vadd.f32 %v104, %v439
    %v528 = vxor.u32 %v526, 2147483648
    %v529 = vxor.u32 %v527, 2147483648
    %v530 = vmul.f32 %v528, 1.442695
    %v531 = vpow.pop %v530
    %v532 = vmul.f32 %v529, 1.442695
    %v533 = vpow.pop %v532
    %v534 = vadd.f32 %v531, 1.0
    %v535 = vadd.f32 %v533, 1.0
    %v536 = vrcp.pop %v534
    %v537 = vmul.f32 1.0, %v536
    %v538 = vrcp.pop %v535
    %v539 = vmul.f32 1.0, %v538
    %v540 = vadd.f32 %v508, %v82
    %v541 = vadd.f32 %v510, %v86
    %v542 = vmul.f32 %v523, %v540
    %v543 = vmul.f32 %v525, %v541
    %v544 = vadd.f32 %v105, %v542
    %v545 = vadd.f32 %v106, %v543
    %v546 = vtanh.pop %v544
    %v547 = vtanh.pop %v545
    %v548 = vsub.f32 %v94, %v546
    %v549 = vsub.f32 %v98, %v547
    %v550 = vmul.f32 %v537, %v548
    %v551 = vmul.f32 %v539, %v549
    %v552 = vadd.f32 %v546, %v550
    %v553 = vadd.f32 %v547, %v551
    %s554 = smul.u32 0, 2
    %s555 = smul.addr %s554, 8
    %s556 = scalar_lea.vmem [#allocation2], %s555
    %557 = vst [vmem:[%s556] sm:$0xff] %v552
    %558 = vst [vmem:[%s556 + $0x8] sm:$0xff] %v553
    %s559 = scalar_lea.vmem [#allocation3], 48
    %v560 = vld [vmem:[%s559] sm:$0xff]
    %v561 = vld [vmem:[%s559 + $0x8] sm:$0xff]
    %v562 = vld [vmem:[%s559 + $0x10] sm:$0xff]
    %v563 = vld [vmem:[%s559 + $0x18] sm:$0xff]
    %v564 = vld [vmem:[%s559 + $0x20] sm:$0xff]
    %v565 = vld [vmem:[%s559 + $0x28] sm:$0xff]
    %v566 = vld [vmem:[#allocation6] sm:$0xff]
    %v567 = vld [vmem:[#allocation6 + $0x8] sm:$0xff]
    %v568 = vld [vmem:[#allocation6 + $0x10] sm:$0xff]
    %v569 = vld [vmem:[#allocation6 + $0x18] sm:$0xff]
    %v570 = vld [vmem:[#allocation6 + $0x20] sm:$0xff]
    %v571 = vld [vmem:[#allocation6 + $0x28] sm:$0xff]
    %v572 = vld [vmem:[#allocation6 + $0x30] sm:$0xff]
    %v573 = vld [vmem:[#allocation6 + $0x38] sm:$0xff]
    %v574 = vld [vmem:[#allocation6 + $0x40] sm:$0xff]
    %v575 = vld [vmem:[#allocation6 + $0x48] sm:$0xff]
    %v576 = vld [vmem:[#allocation6 + $0x50] sm:$0xff]
    %v577 = vld [vmem:[#allocation6 + $0x58] sm:$0xff]
    %v578 = vld [vmem:[#allocation6 + $0x60] sm:$0xff]
    %v579 = vld [vmem:[#allocation6 + $0x68] sm:$0xff]
    %v580 = vld [vmem:[#allocation6 + $0x70] sm:$0xff]
    %v581 = vld [vmem:[#allocation6 + $0x78] sm:$0xff]
    %v582 = vld [vmem:[#allocation6 + $0x80] sm:$0xff]
    %v583 = vld [vmem:[#allocation6 + $0x88] sm:$0xff]
    %v584 = vld [vmem:[#allocation6 + $0x90] sm:$0xff]
    %v585 = vld [vmem:[#allocation6 + $0x98] sm:$0xff]
    %v586 = vld [vmem:[#allocation6 + $0xa0] sm:$0xff]
    %v587 = vld [vmem:[#allocation6 + $0xa8] sm:$0xff]
    %v588 = vld [vmem:[#allocation6 + $0xb0] sm:$0xff]
    %v589 = vld [vmem:[#allocation6 + $0xb8] sm:$0xff]
    %v590 = vld [vmem:[#allocation6 + $0xc0] sm:$0xff]
    %v591 = vld [vmem:[#allocation6 + $0xc8] sm:$0xff]
    %v592 = vld [vmem:[#allocation6 + $0xd0] sm:$0xff]
    %v593 = vld [vmem:[#allocation6 + $0xd8] sm:$0xff]
    %v594 = vld [vmem:[#allocation6 + $0xe0] sm:$0xff]
    %v595 = vld [vmem:[#allocation6 + $0xe8] sm:$0xff]
    %v596 = vld [vmem:[#allocation6 + $0xf0] sm:$0xff]
    %v597 = vld [vmem:[#allocation6 + $0xf8] sm:$0xff]
    %v598 = vld [vmem:[#allocation6 + $0x100] sm:$0xff]
    %v599 = vld [vmem:[#allocation6 + $0x108] sm:$0xff]
    %v600 = vld [vmem:[#allocation6 + $0x110] sm:$0xff]
    %v601 = vld [vmem:[#allocation6 + $0x118] sm:$0xff]
    %v602 = vld [vmem:[#allocation6 + $0x120] sm:$0xff]
    %v603 = vld [vmem:[#allocation6 + $0x128] sm:$0xff]
    %v604 = vld [vmem:[#allocation6 + $0x130] sm:$0xff]
    %v605 = vld [vmem:[#allocation6 + $0x138] sm:$0xff]
    %v606 = vld [vmem:[#allocation6 + $0x140] sm:$0xff]
    %v607 = vld [vmem:[#allocation6 + $0x148] sm:$0xff]
    %v608 = vld [vmem:[#allocation6 + $0x150] sm:$0xff]
    %v609 = vld [vmem:[#allocation6 + $0x158] sm:$0xff]
    %v610 = vld [vmem:[#allocation6 + $0x160] sm:$0xff]
    %v611 = vld [vmem:[#allocation6 + $0x168] sm:$0xff]
    %v612 = vld [vmem:[#allocation6 + $0x170] sm:$0xff]
    %v613 = vld [vmem:[#allocation6 + $0x178] sm:$0xff]
    %v614 = vld [vmem:[#allocation6 + $0x180] sm:$0xff]
    %v615 = vld [vmem:[#allocation6 + $0x188] sm:$0xff]
    %v616 = vld [vmem:[#allocation6 + $0x190] sm:$0xff]
    %v617 = vld [vmem:[#allocation6 + $0x198] sm:$0xff]
    %v618 = vld [vmem:[#allocation6 + $0x1a0] sm:$0xff]
    %v619 = vld [vmem:[#allocation6 + $0x1a8] sm:$0xff]
    %v620 = vld [vmem:[#allocation6 + $0x1b0] sm:$0xff]
    %v621 = vld [vmem:[#allocation6 + $0x1b8] sm:$0xff]
    %v622 = vld [vmem:[#allocation6 + $0x1c0] sm:$0xff]
    %v623 = vld [vmem:[#allocation6 + $0x1c8] sm:$0xff]
    %v624 = vld [vmem:[#allocation6 + $0x1d0] sm:$0xff]
    %v625 = vld [vmem:[#allocation6 + $0x1d8] sm:$0xff]
    %v626 = vld [vmem:[#allocation6 + $0x1e0] sm:$0xff]
    %v627 = vld [vmem:[#allocation6 + $0x1e8] sm:$0xff]
    %v628 = vld [vmem:[#allocation6 + $0x1f0] sm:$0xff]
    %v629 = vld [vmem:[#allocation6 + $0x1f8] sm:$0xff]
    %v630 = vld [vmem:[#allocation6 + $0x200] sm:$0xff]
    %v631 = vld [vmem:[#allocation6 + $0x208] sm:$0xff]
    %v632 = vld [vmem:[#allocation6 + $0x210] sm:$0xff]
    %v633 = vld [vmem:[#allocation6 + $0x218] sm:$0xff]
    %v634 = vld [vmem:[#allocation6 + $0x220] sm:$0xff]
    %v635 = vld [vmem:[#allocation6 + $0x228] sm:$0xff]
    %v636 = vld [vmem:[#allocation6 + $0x230] sm:$0xff]
    %v637 = vld [vmem:[#allocation6 + $0x238] sm:$0xff]
    %v638 = vld [vmem:[#allocation6 + $0x240] sm:$0xff]
    %v639 = vld [vmem:[#allocation6 + $0x248] sm:$0xff]
    %v640 = vld [vmem:[#allocation6 + $0x250] sm:$0xff]
    %v641 = vld [vmem:[#allocation6 + $0x258] sm:$0xff]
    %v642 = vld [vmem:[#allocation6 + $0x260] sm:$0xff]
    %v643 = vld [vmem:[#allocation6 + $0x268] sm:$0xff]
    %v644 = vld [vmem:[#allocation6 + $0x270] sm:$0xff]
    %v645 = vld [vmem:[#allocation6 + $0x278] sm:$0xff]
    %v646 = vld [vmem:[#allocation6 + $0x280] sm:$0xff]
    %v647 = vld [vmem:[#allocation6 + $0x288] sm:$0xff]
    %v648 = vld [vmem:[#allocation6 + $0x290] sm:$0xff]
    %v649 = vld [vmem:[#allocation6 + $0x298] sm:$0xff]
    %v650 = vld [vmem:[#allocation6 + $0x2a0] sm:$0xff]
    %v651 = vld [vmem:[#allocation6 + $0x2a8] sm:$0xff]
    %v652 = vld [vmem:[#allocation6 + $0x2b0] sm:$0xff]
    %v653 = vld [vmem:[#allocation6 + $0x2b8] sm:$0xff]
    %v654 = vld [vmem:[#allocation6 + $0x2c0] sm:$0xff]
    %v655 = vld [vmem:[#allocation6 + $0x2c8] sm:$0xff]
    %v656 = vld [vmem:[#allocation6 + $0x2d0] sm:$0xff]
    %v657 = vld [vmem:[#allocation6 + $0x2d8] sm:$0xff]
    %v658 = vld [vmem:[#allocation6 + $0x2e0] sm:$0xff]
    %v659 = vld [vmem:[#allocation6 + $0x2e8] sm:$0xff]
    %v660 = vld [vmem:[#allocation6 + $0x2f0] sm:$0xff]
    %v661 = vld [vmem:[#allocation6 + $0x2f8] sm:$0xff]
    %v662 = vld [vmem:[#allocation6 + $0x300] sm:$0xff]
    %v663 = vld [vmem:[#allocation6 + $0x308] sm:$0xff]
    %v664 = vld [vmem:[#allocation6 + $0x310] sm:$0xff]
    %v665 = vld [vmem:[#allocation6 + $0x318] sm:$0xff]
    %v666 = vld [vmem:[#allocation6 + $0x320] sm:$0xff]
    %v667 = vld [vmem:[#allocation6 + $0x328] sm:$0xff]
    %v668 = vld [vmem:[#allocation6 + $0x330] sm:$0xff]
    %v669 = vld [vmem:[#allocation6 + $0x338] sm:$0xff]
    %v670 = vld [vmem:[#allocation6 + $0x340] sm:$0xff]
    %v671 = vld [vmem:[#allocation6 + $0x348] sm:$0xff]
    %v672 = vld [vmem:[#allocation6 + $0x350] sm:$0xff]
    %v673 = vld [vmem:[#allocation6 + $0x358] sm:$0xff]
    %v674 = vld [vmem:[#allocation6 + $0x360] sm:$0xff]
    %v675 = vld [vmem:[#allocation6 + $0x368] sm:$0xff]
    %v676 = vld [vmem:[#allocation6 + $0x370] sm:$0xff]
    %v677 = vld [vmem:[#allocation6 + $0x378] sm:$0xff]
    %v678 = vld [vmem:[#allocation6 + $0x380] sm:$0xff]
    %v679 = vld [vmem:[#allocation6 + $0x388] sm:$0xff]
    %v680 = vld [vmem:[#allocation6 + $0x390] sm:$0xff]
    %v681 = vld [vmem:[#allocation6 + $0x398] sm:$0xff]
    %v682 = vld [vmem:[#allocation6 + $0x3a0] sm:$0xff]
    %v683 = vld [vmem:[#allocation6 + $0x3a8] sm:$0xff]
    %v684 = vld [vmem:[#allocation6 + $0x3b0] sm:$0xff]
    %v685 = vld [vmem:[#allocation6 + $0x3b8] sm:$0xff]
    %v686 = vld [vmem:[#allocation6 + $0x3c0] sm:$0xff]
    %v687 = vld [vmem:[#allocation6 + $0x3c8] sm:$0xff]
    %v688 = vld [vmem:[#allocation6 + $0x3d0] sm:$0xff]
    %v689 = vld [vmem:[#allocation6 + $0x3d8] sm:$0xff]
    %v690 = vld [vmem:[#allocation6 + $0x3e0] sm:$0xff]
    %v691 = vld [vmem:[#allocation6 + $0x3e8] sm:$0xff]
    %v692 = vld [vmem:[#allocation6 + $0x3f0] sm:$0xff]
    %v693 = vld [vmem:[#allocation6 + $0x3f8] sm:$0xff]
    %v694 = vld [vmem:[#allocation6 + $0x400] sm:$0xff]
    %v695 = vld [vmem:[#allocation6 + $0x408] sm:$0xff]
    %v696 = vld [vmem:[#allocation6 + $0x410] sm:$0xff]
    %v697 = vld [vmem:[#allocation6 + $0x418] sm:$0xff]
    %v698 = vld [vmem:[#allocation6 + $0x420] sm:$0xff]
    %v699 = vld [vmem:[#allocation6 + $0x428] sm:$0xff]
    %v700 = vld [vmem:[#allocation6 + $0x430] sm:$0xff]
    %v701 = vld [vmem:[#allocation6 + $0x438] sm:$0xff]
    %v702 = vld [vmem:[#allocation6 + $0x440] sm:$0xff]
    %v703 = vld [vmem:[#allocation6 + $0x448] sm:$0xff]
    %v704 = vld [vmem:[#allocation6 + $0x450] sm:$0xff]
    %v705 = vld [vmem:[#allocation6 + $0x458] sm:$0xff]
    %v706 = vld [vmem:[#allocation6 + $0x460] sm:$0xff]
    %v707 = vld [vmem:[#allocation6 + $0x468] sm:$0xff]
    %v708 = vld [vmem:[#allocation6 + $0x470] sm:$0xff]
    %v709 = vld [vmem:[#allocation6 + $0x478] sm:$0xff]
    %v710 = vld [vmem:[#allocation6 + $0x480] sm:$0xff]
    %v711 = vld [vmem:[#allocation6 + $0x488] sm:$0xff]
    %v712 = vld [vmem:[#allocation6 + $0x490] sm:$0xff]
    %v713 = vld [vmem:[#allocation6 + $0x498] sm:$0xff]
    %v714 = vld [vmem:[#allocation6 + $0x4a0] sm:$0xff]
    %v715 = vld [vmem:[#allocation6 + $0x4a8] sm:$0xff]
    %v716 = vld [vmem:[#allocation6 + $0x4b0] sm:$0xff]
    %v717 = vld [vmem:[#allocation6 + $0x4b8] sm:$0xff]
    %v718 = vld [vmem:[#allocation6 + $0x4c0] sm:$0xff]
    %v719 = vld [vmem:[#allocation6 + $0x4c8] sm:$0xff]
    %v720 = vld [vmem:[#allocation6 + $0x4d0] sm:$0xff]
    %v721 = vld [vmem:[#allocation6 + $0x4d8] sm:$0xff]
    %v722 = vld [vmem:[#allocation6 + $0x4e0] sm:$0xff]
    %v723 = vld [vmem:[#allocation6 + $0x4e8] sm:$0xff]
    %v724 = vld [vmem:[#allocation6 + $0x4f0] sm:$0xff]
    %v725 = vld [vmem:[#allocation6 + $0x4f8] sm:$0xff]
    %v726 = vld [vmem:[#allocation6 + $0x500] sm:$0xff]
    %v727 = vld [vmem:[#allocation6 + $0x508] sm:$0xff]
    %v728 = vld [vmem:[#allocation6 + $0x510] sm:$0xff]
    %v729 = vld [vmem:[#allocation6 + $0x518] sm:$0xff]
    %v730 = vld [vmem:[#allocation6 + $0x520] sm:$0xff]
    %v731 = vld [vmem:[#allocation6 + $0x528] sm:$0xff]
    %v732 = vld [vmem:[#allocation6 + $0x530] sm:$0xff]
    %v733 = vld [vmem:[#allocation6 + $0x538] sm:$0xff]
    %v734 = vld [vmem:[#allocation6 + $0x540] sm:$0xff]
    %v735 = vld [vmem:[#allocation6 + $0x548] sm:$0xff]
    %v736 = vld [vmem:[#allocation6 + $0x550] sm:$0xff]
    %v737 = vld [vmem:[#allocation6 + $0x558] sm:$0xff]
    %v738 = vld [vmem:[#allocation6 + $0x560] sm:$0xff]
    %v739 = vld [vmem:[#allocation6 + $0x568] sm:$0xff]
    %v740 = vld [vmem:[#allocation6 + $0x570] sm:$0xff]
    %v741 = vld [vmem:[#allocation6 + $0x578] sm:$0xff]
    %v742 = vld [vmem:[#allocation6 + $0x580] sm:$0xff]
    %v743 = vld [vmem:[#allocation6 + $0x588] sm:$0xff]
    %v744 = vld [vmem:[#allocation6 + $0x590] sm:$0xff]
    %v745 = vld [vmem:[#allocation6 + $0x598] sm:$0xff]
    %v746 = vld [vmem:[#allocation6 + $0x5a0] sm:$0xff]
    %v747 = vld [vmem:[#allocation6 + $0x5a8] sm:$0xff]
    %v748 = vld [vmem:[#allocation6 + $0x5b0] sm:$0xff]
    %v749 = vld [vmem:[#allocation6 + $0x5b8] sm:$0xff]
    %v750 = vld [vmem:[#allocation6 + $0x5c0] sm:$0xff]
    %v751 = vld [vmem:[#allocation6 + $0x5c8] sm:$0xff]
    %v752 = vld [vmem:[#allocation6 + $0x5d0] sm:$0xff]
    %v753 = vld [vmem:[#allocation6 + $0x5d8] sm:$0xff]
    %v754 = vld [vmem:[#allocation6 + $0x5e0] sm:$0xff]
    %v755 = vld [vmem:[#allocation6 + $0x5e8] sm:$0xff]
    %v756 = vld [vmem:[#allocation6 + $0x5f0] sm:$0xff]
    %v757 = vld [vmem:[#allocation6 + $0x5f8] sm:$0xff]
    %758 = vmatprep.subr.mxu0 %v657
    %759 = vmatpush1.msra.mxu0 %v656
    %760 = vmatprep.subr.mxu0 %v651
    %761 = vmatpush1.msra.mxu0 %v650
    %762 = vmatprep.subr.mxu0 %v645
    %763 = vmatpush1.msra.mxu0 %v644
    %764 = vmatprep.subr.mxu0 %v639
    %765 = vmatpush1.msra.mxu0 %v638
    %766 = vmatprep.subr.mxu0 %v633
    %767 = vmatpush1.msra.mxu0 %v632
    %768 = vmatprep.subr.mxu0 %v627
    %769 = vmatpush1.msra.mxu0 %v626
    %770 = vmatprep.subr.mxu0 %v621
    %771 = vmatpush1.msra.mxu0 %v620
    %772 = vmatprep.subr.mxu0 %v615
    %773 = vmatpush1.msra.mxu0 %v614
    %774 = vmatprep.subr.mxu0 %v609
    %775 = vmatpush1.msra.mxu0 %v608
    %776 = vmatprep.subr.mxu0 %v603
    %777 = vmatpush1.msra.mxu0 %v602
    %778 = vmatprep.subr.mxu0 %v597
    %779 = vmatpush1.msra.mxu0 %v596
    %780 = vmatprep.subr.mxu0 %v591
    %781 = vmatpush1.msra.mxu0 %v590
    %782 = vmatprep.subr.mxu0 %v585
    %783 = vmatpush1.msra.mxu0 %v584
    %784 = vmatprep.subr.mxu0 %v579
    %785 = vmatpush1.msra.mxu0 %v578
    %786 = vmatprep.subr.mxu0 %v573
    %787 = vmatpush1.msra.mxu0 %v572
    %788 = vmatprep.subr.mxu0 %v567
    %789 = vmatpush1.msra.mxu0 %v566
    %790 = vmatprep.subr.mxu0 %v753
    %791 = vmatpush2.msra.mxu0 %v752
    %792 = vmatprep.subr.mxu0 %v747
    %793 = vmatpush2.msra.mxu0 %v746
    %794 = vmatprep.subr.mxu0 %v741
    %795 = vmatpush2.msra.mxu0 %v740
    %796 = vmatprep.subr.mxu0 %v735
    %797 = vmatpush2.msra.mxu0 %v734
    %798 = vmatprep.subr.mxu0 %v729
    %799 = vmatpush2.msra.mxu0 %v728
    %800 = vmatprep.subr.mxu0 %v723
    %801 = vmatpush2.msra.mxu0 %v722
    %802 = vmatprep.subr.mxu0 %v717
    %803 = vmatpush2.msra.mxu0 %v716
    %804 = vmatprep.subr.mxu0 %v711
    %805 = vmatpush2.msra.mxu0 %v710
    %806 = vmatprep.subr.mxu0 %v705
    %807 = vmatpush2.msra.mxu0 %v704
    %808 = vmatprep.subr.mxu0 %v699
    %809 = vmatpush2.msra.mxu0 %v698
    %810 = vmatprep.subr.mxu0 %v693
    %811 = vmatpush2.msra.mxu0 %v692
    %812 = vmatprep.subr.mxu0 %v687
    %813 = vmatpush2.msra.mxu0 %v686
    %814 = vmatprep.subr.mxu0 %v681
    %815 = vmatpush2.msra.mxu0 %v680
    %816 = vmatprep.subr.mxu0 %v675
    %817 = vmatpush2.msra.mxu0 %v674
    %818 = vmatprep.subr.mxu0 %v669
    %819 = vmatpush2.msra.mxu0 %v668
    %820 = vmatprep.subr.mxu0 %v663
    %821 = vmatpush2.msra.mxu0 %v662
    %822 = vmatprep.mubr.f32.mxu0 %v553
    %823 = vmatmul.mubr.f32.gmra.mxu0 %v552
    %v824 = vpop.f32.mrf.mxu0
    %v825 = vadd.f32 0.0, %v824
    %v826 = vpop.f32.mrf.mxu0
    %v827 = vadd.f32 0.0, %v826
    %828 = vdwg.mxu0
    %829 = vmatprep.subr.mxu0 %v659
    %830 = vmatpush1.msra.mxu0 %v658
    %831 = vmatprep.subr.mxu0 %v653
    %832 = vmatpush1.msra.mxu0 %v652
    %833 = vmatprep.subr.mxu0 %v647
    %834 = vmatpush1.msra.mxu0 %v646
    %835 = vmatprep.subr.mxu0 %v641
    %836 = vmatpush1.msra.mxu0 %v640
    %837 = vmatprep.subr.mxu0 %v635
    %838 = vmatpush1.msra.mxu0 %v634
    %839 = vmatprep.subr.mxu0 %v629
    %840 = vmatpush1.msra.mxu0 %v628
    %841 = vmatprep.subr.mxu0 %v623
    %842 = vmatpush1.msra.mxu0 %v622
    %843 = vmatprep.subr.mxu0 %v617
    %844 = vmatpush1.msra.mxu0 %v616
    %845 = vmatprep.subr.mxu0 %v611
    %846 = vmatpush1.msra.mxu0 %v610
    %847 = vmatprep.subr.mxu0 %v605
    %848 = vmatpush1.msra.mxu0 %v604
    %849 = vmatprep.subr.mxu0 %v599
    %850 = vmatpush1.msra.mxu0 %v598
    %851 = vmatprep.subr.mxu0 %v593
    %852 = vmatpush1.msra.mxu0 %v592
    %853 = vmatprep.subr.mxu0 %v587
    %854 = vmatpush1.msra.mxu0 %v586
    %855 = vmatprep.subr.mxu0 %v581
    %856 = vmatpush1.msra.mxu0 %v580
    %857 = vmatprep.subr.mxu0 %v575
    %858 = vmatpush1.msra.mxu0 %v574
    %859 = vmatprep.subr.mxu0 %v569
    %860 = vmatpush1.msra.mxu0 %v568
    %861 = vmatprep.subr.mxu0 %v755
    %862 = vmatpush2.msra.mxu0 %v754
    %863 = vmatprep.subr.mxu0 %v749
    %864 = vmatpush2.msra.mxu0 %v748
    %865 = vmatprep.subr.mxu0 %v743
    %866 = vmatpush2.msra.mxu0 %v742
    %867 = vmatprep.subr.mxu0 %v737
    %868 = vmatpush2.msra.mxu0 %v736
    %869 = vmatprep.subr.mxu0 %v731
    %870 = vmatpush2.msra.mxu0 %v730
    %871 = vmatprep.subr.mxu0 %v725
    %872 = vmatpush2.msra.mxu0 %v724
    %873 = vmatprep.subr.mxu0 %v719
    %874 = vmatpush2.msra.mxu0 %v718
    %875 = vmatprep.subr.mxu0 %v713
    %876 = vmatpush2.msra.mxu0 %v712
    %877 = vmatprep.subr.mxu0 %v707
    %878 = vmatpush2.msra.mxu0 %v706
    %879 = vmatprep.subr.mxu0 %v701
    %880 = vmatpush2.msra.mxu0 %v700
    %881 = vmatprep.subr.mxu0 %v695
    %882 = vmatpush2.msra.mxu0 %v694
    %883 = vmatprep.subr.mxu0 %v689
    %884 = vmatpush2.msra.mxu0 %v688
    %885 = vmatprep.subr.mxu0 %v683
    %886 = vmatpush2.msra.mxu0 %v682
    %887 = vmatprep.subr.mxu0 %v677
    %888 = vmatpush2.msra.mxu0 %v676
    %889 = vmatprep.subr.mxu0 %v671
    %890 = vmatpush2.msra.mxu0 %v670
    %891 = vmatprep.subr.mxu0 %v665
    %892 = vmatpush2.msra.mxu0 %v664
    %893 = vmatprep.mubr.f32.mxu0 %v553
    %894 = vmatmul.mubr.f32.gmra.mxu0 %v552
    %v895 = vpop.f32.mrf.mxu0
    %v896 = vadd.f32 0.0, %v895
    %v897 = vpop.f32.mrf.mxu0
    %v898 = vadd.f32 0.0, %v897
    %899 = vdwg.mxu0
    %900 = vmatprep.subr.mxu0 %v661
    %901 = vmatpush1.msra.mxu0 %v660
    %902 = vmatprep.subr.mxu0 %v655
    %903 = vmatpush1.msra.mxu0 %v654
    %904 = vmatprep.subr.mxu0 %v649
    %905 = vmatpush1.msra.mxu0 %v648
    %906 = vmatprep.subr.mxu0 %v643
    %907 = vmatpush1.msra.mxu0 %v642
    %908 = vmatprep.subr.mxu0 %v637
    %909 = vmatpush1.msra.mxu0 %v636
    %910 = vmatprep.subr.mxu0 %v631
    %911 = vmatpush1.msra.mxu0 %v630
    %912 = vmatprep.subr.mxu0 %v625
    %913 = vmatpush1.msra.mxu0 %v624
    %914 = vmatprep.subr.mxu0 %v619
    %915 = vmatpush1.msra.mxu0 %v618
    %916 = vmatprep.subr.mxu0 %v613
    %917 = vmatpush1.msra.mxu0 %v612
    %918 = vmatprep.subr.mxu0 %v607
    %919 = vmatpush1.msra.mxu0 %v606
    %920 = vmatprep.subr.mxu0 %v601
    %921 = vmatpush1.msra.mxu0 %v600
    %922 = vmatprep.subr.mxu0 %v595
    %923 = vmatpush1.msra.mxu0 %v594
    %924 = vmatprep.subr.mxu0 %v589
    %925 = vmatpush1.msra.mxu0 %v588
    %926 = vmatprep.subr.mxu0 %v583
    %927 = vmatpush1.msra.mxu0 %v582
    %928 = vmatprep.subr.mxu0 %v577
    %929 = vmatpush1.msra.mxu0 %v576
    %930 = vmatprep.subr.mxu0 %v571
    %931 = vmatpush1.msra.mxu0 %v570
    %932 = vmatprep.subr.mxu0 %v757
    %933 = vmatpush2.msra.mxu0 %v756
    %934 = vmatprep.subr.mxu0 %v751
    %935 = vmatpush2.msra.mxu0 %v750
    %936 = vmatprep.subr.mxu0 %v745
    %937 = vmatpush2.msra.mxu0 %v744
    %938 = vmatprep.subr.mxu0 %v739
    %939 = vmatpush2.msra.mxu0 %v738
    %940 = vmatprep.subr.mxu0 %v733
    %941 = vmatpush2.msra.mxu0 %v732
    %942 = vmatprep.subr.mxu0 %v727
    %943 = vmatpush2.msra.mxu0 %v726
    %944 = vmatprep.subr.mxu0 %v721
    %945 = vmatpush2.msra.mxu0 %v720
    %946 = vmatprep.subr.mxu0 %v715
    %947 = vmatpush2.msra.mxu0 %v714
    %948 = vmatprep.subr.mxu0 %v709
    %949 = vmatpush2.msra.mxu0 %v708
    %950 = vmatprep.subr.mxu0 %v703
    %951 = vmatpush2.msra.mxu0 %v702
    %952 = vmatprep.subr.mxu0 %v697
    %953 = vmatpush2.msra.mxu0 %v696
    %954 = vmatprep.subr.mxu0 %v691
    %955 = vmatpush2.msra.mxu0 %v690
    %956 = vmatprep.subr.mxu0 %v685
    %957 = vmatpush2.msra.mxu0 %v684
    %958 = vmatprep.subr.mxu0 %v679
    %959 = vmatpush2.msra.mxu0 %v678
    %960 = vmatprep.subr.mxu0 %v673
    %961 = vmatpush2.msra.mxu0 %v672
    %962 = vmatprep.subr.mxu0 %v667
    %963 = vmatpush2.msra.mxu0 %v666
    %964 = vmatprep.mubr.f32.mxu0 %v553
    %965 = vmatmul.mubr.f32.gmra.mxu0 %v552
    %v966 = vpop.f32.mrf.mxu0
    %v967 = vadd.f32 0.0, %v966
    %v968 = vpop.f32.mrf.mxu0
    %v969 = vadd.f32 0.0, %v968
    %970 = vdwg.mxu0
    %v971 = vadd.f32 %v560, %v825
    %v972 = vadd.f32 %v561, %v827
    %v973 = vxor.u32 %v971, 2147483648
    %v974 = vxor.u32 %v972, 2147483648
    %v975 = vmul.f32 %v973, 1.442695
    %v976 = vpow.pop %v975
    %v977 = vmul.f32 %v974, 1.442695
    %v978 = vpow.pop %v977
    %v979 = vadd.f32 %v976, 1.0
    %v980 = vadd.f32 %v978, 1.0
    %v981 = vrcp.pop %v979
    %v982 = vmul.f32 1.0, %v981
    %v983 = vrcp.pop %v980
    %v984 = vmul.f32 1.0, %v983
    %v985 = vadd.f32 %v562, %v896
    %v986 = vadd.f32 %v563, %v898
    %v987 = vxor.u32 %v985, 2147483648
    %v988 = vxor.u32 %v986, 2147483648
    %v989 = vmul.f32 %v987, 1.442695
    %v990 = vpow.pop %v989
    %v991 = vmul.f32 %v988, 1.442695
    %v992 = vpow.pop %v991
    %v993 = vadd.f32 %v990, 1.0
    %v994 = vadd.f32 %v992, 1.0
    %v995 = vrcp.pop %v993
    %v996 = vmul.f32 1.0, %v995
    %v997 = vrcp.pop %v994
    %v998 = vmul.f32 1.0, %v997
    %v999 = vadd.f32 %v967, %v82
    %v1000 = vadd.f32 %v969, %v86
    %v1001 = vmul.f32 %v982, %v999
    %v1002 = vmul.f32 %v984, %v1000
    %v1003 = vadd.f32 %v564, %v1001
    %v1004 = vadd.f32 %v565, %v1002
    %v1005 = vtanh.pop %v1003
    %v1006 = vtanh.pop %v1004
    %v1007 = vsub.f32 %v552, %v1005
    %v1008 = vsub.f32 %v553, %v1006
    %v1009 = vmul.f32 %v996, %v1007
    %v1010 = vmul.f32 %v998, %v1008
    %v1011 = vadd.f32 %v1005, %v1009
    %v1012 = vadd.f32 %v1006, %v1010
    %s1013 = smul.u32 1, 2
    %s1014 = smul.addr %s1013, 8
    %s1015 = scalar_lea.vmem [#allocation2], %s1014
    %1016 = vst [vmem:[%s1015] sm:$0xff] %v1011
    %1017 = vst [vmem:[%s1015 + $0x8] sm:$0xff] %v1012
    %s1018 = scalar_lea.vmem [#allocation3], 96
    %v1019 = vld [vmem:[%s1018] sm:$0xff]
    %v1020 = vld [vmem:[%s1018 + $0x8] sm:$0xff]
    %v1021 = vld [vmem:[%s1018 + $0x10] sm:$0xff]
    %v1022 = vld [vmem:[%s1018 + $0x18] sm:$0xff]
    %v1023 = vld [vmem:[%s1018 + $0x20] sm:$0xff]
    %v1024 = vld [vmem:[%s1018 + $0x28] sm:$0xff]
    %v1025 = vld [vmem:[#allocation6] sm:$0xff]
    %v1026 = vld [vmem:[#allocation6 + $0x8] sm:$0xff]
    %v1027 = vld [vmem:[#allocation6 + $0x10] sm:$0xff]
    %v1028 = vld [vmem:[#allocation6 + $0x18] sm:$0xff]
    %v1029 = vld [vmem:[#allocation6 + $0x20] sm:$0xff]
    %v1030 = vld [vmem:[#allocation6 + $0x28] sm:$0xff]
    %v1031 = vld [vmem:[#allocation6 + $0x30] sm:$0xff]
    %v1032 = vld [vmem:[#allocation6 + $0x38] sm:$0xff]
    %v1033 = vld [vmem:[#allocation6 + $0x40] sm:$0xff]
    %v1034 = vld [vmem:[#allocation6 + $0x48] sm:$0xff]
    %v1035 = vld [vmem:[#allocation6 + $0x50] sm:$0xff]
    %v1036 = vld [vmem:[#allocation6 + $0x58] sm:$0xff]
    %v1037 = vld [vmem:[#allocation6 + $0x60] sm:$0xff]
    %v1038 = vld [vmem:[#allocation6 + $0x68] sm:$0xff]
    %v1039 = vld [vmem:[#allocation6 + $0x70] sm:$0xff]
    %v1040 = vld [vmem:[#allocation6 + $0x78] sm:$0xff]
    %v1041 = vld [vmem:[#allocation6 + $0x80] sm:$0xff]
    %v1042 = vld [vmem:[#allocation6 + $0x88] sm:$0xff]
    %v1043 = vld [vmem:[#allocation6 + $0x90] sm:$0xff]
    %v1044 = vld [vmem:[#allocation6 + $0x98] sm:$0xff]
    %v1045 = vld [vmem:[#allocation6 + $0xa0] sm:$0xff]
    %v1046 = vld [vmem:[#allocation6 + $0xa8] sm:$0xff]
    %v1047 = vld [vmem:[#allocation6 + $0xb0] sm:$0xff]
    %v1048 = vld [vmem:[#allocation6 + $0xb8] sm:$0xff]
    %v1049 = vld [vmem:[#allocation6 + $0xc0] sm:$0xff]
    %v1050 = vld [vmem:[#allocation6 + $0xc8] sm:$0xff]
    %v1051 = vld [vmem:[#allocation6 + $0xd0] sm:$0xff]
    %v1052 = vld [vmem:[#allocation6 + $0xd8] sm:$0xff]
    %v1053 = vld [vmem:[#allocation6 + $0xe0] sm:$0xff]
    %v1054 = vld [vmem:[#allocation6 + $0xe8] sm:$0xff]
    %v1055 = vld [vmem:[#allocation6 + $0xf0] sm:$0xff]
    %v1056 = vld [vmem:[#allocation6 + $0xf8] sm:$0xff]
    %v1057 = vld [vmem:[#allocation6 + $0x100] sm:$0xff]
    %v1058 = vld [vmem:[#allocation6 + $0x108] sm:$0xff]
    %v1059 = vld [vmem:[#allocation6 + $0x110] sm:$0xff]
    %v1060 = vld [vmem:[#allocation6 + $0x118] sm:$0xff]
    %v1061 = vld [vmem:[#allocation6 + $0x120] sm:$0xff]
    %v1062 = vld [vmem:[#allocation6 + $0x128] sm:$0xff]
    %v1063 = vld [vmem:[#allocation6 + $0x130] sm:$0xff]
    %v1064 = vld [vmem:[#allocation6 + $0x138] sm:$0xff]
    %v1065 = vld [vmem:[#allocation6 + $0x140] sm:$0xff]
    %v1066 = vld [vmem:[#allocation6 + $0x148] sm:$0xff]
    %v1067 = vld [vmem:[#allocation6 + $0x150] sm:$0xff]
    %v1068 = vld [vmem:[#allocation6 + $0x158] sm:$0xff]
    %v1069 = vld [vmem:[#allocation6 + $0x160] sm:$0xff]
    %v1070 = vld [vmem:[#allocation6 + $0x168] sm:$0xff]
    %v1071 = vld [vmem:[#allocation6 + $0x170] sm:$0xff]
    %v1072 = vld [vmem:[#allocation6 + $0x178] sm:$0xff]
    %v1073 = vld [vmem:[#allocation6 + $0x180] sm:$0xff]
    %v1074 = vld [vmem:[#allocation6 + $0x188] sm:$0xff]
    %v1075 = vld [vmem:[#allocation6 + $0x190] sm:$0xff]
    %v1076 = vld [vmem:[#allocation6 + $0x198] sm:$0xff]
    %v1077 = vld [vmem:[#allocation6 + $0x1a0] sm:$0xff]
    %v1078 = vld [vmem:[#allocation6 + $0x1a8] sm:$0xff]
    %v1079 = vld [vmem:[#allocation6 + $0x1b0] sm:$0xff]
    %v1080 = vld [vmem:[#allocation6 + $0x1b8] sm:$0xff]
    %v1081 = vld [vmem:[#allocation6 + $0x1c0] sm:$0xff]
    %v1082 = vld [vmem:[#allocation6 + $0x1c8] sm:$0xff]
    %v1083 = vld [vmem:[#allocation6 + $0x1d0] sm:$0xff]
    %v1084 = vld [vmem:[#allocation6 + $0x1d8] sm:$0xff]
    %v1085 = vld [vmem:[#allocation6 + $0x1e0] sm:$0xff]
    %v1086 = vld [vmem:[#allocation6 + $0x1e8] sm:$0xff]
    %v1087 = vld [vmem:[#allocation6 + $0x1f0] sm:$0xff]
    %v1088 = vld [vmem:[#allocation6 + $0x1f8] sm:$0xff]
    %v1089 = vld [vmem:[#allocation6 + $0x200] sm:$0xff]
    %v1090 = vld [vmem:[#allocation6 + $0x208] sm:$0xff]
    %v1091 = vld [vmem:[#allocation6 + $0x210] sm:$0xff]
    %v1092 = vld [vmem:[#allocation6 + $0x218] sm:$0xff]
    %v1093 = vld [vmem:[#allocation6 + $0x220] sm:$0xff]
    %v1094 = vld [vmem:[#allocation6 + $0x228] sm:$0xff]
    %v1095 = vld [vmem:[#allocation6 + $0x230] sm:$0xff]
    %v1096 = vld [vmem:[#allocation6 + $0x238] sm:$0xff]
    %v1097 = vld [vmem:[#allocation6 + $0x240] sm:$0xff]
    %v1098 = vld [vmem:[#allocation6 + $0x248] sm:$0xff]
    %v1099 = vld [vmem:[#allocation6 + $0x250] sm:$0xff]
    %v1100 = vld [vmem:[#allocation6 + $0x258] sm:$0xff]
    %v1101 = vld [vmem:[#allocation6 + $0x260] sm:$0xff]
    %v1102 = vld [vmem:[#allocation6 + $0x268] sm:$0xff]
    %v1103 = vld [vmem:[#allocation6 + $0x270] sm:$0xff]
    %v1104 = vld [vmem:[#allocation6 + $0x278] sm:$0xff]
    %v1105 = vld [vmem:[#allocation6 + $0x280] sm:$0xff]
    %v1106 = vld [vmem:[#allocation6 + $0x288] sm:$0xff]
    %v1107 = vld [vmem:[#allocation6 + $0x290] sm:$0xff]
    %v1108 = vld [vmem:[#allocation6 + $0x298] sm:$0xff]
    %v1109 = vld [vmem:[#allocation6 + $0x2a0] sm:$0xff]
    %v1110 = vld [vmem:[#allocation6 + $0x2a8] sm:$0xff]
    %v1111 = vld [vmem:[#allocation6 + $0x2b0] sm:$0xff]
    %v1112 = vld [vmem:[#allocation6 + $0x2b8] sm:$0xff]
    %v1113 = vld [vmem:[#allocation6 + $0x2c0] sm:$0xff]
    %v1114 = vld [vmem:[#allocation6 + $0x2c8] sm:$0xff]
    %v1115 = vld [vmem:[#allocation6 + $0x2d0] sm:$0xff]
    %v1116 = vld [vmem:[#allocation6 + $0x2d8] sm:$0xff]
    %v1117 = vld [vmem:[#allocation6 + $0x2e0] sm:$0xff]
    %v1118 = vld [vmem:[#allocation6 + $0x2e8] sm:$0xff]
    %v1119 = vld [vmem:[#allocation6 + $0x2f0] sm:$0xff]
    %v1120 = vld [vmem:[#allocation6 + $0x2f8] sm:$0xff]
    %v1121 = vld [vmem:[#allocation6 + $0x300] sm:$0xff]
    %v1122 = vld [vmem:[#allocation6 + $0x308] sm:$0xff]
    %v1123 = vld [vmem:[#allocation6 + $0x310] sm:$0xff]
    %v1124 = vld [vmem:[#allocation6 + $0x318] sm:$0xff]
    %v1125 = vld [vmem:[#allocation6 + $0x320] sm:$0xff]
    %v1126 = vld [vmem:[#allocation6 + $0x328] sm:$0xff]
    %v1127 = vld [vmem:[#allocation6 + $0x330] sm:$0xff]
    %v1128 = vld [vmem:[#allocation6 + $0x338] sm:$0xff]
    %v1129 = vld [vmem:[#allocation6 + $0x340] sm:$0xff]
    %v1130 = vld [vmem:[#allocation6 + $0x348] sm:$0xff]
    %v1131 = vld [vmem:[#allocation6 + $0x350] sm:$0xff]
    %v1132 = vld [vmem:[#allocation6 + $0x358] sm:$0xff]
    %v1133 = vld [vmem:[#allocation6 + $0x360] sm:$0xff]
    %v1134 = vld [vmem:[#allocation6 + $0x368] sm:$0xff]
    %v1135 = vld [vmem:[#allocation6 + $0x370] sm:$0xff]
    %v1136 = vld [vmem:[#allocation6 + $0x378] sm:$0xff]
    %v1137 = vld [vmem:[#allocation6 + $0x380] sm:$0xff]
    %v1138 = vld [vmem:[#allocation6 + $0x388] sm:$0xff]
    %v1139 = vld [vmem:[#allocation6 + $0x390] sm:$0xff]
    %v1140 = vld [vmem:[#allocation6 + $0x398] sm:$0xff]
    %v1141 = vld [vmem:[#allocation6 + $0x3a0] sm:$0xff]
    %v1142 = vld [vmem:[#allocation6 + $0x3a8] sm:$0xff]
    %v1143 = vld [vmem:[#allocation6 + $0x3b0] sm:$0xff]
    %v1144 = vld [vmem:[#allocation6 + $0x3b8] sm:$0xff]
    %v1145 = vld [vmem:[#allocation6 + $0x3c0] sm:$0xff]
    %v1146 = vld [vmem:[#allocation6 + $0x3c8] sm:$0xff]
    %v1147 = vld [vmem:[#allocation6 + $0x3d0] sm:$0xff]
    %v1148 = vld [vmem:[#allocation6 + $0x3d8] sm:$0xff]
    %v1149 = vld [vmem:[#allocation6 + $0x3e0] sm:$0xff]
    %v1150 = vld [vmem:[#allocation6 + $0x3e8] sm:$0xff]
    %v1151 = vld [vmem:[#allocation6 + $0x3f0] sm:$0xff]
    %v1152 = vld [vmem:[#allocation6 + $0x3f8] sm:$0xff]
    %v1153 = vld [vmem:[#allocation6 + $0x400] sm:$0xff]
    %v1154 = vld [vmem:[#allocation6 + $0x408] sm:$0xff]
    %v1155 = vld [vmem:[#allocation6 + $0x410] sm:$0xff]
    %v1156 = vld [vmem:[#allocation6 + $0x418] sm:$0xff]
    %v1157 = vld [vmem:[#allocation6 + $0x420] sm:$0xff]
    %v1158 = vld [vmem:[#allocation6 + $0x428] sm:$0xff]
    %v1159 = vld [vmem:[#allocation6 + $0x430] sm:$0xff]
    %v1160 = vld [vmem:[#allocation6 + $0x438] sm:$0xff]
    %v1161 = vld [vmem:[#allocation6 + $0x440] sm:$0xff]
    %v1162 = vld [vmem:[#allocation6 + $0x448] sm:$0xff]
    %v1163 = vld [vmem:[#allocation6 + $0x450] sm:$0xff]
    %v1164 = vld [vmem:[#allocation6 + $0x458] sm:$0xff]
    %v1165 = vld [vmem:[#allocation6 + $0x460] sm:$0xff]
    %v1166 = vld [vmem:[#allocation6 + $0x468] sm:$0xff]
    %v1167 = vld [vmem:[#allocation6 + $0x470] sm:$0xff]
    %v1168 = vld [vmem:[#allocation6 + $0x478] sm:$0xff]
    %v1169 = vld [vmem:[#allocation6 + $0x480] sm:$0xff]
    %v1170 = vld [vmem:[#allocation6 + $0x488] sm:$0xff]
    %v1171 = vld [vmem:[#allocation6 + $0x490] sm:$0xff]
    %v1172 = vld [vmem:[#allocation6 + $0x498] sm:$0xff]
    %v1173 = vld [vmem:[#allocation6 + $0x4a0] sm:$0xff]
    %v1174 = vld [vmem:[#allocation6 + $0x4a8] sm:$0xff]
    %v1175 = vld [vmem:[#allocation6 + $0x4b0] sm:$0xff]
    %v1176 = vld [vmem:[#allocation6 + $0x4b8] sm:$0xff]
    %v1177 = vld [vmem:[#allocation6 + $0x4c0] sm:$0xff]
    %v1178 = vld [vmem:[#allocation6 + $0x4c8] sm:$0xff]
    %v1179 = vld [vmem:[#allocation6 + $0x4d0] sm:$0xff]
    %v1180 = vld [vmem:[#allocation6 + $0x4d8] sm:$0xff]
    %v1181 = vld [vmem:[#allocation6 + $0x4e0] sm:$0xff]
    %v1182 = vld [vmem:[#allocation6 + $0x4e8] sm:$0xff]
    %v1183 = vld [vmem:[#allocation6 + $0x4f0] sm:$0xff]
    %v1184 = vld [vmem:[#allocation6 + $0x4f8] sm:$0xff]
    %v1185 = vld [vmem:[#allocation6 + $0x500] sm:$0xff]
    %v1186 = vld [vmem:[#allocation6 + $0x508] sm:$0xff]
    %v1187 = vld [vmem:[#allocation6 + $0x510] sm:$0xff]
    %v1188 = vld [vmem:[#allocation6 + $0x518] sm:$0xff]
    %v1189 = vld [vmem:[#allocation6 + $0x520] sm:$0xff]
    %v1190 = vld [vmem:[#allocation6 + $0x528] sm:$0xff]
    %v1191 = vld [vmem:[#allocation6 + $0x530] sm:$0xff]
    %v1192 = vld [vmem:[#allocation6 + $0x538] sm:$0xff]
    %v1193 = vld [vmem:[#allocation6 + $0x540] sm:$0xff]
    %v1194 = vld [vmem:[#allocation6 + $0x548] sm:$0xff]
    %v1195 = vld [vmem:[#allocation6 + $0x550] sm:$0xff]
    %v1196 = vld [vmem:[#allocation6 + $0x558] sm:$0xff]
    %v1197 = vld [vmem:[#allocation6 + $0x560] sm:$0xff]
    %v1198 = vld [vmem:[#allocation6 + $0x568] sm:$0xff]
    %v1199 = vld [vmem:[#allocation6 + $0x570] sm:$0xff]
    %v1200 = vld [vmem:[#allocation6 + $0x578] sm:$0xff]
    %v1201 = vld [vmem:[#allocation6 + $0x580] sm:$0xff]
    %v1202 = vld [vmem:[#allocation6 + $0x588] sm:$0xff]
    %v1203 = vld [vmem:[#allocation6 + $0x590] sm:$0xff]
    %v1204 = vld [vmem:[#allocation6 + $0x598] sm:$0xff]
    %v1205 = vld [vmem:[#allocation6 + $0x5a0] sm:$0xff]
    %v1206 = vld [vmem:[#allocation6 + $0x5a8] sm:$0xff]
    %v1207 = vld [vmem:[#allocation6 + $0x5b0] sm:$0xff]
    %v1208 = vld [vmem:[#allocation6 + $0x5b8] sm:$0xff]
    %v1209 = vld [vmem:[#allocation6 + $0x5c0] sm:$0xff]
    %v1210 = vld [vmem:[#allocation6 + $0x5c8] sm:$0xff]
    %v1211 = vld [vmem:[#allocation6 + $0x5d0] sm:$0xff]
    %v1212 = vld [vmem:[#allocation6 + $0x5d8] sm:$0xff]
    %v1213 = vld [vmem:[#allocation6 + $0x5e0] sm:$0xff]
    %v1214 = vld [vmem:[#allocation6 + $0x5e8] sm:$0xff]
    %v1215 = vld [vmem:[#allocation6 + $0x5f0] sm:$0xff]
    %v1216 = vld [vmem:[#allocation6 + $0x5f8] sm:$0xff]
    %1217 = vmatprep.subr.mxu0 %v1116
    %1218 = vmatpush1.msra.mxu0 %v1115
    %1219 = vmatprep.subr.mxu0 %v1110
    %1220 = vmatpush1.msra.mxu0 %v1109
    %1221 = vmatprep.subr.mxu0 %v1104
    %1222 = vmatpush1.msra.mxu0 %v1103
    %1223 = vmatprep.subr.mxu0 %v1098
    %1224 = vmatpush1.msra.mxu0 %v1097
    %1225 = vmatprep.subr.mxu0 %v1092
    %1226 = vmatpush1.msra.mxu0 %v1091
    %1227 = vmatprep.subr.mxu0 %v1086
    %1228 = vmatpush1.msra.mxu0 %v1085
    %1229 = vmatprep.subr.mxu0 %v1080
    %1230 = vmatpush1.msra.mxu0 %v1079
    %1231 = vmatprep.subr.mxu0 %v1074
    %1232 = vmatpush1.msra.mxu0 %v1073
    %1233 = vmatprep.subr.mxu0 %v1068
    %1234 = vmatpush1.msra.mxu0 %v1067
    %1235 = vmatprep.subr.mxu0 %v1062
    %1236 = vmatpush1.msra.mxu0 %v1061
    %1237 = vmatprep.subr.mxu0 %v1056
    %1238 = vmatpush1.msra.mxu0 %v1055
    %1239 = vmatprep.subr.mxu0 %v1050
    %1240 = vmatpush1.msra.mxu0 %v1049
    %1241 = vmatprep.subr.mxu0 %v1044
    %1242 = vmatpush1.msra.mxu0 %v1043
    %1243 = vmatprep.subr.mxu0 %v1038
    %1244 = vmatpush1.msra.mxu0 %v1037
    %1245 = vmatprep.subr.mxu0 %v1032
    %1246 = vmatpush1.msra.mxu0 %v1031
    %1247 = vmatprep.subr.mxu0 %v1026
    %1248 = vmatpush1.msra.mxu0 %v1025
    %1249 = vmatprep.subr.mxu0 %v1212
    %1250 = vmatpush2.msra.mxu0 %v1211
    %1251 = vmatprep.subr.mxu0 %v1206
    %1252 = vmatpush2.msra.mxu0 %v1205
    %1253 = vmatprep.subr.mxu0 %v1200
    %1254 = vmatpush2.msra.mxu0 %v1199
    %1255 = vmatprep.subr.mxu0 %v1194
    %1256 = vmatpush2.msra.mxu0 %v1193
    %1257 = vmatprep.subr.mxu0 %v1188
    %1258 = vmatpush2.msra.mxu0 %v1187
    %1259 = vmatprep.subr.mxu0 %v1182
    %1260 = vmatpush2.msra.mxu0 %v1181
    %1261 = vmatprep.subr.mxu0 %v1176
    %1262 = vmatpush2.msra.mxu0 %v1175
    %1263 = vmatprep.subr.mxu0 %v1170
    %1264 = vmatpush2.msra.mxu0 %v1169
    %1265 = vmatprep.subr.mxu0 %v1164
    %1266 = vmatpush2.msra.mxu0 %v1163
    %1267 = vmatprep.subr.mxu0 %v1158
    %1268 = vmatpush2.msra.mxu0 %v1157
    %1269 = vmatprep.subr.mxu0 %v1152
    %1270 = vmatpush2.msra.mxu0 %v1151
    %1271 = vmatprep.subr.mxu0 %v1146
    %1272 = vmatpush2.msra.mxu0 %v1145
    %1273 = vmatprep.subr.mxu0 %v1140
    %1274 = vmatpush2.msra.mxu0 %v1139
    %1275 = vmatprep.subr.mxu0 %v1134
    %1276 = vmatpush2.msra.mxu0 %v1133
    %1277 = vmatprep.subr.mxu0 %v1128
    %1278 = vmatpush2.msra.mxu0 %v1127
    %1279 = vmatprep.subr.mxu0 %v1122
    %1280 = vmatpush2.msra.mxu0 %v1121
    %1281 = vmatprep.mubr.f32.mxu0 %v1012
    %1282 = vmatmul.mubr.f32.gmra.mxu0 %v1011
    %v1283 = vpop.f32.mrf.mxu0
    %v1284 = vadd.f32 0.0, %v1283
    %v1285 = vpop.f32.mrf.mxu0
    %v1286 = vadd.f32 0.0, %v1285
    %1287 = vdwg.mxu0
    %1288 = vmatprep.subr.mxu0 %v1118
    %1289 = vmatpush1.msra.mxu0 %v1117
    %1290 = vmatprep.subr.mxu0 %v1112
    %1291 = vmatpush1.msra.mxu0 %v1111
    %1292 = vmatprep.subr.mxu0 %v1106
    %1293 = vmatpush1.msra.mxu0 %v1105
    %1294 = vmatprep.subr.mxu0 %v1100
    %1295 = vmatpush1.msra.mxu0 %v1099
    %1296 = vmatprep.subr.mxu0 %v1094
    %1297 = vmatpush1.msra.mxu0 %v1093
    %1298 = vmatprep.subr.mxu0 %v1088
    %1299 = vmatpush1.msra.mxu0 %v1087
    %1300 = vmatprep.subr.mxu0 %v1082
    %1301 = vmatpush1.msra.mxu0 %v1081
    %1302 = vmatprep.subr.mxu0 %v1076
    %1303 = vmatpush1.msra.mxu0 %v1075
    %1304 = vmatprep.subr.mxu0 %v1070
    %1305 = vmatpush1.msra.mxu0 %v1069
    %1306 = vmatprep.subr.mxu0 %v1064
    %1307 = vmatpush1.msra.mxu0 %v1063
    %1308 = vmatprep.subr.mxu0 %v1058
    %1309 = vmatpush1.msra.mxu0 %v1057
    %1310 = vmatprep.subr.mxu0 %v1052
    %1311 = vmatpush1.msra.mxu0 %v1051
    %1312 = vmatprep.subr.mxu0 %v1046
    %1313 = vmatpush1.msra.mxu0 %v1045
    %1314 = vmatprep.subr.mxu0 %v1040
    %1315 = vmatpush1.msra.mxu0 %v1039
    %1316 = vmatprep.subr.mxu0 %v1034
    %1317 = vmatpush1.msra.mxu0 %v1033
    %1318 = vmatprep.subr.mxu0 %v1028
    %1319 = vmatpush1.msra.mxu0 %v1027
    %1320 = vmatprep.subr.mxu0 %v1214
    %1321 = vmatpush2.msra.mxu0 %v1213
    %1322 = vmatprep.subr.mxu0 %v1208
    %1323 = vmatpush2.msra.mxu0 %v1207
    %1324 = vmatprep.subr.mxu0 %v1202
    %1325 = vmatpush2.msra.mxu0 %v1201
    %1326 = vmatprep.subr.mxu0 %v1196
    %1327 = vmatpush2.msra.mxu0 %v1195
    %1328 = vmatprep.subr.mxu0 %v1190
    %1329 = vmatpush2.msra.mxu0 %v1189
    %1330 = vmatprep.subr.mxu0 %v1184
    %1331 = vmatpush2.msra.mxu0 %v1183
    %1332 = vmatprep.subr.mxu0 %v1178
    %1333 = vmatpush2.msra.mxu0 %v1177
    %1334 = vmatprep.subr.mxu0 %v1172
    %1335 = vmatpush2.msra.mxu0 %v1171
    %1336 = vmatprep.subr.mxu0 %v1166
    %1337 = vmatpush2.msra.mxu0 %v1165
    %1338 = vmatprep.subr.mxu0 %v1160
    %1339 = vmatpush2.msra.mxu0 %v1159
    %1340 = vmatprep.subr.mxu0 %v1154
    %1341 = vmatpush2.msra.mxu0 %v1153
    %1342 = vmatprep.subr.mxu0 %v1148
    %1343 = vmatpush2.msra.mxu0 %v1147
    %1344 = vmatprep.subr.mxu0 %v1142
    %1345 = vmatpush2.msra.mxu0 %v1141
    %1346 = vmatprep.subr.mxu0 %v1136
    %1347 = vmatpush2.msra.mxu0 %v1135
    %1348 = vmatprep.subr.mxu0 %v1130
    %1349 = vmatpush2.msra.mxu0 %v1129
    %1350 = vmatprep.subr.mxu0 %v1124
    %1351 = vmatpush2.msra.mxu0 %v1123
    %1352 = vmatprep.mubr.f32.mxu0 %v1012
    %1353 = vmatmul.mubr.f32.gmra.mxu0 %v1011
    %v1354 = vpop.f32.mrf.mxu0
    %v1355 = vadd.f32 0.0, %v1354
    %v1356 = vpop.f32.mrf.mxu0
    %v1357 = vadd.f32 0.0, %v1356
    %1358 = vdwg.mxu0
    %1359 = vmatprep.subr.mxu0 %v1120
    %1360 = vmatpush1.msra.mxu0 %v1119
    %1361 = vmatprep.subr.mxu0 %v1114
    %1362 = vmatpush1.msra.mxu0 %v1113
    %1363 = vmatprep.subr.mxu0 %v1108
    %1364 = vmatpush1.msra.mxu0 %v1107
    %1365 = vmatprep.subr.mxu0 %v1102
    %1366 = vmatpush1.msra.mxu0 %v1101
    %1367 = vmatprep.subr.mxu0 %v1096
    %1368 = vmatpush1.msra.mxu0 %v1095
    %1369 = vmatprep.subr.mxu0 %v1090
    %1370 = vmatpush1.msra.mxu0 %v1089
    %1371 = vmatprep.subr.mxu0 %v1084
    %1372 = vmatpush1.msra.mxu0 %v1083
    %1373 = vmatprep.subr.mxu0 %v1078
    %1374 = vmatpush1.msra.mxu0 %v1077
    %1375 = vmatprep.subr.mxu0 %v1072
    %1376 = vmatpush1.msra.mxu0 %v1071
    %1377 = vmatprep.subr.mxu0 %v1066
    %1378 = vmatpush1.msra.mxu0 %v1065
    %1379 = vmatprep.subr.mxu0 %v1060
    %1380 = vmatpush1.msra.mxu0 %v1059
    %1381 = vmatprep.subr.mxu0 %v1054
    %1382 = vmatpush1.msra.mxu0 %v1053
    %1383 = vmatprep.subr.mxu0 %v1048
    %1384 = vmatpush1.msra.mxu0 %v1047
    %1385 = vmatprep.subr.mxu0 %v1042
    %1386 = vmatpush1.msra.mxu0 %v1041
    %1387 = vmatprep.subr.mxu0 %v1036
    %1388 = vmatpush1.msra.mxu0 %v1035
    %1389 = vmatprep.subr.mxu0 %v1030
    %1390 = vmatpush1.msra.mxu0 %v1029
    %1391 = vmatprep.subr.mxu0 %v1216
    %1392 = vmatpush2.msra.mxu0 %v1215
    %1393 = vmatprep.subr.mxu0 %v1210
    %1394 = vmatpush2.msra.mxu0 %v1209
    %1395 = vmatprep.subr.mxu0 %v1204
    %1396 = vmatpush2.msra.mxu0 %v1203
    %1397 = vmatprep.subr.mxu0 %v1198
    %1398 = vmatpush2.msra.mxu0 %v1197
    %1399 = vmatprep.subr.mxu0 %v1192
    %1400 = vmatpush2.msra.mxu0 %v1191
    %1401 = vmatprep.subr.mxu0 %v1186
    %1402 = vmatpush2.msra.mxu0 %v1185
    %1403 = vmatprep.subr.mxu0 %v1180
    %1404 = vmatpush2.msra.mxu0 %v1179
    %1405 = vmatprep.subr.mxu0 %v1174
    %1406 = vmatpush2.msra.mxu0 %v1173
    %1407 = vmatprep.subr.mxu0 %v1168
    %1408 = vmatpush2.msra.mxu0 %v1167
    %1409 = vmatprep.subr.mxu0 %v1162
    %1410 = vmatpush2.msra.mxu0 %v1161
    %1411 = vmatprep.subr.mxu0 %v1156
    %1412 = vmatpush2.msra.mxu0 %v1155
    %1413 = vmatprep.subr.mxu0 %v1150
    %1414 = vmatpush2.msra.mxu0 %v1149
    %1415 = vmatprep.subr.mxu0 %v1144
    %1416 = vmatpush2.msra.mxu0 %v1143
    %1417 = vmatprep.subr.mxu0 %v1138
    %1418 = vmatpush2.msra.mxu0 %v1137
    %1419 = vmatprep.subr.mxu0 %v1132
    %1420 = vmatpush2.msra.mxu0 %v1131
    %1421 = vmatprep.subr.mxu0 %v1126
    %1422 = vmatpush2.msra.mxu0 %v1125
    %1423 = vmatprep.mubr.f32.mxu0 %v1012
    %1424 = vmatmul.mubr.f32.gmra.mxu0 %v1011
    %v1425 = vpop.f32.mrf.mxu0
    %v1426 = vadd.f32 0.0, %v1425
    %v1427 = vpop.f32.mrf.mxu0
    %v1428 = vadd.f32 0.0, %v1427
    %1429 = vdwg.mxu0
    %v1430 = vadd.f32 %v1019, %v1284
    %v1431 = vadd.f32 %v1020, %v1286
    %v1432 = vxor.u32 %v1430, 2147483648
    %v1433 = vxor.u32 %v1431, 2147483648
    %v1434 = vmul.f32 %v1432, 1.442695
    %v1435 = vpow.pop %v1434
    %v1436 = vmul.f32 %v1433, 1.442695
    %v1437 = vpow.pop %v1436
    %v1438 = vadd.f32 %v1435, 1.0
    %v1439 = vadd.f32 %v1437, 1.0
    %v1440 = vrcp.pop %v1438
    %v1441 = vmul.f32 1.0, %v1440
    %v1442 = vrcp.pop %v1439
    %v1443 = vmul.f32 1.0, %v1442
    %v1444 = vadd.f32 %v1021, %v1355
    %v1445 = vadd.f32 %v1022, %v1357
    %v1446 = vxor.u32 %v1444, 2147483648
    %v1447 = vxor.u32 %v1445, 2147483648
    %v1448 = vmul.f32 %v1446, 1.442695
    %v1449 = vpow.pop %v1448
    %v1450 = vmul.f32 %v1447, 1.442695
    %v1451 = vpow.pop %v1450
    %v1452 = vadd.f32 %v1449, 1.0
    %v1453 = vadd.f32 %v1451, 1.0
    %v1454 = vrcp.pop %v1452
    %v1455 = vmul.f32 1.0, %v1454
    %v1456 = vrcp.pop %v1453
    %v1457 = vmul.f32 1.0, %v1456
    %v1458 = vadd.f32 %v1426, %v82
    %v1459 = vadd.f32 %v1428, %v86
    %v1460 = vmul.f32 %v1441, %v1458
    %v1461 = vmul.f32 %v1443, %v1459
    %v1462 = vadd.f32 %v1023, %v1460
    %v1463 = vadd.f32 %v1024, %v1461
    %v1464 = vtanh.pop %v1462
    %v1465 = vtanh.pop %v1463
    %v1466 = vsub.f32 %v1011, %v1464
    %v1467 = vsub.f32 %v1012, %v1465
    %v1468 = vmul.f32 %v1455, %v1466
    %v1469 = vmul.f32 %v1457, %v1467
    %v1470 = vadd.f32 %v1464, %v1468
    %v1471 = vadd.f32 %v1465, %v1469
    %s1472 = smul.u32 2, 2
    %s1473 = smul.addr %s1472, 8
    %s1474 = scalar_lea.vmem [#allocation2], %s1473
    %1475 = vst [vmem:[%s1474] sm:$0xff] %v1470
    %1476 = vst [vmem:[%s1474 + $0x8] sm:$0xff] %v1471
    %s1477 = scalar_lea.vmem [#allocation3], 144
    %v1478 = vld [vmem:[%s1477] sm:$0xff]
    %v1479 = vld [vmem:[%s1477 + $0x8] sm:$0xff]
    %v1480 = vld [vmem:[%s1477 + $0x10] sm:$0xff]
    %v1481 = vld [vmem:[%s1477 + $0x18] sm:$0xff]
    %v1482 = vld [vmem:[%s1477 + $0x20] sm:$0xff]
    %v1483 = vld [vmem:[%s1477 + $0x28] sm:$0xff]
    %v1484 = vld [vmem:[#allocation6] sm:$0xff]
    %v1485 = vld [vmem:[#allocation6 + $0x8] sm:$0xff]
    %v1486 = vld [vmem:[#allocation6 + $0x10] sm:$0xff]
    %v1487 = vld [vmem:[#allocation6 + $0x18] sm:$0xff]
    %v1488 = vld [vmem:[#allocation6 + $0x20] sm:$0xff]
    %v1489 = vld [vmem:[#allocation6 + $0x28] sm:$0xff]
    %v1490 = vld [vmem:[#allocation6 + $0x30] sm:$0xff]
    %v1491 = vld [vmem:[#allocation6 + $0x38] sm:$0xff]
    %v1492 = vld [vmem:[#allocation6 + $0x40] sm:$0xff]
    %v1493 = vld [vmem:[#allocation6 + $0x48] sm:$0xff]
    %v1494 = vld [vmem:[#allocation6 + $0x50] sm:$0xff]
    %v1495 = vld [vmem:[#allocation6 + $0x58] sm:$0xff]
    %v1496 = vld [vmem:[#allocation6 + $0x60] sm:$0xff]
    %v1497 = vld [vmem:[#allocation6 + $0x68] sm:$0xff]
    %v1498 = vld [vmem:[#allocation6 + $0x70] sm:$0xff]
    %v1499 = vld [vmem:[#allocation6 + $0x78] sm:$0xff]
    %v1500 = vld [vmem:[#allocation6 + $0x80] sm:$0xff]
    %v1501 = vld [vmem:[#allocation6 + $0x88] sm:$0xff]
    %v1502 = vld [vmem:[#allocation6 + $0x90] sm:$0xff]
    %v1503 = vld [vmem:[#allocation6 + $0x98] sm:$0xff]
    %v1504 = vld [vmem:[#allocation6 + $0xa0] sm:$0xff]
    %v1505 = vld [vmem:[#allocation6 + $0xa8] sm:$0xff]
    %v1506 = vld [vmem:[#allocation6 + $0xb0] sm:$0xff]
    %v1507 = vld [vmem:[#allocation6 + $0xb8] sm:$0xff]
    %v1508 = vld [vmem:[#allocation6 + $0xc0] sm:$0xff]
    %v1509 = vld [vmem:[#allocation6 + $0xc8] sm:$0xff]
    %v1510 = vld [vmem:[#allocation6 + $0xd0] sm:$0xff]
    %v1511 = vld [vmem:[#allocation6 + $0xd8] sm:$0xff]
    %v1512 = vld [vmem:[#allocation6 + $0xe0] sm:$0xff]
    %v1513 = vld [vmem:[#allocation6 + $0xe8] sm:$0xff]
    %v1514 = vld [vmem:[#allocation6 + $0xf0] sm:$0xff]
    %v1515 = vld [vmem:[#allocation6 + $0xf8] sm:$0xff]
    %v1516 = vld [vmem:[#allocation6 + $0x100] sm:$0xff]
    %v1517 = vld [vmem:[#allocation6 + $0x108] sm:$0xff]
    %v1518 = vld [vmem:[#allocation6 + $0x110] sm:$0xff]
    %v1519 = vld [vmem:[#allocation6 + $0x118] sm:$0xff]
    %v1520 = vld [vmem:[#allocation6 + $0x120] sm:$0xff]
    %v1521 = vld [vmem:[#allocation6 + $0x128] sm:$0xff]
    %v1522 = vld [vmem:[#allocation6 + $0x130] sm:$0xff]
    %v1523 = vld [vmem:[#allocation6 + $0x138] sm:$0xff]
    %v1524 = vld [vmem:[#allocation6 + $0x140] sm:$0xff]
    %v1525 = vld [vmem:[#allocation6 + $0x148] sm:$0xff]
    %v1526 = vld [vmem:[#allocation6 + $0x150] sm:$0xff]
    %v1527 = vld [vmem:[#allocation6 + $0x158] sm:$0xff]
    %v1528 = vld [vmem:[#allocation6 + $0x160] sm:$0xff]
    %v1529 = vld [vmem:[#allocation6 + $0x168] sm:$0xff]
    %v1530 = vld [vmem:[#allocation6 + $0x170] sm:$0xff]
    %v1531 = vld [vmem:[#allocation6 + $0x178] sm:$0xff]
    %v1532 = vld [vmem:[#allocation6 + $0x180] sm:$0xff]
    %v1533 = vld [vmem:[#allocation6 + $0x188] sm:$0xff]
    %v1534 = vld [vmem:[#allocation6 + $0x190] sm:$0xff]
    %v1535 = vld [vmem:[#allocation6 + $0x198] sm:$0xff]
    %v1536 = vld [vmem:[#allocation6 + $0x1a0] sm:$0xff]
    %v1537 = vld [vmem:[#allocation6 + $0x1a8] sm:$0xff]
    %v1538 = vld [vmem:[#allocation6 + $0x1b0] sm:$0xff]
    %v1539 = vld [vmem:[#allocation6 + $0x1b8] sm:$0xff]
    %v1540 = vld [vmem:[#allocation6 + $0x1c0] sm:$0xff]
    %v1541 = vld [vmem:[#allocation6 + $0x1c8] sm:$0xff]
    %v1542 = vld [vmem:[#allocation6 + $0x1d0] sm:$0xff]
    %v1543 = vld [vmem:[#allocation6 + $0x1d8] sm:$0xff]
    %v1544 = vld [vmem:[#allocation6 + $0x1e0] sm:$0xff]
    %v1545 = vld [vmem:[#allocation6 + $0x1e8] sm:$0xff]
    %v1546 = vld [vmem:[#allocation6 + $0x1f0] sm:$0xff]
    %v1547 = vld [vmem:[#allocation6 + $0x1f8] sm:$0xff]
    %v1548 = vld [vmem:[#allocation6 + $0x200] sm:$0xff]
    %v1549 = vld [vmem:[#allocation6 + $0x208] sm:$0xff]
    %v1550 = vld [vmem:[#allocation6 + $0x210] sm:$0xff]
    %v1551 = vld [vmem:[#allocation6 + $0x218] sm:$0xff]
    %v1552 = vld [vmem:[#allocation6 + $0x220] sm:$0xff]
    %v1553 = vld [vmem:[#allocation6 + $0x228] sm:$0xff]
    %v1554 = vld [vmem:[#allocation6 + $0x230] sm:$0xff]
    %v1555 = vld [vmem:[#allocation6 + $0x238] sm:$0xff]
    %v1556 = vld [vmem:[#allocation6 + $0x240] sm:$0xff]
    %v1557 = vld [vmem:[#allocation6 + $0x248] sm:$0xff]
    %v1558 = vld [vmem:[#allocation6 + $0x250] sm:$0xff]
    %v1559 = vld [vmem:[#allocation6 + $0x258] sm:$0xff]
    %v1560 = vld [vmem:[#allocation6 + $0x260] sm:$0xff]
    %v1561 = vld [vmem:[#allocation6 + $0x268] sm:$0xff]
    %v1562 = vld [vmem:[#allocation6 + $0x270] sm:$0xff]
    %v1563 = vld [vmem:[#allocation6 + $0x278] sm:$0xff]
    %v1564 = vld [vmem:[#allocation6 + $0x280] sm:$0xff]
    %v1565 = vld [vmem:[#allocation6 + $0x288] sm:$0xff]
    %v1566 = vld [vmem:[#allocation6 + $0x290] sm:$0xff]
    %v1567 = vld [vmem:[#allocation6 + $0x298] sm:$0xff]
    %v1568 = vld [vmem:[#allocation6 + $0x2a0] sm:$0xff]
    %v1569 = vld [vmem:[#allocation6 + $0x2a8] sm:$0xff]
    %v1570 = vld [vmem:[#allocation6 + $0x2b0] sm:$0xff]
    %v1571 = vld [vmem:[#allocation6 + $0x2b8] sm:$0xff]
    %v1572 = vld [vmem:[#allocation6 + $0x2c0] sm:$0xff]
    %v1573 = vld [vmem:[#allocation6 + $0x2c8] sm:$0xff]
    %v1574 = vld [vmem:[#allocation6 + $0x2d0] sm:$0xff]
    %v1575 = vld [vmem:[#allocation6 + $0x2d8] sm:$0xff]
    %v1576 = vld [vmem:[#allocation6 + $0x2e0] sm:$0xff]
    %v1577 = vld [vmem:[#allocation6 + $0x2e8] sm:$0xff]
    %v1578 = vld [vmem:[#allocation6 + $0x2f0] sm:$0xff]
    %v1579 = vld [vmem:[#allocation6 + $0x2f8] sm:$0xff]
    %v1580 = vld [vmem:[#allocation6 + $0x300] sm:$0xff]
    %v1581 = vld [vmem:[#allocation6 + $0x308] sm:$0xff]
    %v1582 = vld [vmem:[#allocation6 + $0x310] sm:$0xff]
    %v1583 = vld [vmem:[#allocation6 + $0x318] sm:$0xff]
    %v1584 = vld [vmem:[#allocation6 + $0x320] sm:$0xff]
    %v1585 = vld [vmem:[#allocation6 + $0x328] sm:$0xff]
    %v1586 = vld [vmem:[#allocation6 + $0x330] sm:$0xff]
    %v1587 = vld [vmem:[#allocation6 + $0x338] sm:$0xff]
    %v1588 = vld [vmem:[#allocation6 + $0x340] sm:$0xff]
    %v1589 = vld [vmem:[#allocation6 + $0x348] sm:$0xff]
    %v1590 = vld [vmem:[#allocation6 + $0x350] sm:$0xff]
    %v1591 = vld [vmem:[#allocation6 + $0x358] sm:$0xff]
    %v1592 = vld [vmem:[#allocation6 + $0x360] sm:$0xff]
    %v1593 = vld [vmem:[#allocation6 + $0x368] sm:$0xff]
    %v1594 = vld [vmem:[#allocation6 + $0x370] sm:$0xff]
    %v1595 = vld [vmem:[#allocation6 + $0x378] sm:$0xff]
    %v1596 = vld [vmem:[#allocation6 + $0x380] sm:$0xff]
    %v1597 = vld [vmem:[#allocation6 + $0x388] sm:$0xff]
    %v1598 = vld [vmem:[#allocation6 + $0x390] sm:$0xff]
    %v1599 = vld [vmem:[#allocation6 + $0x398] sm:$0xff]
    %v1600 = vld [vmem:[#allocation6 + $0x3a0] sm:$0xff]
    %v1601 = vld [vmem:[#allocation6 + $0x3a8] sm:$0xff]
    %v1602 = vld [vmem:[#allocation6 + $0x3b0] sm:$0xff]
    %v1603 = vld [vmem:[#allocation6 + $0x3b8] sm:$0xff]
    %v1604 = vld [vmem:[#allocation6 + $0x3c0] sm:$0xff]
    %v1605 = vld [vmem:[#allocation6 + $0x3c8] sm:$0xff]
    %v1606 = vld [vmem:[#allocation6 + $0x3d0] sm:$0xff]
    %v1607 = vld [vmem:[#allocation6 + $0x3d8] sm:$0xff]
    %v1608 = vld [vmem:[#allocation6 + $0x3e0] sm:$0xff]
    %v1609 = vld [vmem:[#allocation6 + $0x3e8] sm:$0xff]
    %v1610 = vld [vmem:[#allocation6 + $0x3f0] sm:$0xff]
    %v1611 = vld [vmem:[#allocation6 + $0x3f8] sm:$0xff]
    %v1612 = vld [vmem:[#allocation6 + $0x400] sm:$0xff]
    %v1613 = vld [vmem:[#allocation6 + $0x408] sm:$0xff]
    %v1614 = vld [vmem:[#allocation6 + $0x410] sm:$0xff]
    %v1615 = vld [vmem:[#allocation6 + $0x418] sm:$0xff]
    %v1616 = vld [vmem:[#allocation6 + $0x420] sm:$0xff]
    %v1617 = vld [vmem:[#allocation6 + $0x428] sm:$0xff]
    %v1618 = vld [vmem:[#allocation6 + $0x430] sm:$0xff]
    %v1619 = vld [vmem:[#allocation6 + $0x438] sm:$0xff]
    %v1620 = vld [vmem:[#allocation6 + $0x440] sm:$0xff]
    %v1621 = vld [vmem:[#allocation6 + $0x448] sm:$0xff]
    %v1622 = vld [vmem:[#allocation6 + $0x450] sm:$0xff]
    %v1623 = vld [vmem:[#allocation6 + $0x458] sm:$0xff]
    %v1624 = vld [vmem:[#allocation6 + $0x460] sm:$0xff]
    %v1625 = vld [vmem:[#allocation6 + $0x468] sm:$0xff]
    %v1626 = vld [vmem:[#allocation6 + $0x470] sm:$0xff]
    %v1627 = vld [vmem:[#allocation6 + $0x478] sm:$0xff]
    %v1628 = vld [vmem:[#allocation6 + $0x480] sm:$0xff]
    %v1629 = vld [vmem:[#allocation6 + $0x488] sm:$0xff]
    %v1630 = vld [vmem:[#allocation6 + $0x490] sm:$0xff]
    %v1631 = vld [vmem:[#allocation6 + $0x498] sm:$0xff]
    %v1632 = vld [vmem:[#allocation6 + $0x4a0] sm:$0xff]
    %v1633 = vld [vmem:[#allocation6 + $0x4a8] sm:$0xff]
    %v1634 = vld [vmem:[#allocation6 + $0x4b0] sm:$0xff]
    %v1635 = vld [vmem:[#allocation6 + $0x4b8] sm:$0xff]
    %v1636 = vld [vmem:[#allocation6 + $0x4c0] sm:$0xff]
    %v1637 = vld [vmem:[#allocation6 + $0x4c8] sm:$0xff]
    %v1638 = vld [vmem:[#allocation6 + $0x4d0] sm:$0xff]
    %v1639 = vld [vmem:[#allocation6 + $0x4d8] sm:$0xff]
    %v1640 = vld [vmem:[#allocation6 + $0x4e0] sm:$0xff]
    %v1641 = vld [vmem:[#allocation6 + $0x4e8] sm:$0xff]
    %v1642 = vld [vmem:[#allocation6 + $0x4f0] sm:$0xff]
    %v1643 = vld [vmem:[#allocation6 + $0x4f8] sm:$0xff]
    %v1644 = vld [vmem:[#allocation6 + $0x500] sm:$0xff]
    %v1645 = vld [vmem:[#allocation6 + $0x508] sm:$0xff]
    %v1646 = vld [vmem:[#allocation6 + $0x510] sm:$0xff]
    %v1647 = vld [vmem:[#allocation6 + $0x518] sm:$0xff]
    %v1648 = vld [vmem:[#allocation6 + $0x520] sm:$0xff]
    %v1649 = vld [vmem:[#allocation6 + $0x528] sm:$0xff]
    %v1650 = vld [vmem:[#allocation6 + $0x530] sm:$0xff]
    %v1651 = vld [vmem:[#allocation6 + $0x538] sm:$0xff]
    %v1652 = vld [vmem:[#allocation6 + $0x540] sm:$0xff]
    %v1653 = vld [vmem:[#allocation6 + $0x548] sm:$0xff]
    %v1654 = vld [vmem:[#allocation6 + $0x550] sm:$0xff]
    %v1655 = vld [vmem:[#allocation6 + $0x558] sm:$0xff]
    %v1656 = vld [vmem:[#allocation6 + $0x560] sm:$0xff]
    %v1657 = vld [vmem:[#allocation6 + $0x568] sm:$0xff]
    %v1658 = vld [vmem:[#allocation6 + $0x570] sm:$0xff]
    %v1659 = vld [vmem:[#allocation6 + $0x578] sm:$0xff]
    %v1660 = vld [vmem:[#allocation6 + $0x580] sm:$0xff]
    %v1661 = vld [vmem:[#allocation6 + $0x588] sm:$0xff]
    %v1662 = vld [vmem:[#allocation6 + $0x590] sm:$0xff]
    %v1663 = vld [vmem:[#allocation6 + $0x598] sm:$0xff]
    %v1664 = vld [vmem:[#allocation6 + $0x5a0] sm:$0xff]
    %v1665 = vld [vmem:[#allocation6 + $0x5a8] sm:$0xff]
    %v1666 = vld [vmem:[#allocation6 + $0x5b0] sm:$0xff]
    %v1667 = vld [vmem:[#allocation6 + $0x5b8] sm:$0xff]
    %v1668 = vld [vmem:[#allocation6 + $0x5c0] sm:$0xff]
    %v1669 = vld [vmem:[#allocation6 + $0x5c8] sm:$0xff]
    %v1670 = vld [vmem:[#allocation6 + $0x5d0] sm:$0xff]
    %v1671 = vld [vmem:[#allocation6 + $0x5d8] sm:$0xff]
    %v1672 = vld [vmem:[#allocation6 + $0x5e0] sm:$0xff]
    %v1673 = vld [vmem:[#allocation6 + $0x5e8] sm:$0xff]
    %v1674 = vld [vmem:[#allocation6 + $0x5f0] sm:$0xff]
    %v1675 = vld [vmem:[#allocation6 + $0x5f8] sm:$0xff]
    %1676 = vmatprep.subr.mxu0 %v1575
    %1677 = vmatpush1.msra.mxu0 %v1574
    %1678 = vmatprep.subr.mxu0 %v1569
    %1679 = vmatpush1.msra.mxu0 %v1568
    %1680 = vmatprep.subr.mxu0 %v1563
    %1681 = vmatpush1.msra.mxu0 %v1562
    %1682 = vmatprep.subr.mxu0 %v1557
    %1683 = vmatpush1.msra.mxu0 %v1556
    %1684 = vmatprep.subr.mxu0 %v1551
    %1685 = vmatpush1.msra.mxu0 %v1550
    %1686 = vmatprep.subr.mxu0 %v1545
    %1687 = vmatpush1.msra.mxu0 %v1544
    %1688 = vmatprep.subr.mxu0 %v1539
    %1689 = vmatpush1.msra.mxu0 %v1538
    %1690 = vmatprep.subr.mxu0 %v1533
    %1691 = vmatpush1.msra.mxu0 %v1532
    %1692 = vmatprep.subr.mxu0 %v1527
    %1693 = vmatpush1.msra.mxu0 %v1526
    %1694 = vmatprep.subr.mxu0 %v1521
    %1695 = vmatpush1.msra.mxu0 %v1520
    %1696 = vmatprep.subr.mxu0 %v1515
    %1697 = vmatpush1.msra.mxu0 %v1514
    %1698 = vmatprep.subr.mxu0 %v1509
    %1699 = vmatpush1.msra.mxu0 %v1508
    %1700 = vmatprep.subr.mxu0 %v1503
    %1701 = vmatpush1.msra.mxu0 %v1502
    %1702 = vmatprep.subr.mxu0 %v1497
    %1703 = vmatpush1.msra.mxu0 %v1496
    %1704 = vmatprep.subr.mxu0 %v1491
    %1705 = vmatpush1.msra.mxu0 %v1490
    %1706 = vmatprep.subr.mxu0 %v1485
    %1707 = vmatpush1.msra.mxu0 %v1484
    %1708 = vmatprep.subr.mxu0 %v1671
    %1709 = vmatpush2.msra.mxu0 %v1670
    %1710 = vmatprep.subr.mxu0 %v1665
    %1711 = vmatpush2.msra.mxu0 %v1664
    %1712 = vmatprep.subr.mxu0 %v1659
    %1713 = vmatpush2.msra.mxu0 %v1658
    %1714 = vmatprep.subr.mxu0 %v1653
    %1715 = vmatpush2.msra.mxu0 %v1652
    %1716 = vmatprep.subr.mxu0 %v1647
    %1717 = vmatpush2.msra.mxu0 %v1646
    %1718 = vmatprep.subr.mxu0 %v1641
    %1719 = vmatpush2.msra.mxu0 %v1640
    %1720 = vmatprep.subr.mxu0 %v1635
    %1721 = vmatpush2.msra.mxu0 %v1634
    %1722 = vmatprep.subr.mxu0 %v1629
    %1723 = vmatpush2.msra.mxu0 %v1628
    %1724 = vmatprep.subr.mxu0 %v1623
    %1725 = vmatpush2.msra.mxu0 %v1622
    %1726 = vmatprep.subr.mxu0 %v1617
    %1727 = vmatpush2.msra.mxu0 %v1616
    %1728 = vmatprep.subr.mxu0 %v1611
    %1729 = vmatpush2.msra.mxu0 %v1610
    %1730 = vmatprep.subr.mxu0 %v1605
    %1731 = vmatpush2.msra.mxu0 %v1604
    %1732 = vmatprep.subr.mxu0 %v1599
    %1733 = vmatpush2.msra.mxu0 %v1598
    %1734 = vmatprep.subr.mxu0 %v1593
    %1735 = vmatpush2.msra.mxu0 %v1592
    %1736 = vmatprep.subr.mxu0 %v1587
    %1737 = vmatpush2.msra.mxu0 %v1586
    %1738 = vmatprep.subr.mxu0 %v1581
    %1739 = vmatpush2.msra.mxu0 %v1580
    %1740 = vmatprep.mubr.f32.mxu0 %v1471
    %1741 = vmatmul.mubr.f32.gmra.mxu0 %v1470
    %v1742 = vpop.f32.mrf.mxu0
    %v1743 = vadd.f32 0.0, %v1742
    %v1744 = vpop.f32.mrf.mxu0
    %v1745 = vadd.f32 0.0, %v1744
    %1746 = vdwg.mxu0
    %1747 = vmatprep.subr.mxu0 %v1577
    %1748 = vmatpush1.msra.mxu0 %v1576
    %1749 = vmatprep.subr.mxu0 %v1571
    %1750 = vmatpush1.msra.mxu0 %v1570
    %1751 = vmatprep.subr.mxu0 %v1565
    %1752 = vmatpush1.msra.mxu0 %v1564
    %1753 = vmatprep.subr.mxu0 %v1559
    %1754 = vmatpush1.msra.mxu0 %v1558
    %1755 = vmatprep.subr.mxu0 %v1553
    %1756 = vmatpush1.msra.mxu0 %v1552
    %1757 = vmatprep.subr.mxu0 %v1547
    %1758 = vmatpush1.msra.mxu0 %v1546
    %1759 = vmatprep.subr.mxu0 %v1541
    %1760 = vmatpush1.msra.mxu0 %v1540
    %1761 = vmatprep.subr.mxu0 %v1535
    %1762 = vmatpush1.msra.mxu0 %v1534
    %1763 = vmatprep.subr.mxu0 %v1529
    %1764 = vmatpush1.msra.mxu0 %v1528
    %1765 = vmatprep.subr.mxu0 %v1523
    %1766 = vmatpush1.msra.mxu0 %v1522
    %1767 = vmatprep.subr.mxu0 %v1517
    %1768 = vmatpush1.msra.mxu0 %v1516
    %1769 = vmatprep.subr.mxu0 %v1511
    %1770 = vmatpush1.msra.mxu0 %v1510
    %1771 = vmatprep.subr.mxu0 %v1505
    %1772 = vmatpush1.msra.mxu0 %v1504
    %1773 = vmatprep.subr.mxu0 %v1499
    %1774 = vmatpush1.msra.mxu0 %v1498
    %1775 = vmatprep.subr.mxu0 %v1493
    %1776 = vmatpush1.msra.mxu0 %v1492
    %1777 = vmatprep.subr.mxu0 %v1487
    %1778 = vmatpush1.msra.mxu0 %v1486
    %1779 = vmatprep.subr.mxu0 %v1673
    %1780 = vmatpush2.msra.mxu0 %v1672
    %1781 = vmatprep.subr.mxu0 %v1667
    %1782 = vmatpush2.msra.mxu0 %v1666
    %1783 = vmatprep.subr.mxu0 %v1661
    %1784 = vmatpush2.msra.mxu0 %v1660
    %1785 = vmatprep.subr.mxu0 %v1655
    %1786 = vmatpush2.msra.mxu0 %v1654
    %1787 = vmatprep.subr.mxu0 %v1649
    %1788 = vmatpush2.msra.mxu0 %v1648
    %1789 = vmatprep.subr.mxu0 %v1643
    %1790 = vmatpush2.msra.mxu0 %v1642
    %1791 = vmatprep.subr.mxu0 %v1637
    %1792 = vmatpush2.msra.mxu0 %v1636
    %1793 = vmatprep.subr.mxu0 %v1631
    %1794 = vmatpush2.msra.mxu0 %v1630
    %1795 = vmatprep.subr.mxu0 %v1625
    %1796 = vmatpush2.msra.mxu0 %v1624
    %1797 = vmatprep.subr.mxu0 %v1619
    %1798 = vmatpush2.msra.mxu0 %v1618
    %1799 = vmatprep.subr.mxu0 %v1613
    %1800 = vmatpush2.msra.mxu0 %v1612
    %1801 = vmatprep.subr.mxu0 %v1607
    %1802 = vmatpush2.msra.mxu0 %v1606
    %1803 = vmatprep.subr.mxu0 %v1601
    %1804 = vmatpush2.msra.mxu0 %v1600
    %1805 = vmatprep.subr.mxu0 %v1595
    %1806 = vmatpush2.msra.mxu0 %v1594
    %1807 = vmatprep.subr.mxu0 %v1589
    %1808 = vmatpush2.msra.mxu0 %v1588
    %1809 = vmatprep.subr.mxu0 %v1583
    %1810 = vmatpush2.msra.mxu0 %v1582
    %1811 = vmatprep.mubr.f32.mxu0 %v1471
    %1812 = vmatmul.mubr.f32.gmra.mxu0 %v1470
    %v1813 = vpop.f32.mrf.mxu0
    %v1814 = vadd.f32 0.0, %v1813
    %v1815 = vpop.f32.mrf.mxu0
    %v1816 = vadd.f32 0.0, %v1815
    %1817 = vdwg.mxu0
    %1818 = vmatprep.subr.mxu0 %v1579
    %1819 = vmatpush1.msra.mxu0 %v1578
    %1820 = vmatprep.subr.mxu0 %v1573
    %1821 = vmatpush1.msra.mxu0 %v1572
    %1822 = vmatprep.subr.mxu0 %v1567
    %1823 = vmatpush1.msra.mxu0 %v1566
    %1824 = vmatprep.subr.mxu0 %v1561
    %1825 = vmatpush1.msra.mxu0 %v1560
    %1826 = vmatprep.subr.mxu0 %v1555
    %1827 = vmatpush1.msra.mxu0 %v1554
    %1828 = vmatprep.subr.mxu0 %v1549
    %1829 = vmatpush1.msra.mxu0 %v1548
    %1830 = vmatprep.subr.mxu0 %v1543
    %1831 = vmatpush1.msra.mxu0 %v1542
    %1832 = vmatprep.subr.mxu0 %v1537
    %1833 = vmatpush1.msra.mxu0 %v1536
    %1834 = vmatprep.subr.mxu0 %v1531
    %1835 = vmatpush1.msra.mxu0 %v1530
    %1836 = vmatprep.subr.mxu0 %v1525
    %1837 = vmatpush1.msra.mxu0 %v1524
    %1838 = vmatprep.subr.mxu0 %v1519
    %1839 = vmatpush1.msra.mxu0 %v1518
    %1840 = vmatprep.subr.mxu0 %v1513
    %1841 = vmatpush1.msra.mxu0 %v1512
    %1842 = vmatprep.subr.mxu0 %v1507
    %1843 = vmatpush1.msra.mxu0 %v1506
    %1844 = vmatprep.subr.mxu0 %v1501
    %1845 = vmatpush1.msra.mxu0 %v1500
    %1846 = vmatprep.subr.mxu0 %v1495
    %1847 = vmatpush1.msra.mxu0 %v1494
    %1848 = vmatprep.subr.mxu0 %v1489
    %1849 = vmatpush1.msra.mxu0 %v1488
    %1850 = vmatprep.subr.mxu0 %v1675
    %1851 = vmatpush2.msra.mxu0 %v1674
    %1852 = vmatprep.subr.mxu0 %v1669
    %1853 = vmatpush2.msra.mxu0 %v1668
    %1854 = vmatprep.subr.mxu0 %v1663
    %1855 = vmatpush2.msra.mxu0 %v1662
    %1856 = vmatprep.subr.mxu0 %v1657
    %1857 = vmatpush2.msra.mxu0 %v1656
    %1858 = vmatprep.subr.mxu0 %v1651
    %1859 = vmatpush2.msra.mxu0 %v1650
    %1860 = vmatprep.subr.mxu0 %v1645
    %1861 = vmatpush2.msra.mxu0 %v1644
    %1862 = vmatprep.subr.mxu0 %v1639
    %1863 = vmatpush2.msra.mxu0 %v1638
    %1864 = vmatprep.subr.mxu0 %v1633
    %1865 = vmatpush2.msra.mxu0 %v1632
    %1866 = vmatprep.subr.mxu0 %v1627
    %1867 = vmatpush2.msra.mxu0 %v1626
    %1868 = vmatprep.subr.mxu0 %v1621
    %1869 = vmatpush2.msra.mxu0 %v1620
    %1870 = vmatprep.subr.mxu0 %v1615
    %1871 = vmatpush2.msra.mxu0 %v1614
    %1872 = vmatprep.subr.mxu0 %v1609
    %1873 = vmatpush2.msra.mxu0 %v1608
    %1874 = vmatprep.subr.mxu0 %v1603
    %1875 = vmatpush2.msra.mxu0 %v1602
    %1876 = vmatprep.subr.mxu0 %v1597
    %1877 = vmatpush2.msra.mxu0 %v1596
    %1878 = vmatprep.subr.mxu0 %v1591
    %1879 = vmatpush2.msra.mxu0 %v1590
    %1880 = vmatprep.subr.mxu0 %v1585
    %1881 = vmatpush2.msra.mxu0 %v1584
    %1882 = vmatprep.mubr.f32.mxu0 %v1471
    %1883 = vmatmul.mubr.f32.gmra.mxu0 %v1470
    %v1884 = vpop.f32.mrf.mxu0
    %v1885 = vadd.f32 0.0, %v1884
    %v1886 = vpop.f32.mrf.mxu0
    %v1887 = vadd.f32 0.0, %v1886
    %1888 = vdwg.mxu0
    %v1889 = vadd.f32 %v1478, %v1743
    %v1890 = vadd.f32 %v1479, %v1745
    %v1891 = vxor.u32 %v1889, 2147483648
    %v1892 = vxor.u32 %v1890, 2147483648
    %v1893 = vmul.f32 %v1891, 1.442695
    %v1894 = vpow.pop %v1893
    %v1895 = vmul.f32 %v1892, 1.442695
    %v1896 = vpow.pop %v1895
    %v1897 = vadd.f32 %v1894, 1.0
    %v1898 = vadd.f32 %v1896, 1.0
    %v1899 = vrcp.pop %v1897
    %v1900 = vmul.f32 1.0, %v1899
    %v1901 = vrcp.pop %v1898
    %v1902 = vmul.f32 1.0, %v1901
    %v1903 = vadd.f32 %v1480, %v1814
    %v1904 = vadd.f32 %v1481, %v1816
    %v1905 = vxor.u32 %v1903, 2147483648
    %v1906 = vxor.u32 %v1904, 2147483648
    %v1907 = vmul.f32 %v1905, 1.442695
    %v1908 = vpow.pop %v1907
    %v1909 = vmul.f32 %v1906, 1.442695
    %v1910 = vpow.pop %v1909
    %v1911 = vadd.f32 %v1908, 1.0
    %v1912 = vadd.f32 %v1910, 1.0
    %v1913 = vrcp.pop %v1911
    %v1914 = vmul.f32 1.0, %v1913
    %v1915 = vrcp.pop %v1912
    %v1916 = vmul.f32 1.0, %v1915
    %v1917 = vadd.f32 %v1885, %v82
    %v1918 = vadd.f32 %v1887, %v86
    %v1919 = vmul.f32 %v1900, %v1917
    %v1920 = vmul.f32 %v1902, %v1918
    %v1921 = vadd.f32 %v1482, %v1919
    %v1922 = vadd.f32 %v1483, %v1920
    %v1923 = vtanh.pop %v1921
    %v1924 = vtanh.pop %v1922
    %v1925 = vsub.f32 %v1470, %v1923
    %v1926 = vsub.f32 %v1471, %v1924
    %v1927 = vmul.f32 %v1914, %v1925
    %v1928 = vmul.f32 %v1916, %v1926
    %v1929 = vadd.f32 %v1923, %v1927
    %v1930 = vadd.f32 %v1924, %v1928
    %s1931 = smul.u32 3, 2
    %s1932 = smul.addr %s1931, 8
    %s1933 = scalar_lea.vmem [#allocation2], %s1932
    %1934 = vst [vmem:[%s1933] sm:$0xff] %v1929
    %1935 = vst [vmem:[%s1933 + $0x8] sm:$0xff] %v1930
    %s1936 = scalar_lea.vmem [#allocation3], 192
    %v1937 = vld [vmem:[%s1936] sm:$0xff]
    %v1938 = vld [vmem:[%s1936 + $0x8] sm:$0xff]
    %v1939 = vld [vmem:[%s1936 + $0x10] sm:$0xff]
    %v1940 = vld [vmem:[%s1936 + $0x18] sm:$0xff]
    %v1941 = vld [vmem:[%s1936 + $0x20] sm:$0xff]
    %v1942 = vld [vmem:[%s1936 + $0x28] sm:$0xff]
    %v1943 = vld [vmem:[#allocation6] sm:$0xff]
    %v1944 = vld [vmem:[#allocation6 + $0x8] sm:$0xff]
    %v1945 = vld [vmem:[#allocation6 + $0x10] sm:$0xff]
    %v1946 = vld [vmem:[#allocation6 + $0x18] sm:$0xff]
    %v1947 = vld [vmem:[#allocation6 + $0x20] sm:$0xff]
    %v1948 = vld [vmem:[#allocation6 + $0x28] sm:$0xff]
    %v1949 = vld [vmem:[#allocation6 + $0x30] sm:$0xff]
    %v1950 = vld [vmem:[#allocation6 + $0x38] sm:$0xff]
    %v1951 = vld [vmem:[#allocation6 + $0x40] sm:$0xff]
    %v1952 = vld [vmem:[#allocation6 + $0x48] sm:$0xff]
    %v1953 = vld [vmem:[#allocation6 + $0x50] sm:$0xff]
    %v1954 = vld [vmem:[#allocation6 + $0x58] sm:$0xff]
    %v1955 = vld [vmem:[#allocation6 + $0x60] sm:$0xff]
    %v1956 = vld [vmem:[#allocation6 + $0x68] sm:$0xff]
    %v1957 = vld [vmem:[#allocation6 + $0x70] sm:$0xff]
    %v1958 = vld [vmem:[#allocation6 + $0x78] sm:$0xff]
    %v1959 = vld [vmem:[#allocation6 + $0x80] sm:$0xff]
    %v1960 = vld [vmem:[#allocation6 + $0x88] sm:$0xff]
    %v1961 = vld [vmem:[#allocation6 + $0x90] sm:$0xff]
    %v1962 = vld [vmem:[#allocation6 + $0x98] sm:$0xff]
    %v1963 = vld [vmem:[#allocation6 + $0xa0] sm:$0xff]
    %v1964 = vld [vmem:[#allocation6 + $0xa8] sm:$0xff]
    %v1965 = vld [vmem:[#allocation6 + $0xb0] sm:$0xff]
    %v1966 = vld [vmem:[#allocation6 + $0xb8] sm:$0xff]
    %v1967 = vld [vmem:[#allocation6 + $0xc0] sm:$0xff]
    %v1968 = vld [vmem:[#allocation6 + $0xc8] sm:$0xff]
    %v1969 = vld [vmem:[#allocation6 + $0xd0] sm:$0xff]
    %v1970 = vld [vmem:[#allocation6 + $0xd8] sm:$0xff]
    %v1971 = vld [vmem:[#allocation6 + $0xe0] sm:$0xff]
    %v1972 = vld [vmem:[#allocation6 + $0xe8] sm:$0xff]
    %v1973 = vld [vmem:[#allocation6 + $0xf0] sm:$0xff]
    %v1974 = vld [vmem:[#allocation6 + $0xf8] sm:$0xff]
    %v1975 = vld [vmem:[#allocation6 + $0x100] sm:$0xff]
    %v1976 = vld [vmem:[#allocation6 + $0x108] sm:$0xff]
    %v1977 = vld [vmem:[#allocation6 + $0x110] sm:$0xff]
    %v1978 = vld [vmem:[#allocation6 + $0x118] sm:$0xff]
    %v1979 = vld [vmem:[#allocation6 + $0x120] sm:$0xff]
    %v1980 = vld [vmem:[#allocation6 + $0x128] sm:$0xff]
    %v1981 = vld [vmem:[#allocation6 + $0x130] sm:$0xff]
    %v1982 = vld [vmem:[#allocation6 + $0x138] sm:$0xff]
    %v1983 = vld [vmem:[#allocation6 + $0x140] sm:$0xff]
    %v1984 = vld [vmem:[#allocation6 + $0x148] sm:$0xff]
    %v1985 = vld [vmem:[#allocation6 + $0x150] sm:$0xff]
    %v1986 = vld [vmem:[#allocation6 + $0x158] sm:$0xff]
    %v1987 = vld [vmem:[#allocation6 + $0x160] sm:$0xff]
    %v1988 = vld [vmem:[#allocation6 + $0x168] sm:$0xff]
    %v1989 = vld [vmem:[#allocation6 + $0x170] sm:$0xff]
    %v1990 = vld [vmem:[#allocation6 + $0x178] sm:$0xff]
    %v1991 = vld [vmem:[#allocation6 + $0x180] sm:$0xff]
    %v1992 = vld [vmem:[#allocation6 + $0x188] sm:$0xff]
    %v1993 = vld [vmem:[#allocation6 + $0x190] sm:$0xff]
    %v1994 = vld [vmem:[#allocation6 + $0x198] sm:$0xff]
    %v1995 = vld [vmem:[#allocation6 + $0x1a0] sm:$0xff]
    %v1996 = vld [vmem:[#allocation6 + $0x1a8] sm:$0xff]
    %v1997 = vld [vmem:[#allocation6 + $0x1b0] sm:$0xff]
    %v1998 = vld [vmem:[#allocation6 + $0x1b8] sm:$0xff]
    %v1999 = vld [vmem:[#allocation6 + $0x1c0] sm:$0xff]
    %v2000 = vld [vmem:[#allocation6 + $0x1c8] sm:$0xff]
    %v2001 = vld [vmem:[#allocation6 + $0x1d0] sm:$0xff]
    %v2002 = vld [vmem:[#allocation6 + $0x1d8] sm:$0xff]
    %v2003 = vld [vmem:[#allocation6 + $0x1e0] sm:$0xff]
    %v2004 = vld [vmem:[#allocation6 + $0x1e8] sm:$0xff]
    %v2005 = vld [vmem:[#allocation6 + $0x1f0] sm:$0xff]
    %v2006 = vld [vmem:[#allocation6 + $0x1f8] sm:$0xff]
    %v2007 = vld [vmem:[#allocation6 + $0x200] sm:$0xff]
    %v2008 = vld [vmem:[#allocation6 + $0x208] sm:$0xff]
    %v2009 = vld [vmem:[#allocation6 + $0x210] sm:$0xff]
    %v2010 = vld [vmem:[#allocation6 + $0x218] sm:$0xff]
    %v2011 = vld [vmem:[#allocation6 + $0x220] sm:$0xff]
    %v2012 = vld [vmem:[#allocation6 + $0x228] sm:$0xff]
    %v2013 = vld [vmem:[#allocation6 + $0x230] sm:$0xff]
    %v2014 = vld [vmem:[#allocation6 + $0x238] sm:$0xff]
    %v2015 = vld [vmem:[#allocation6 + $0x240] sm:$0xff]
    %v2016 = vld [vmem:[#allocation6 + $0x248] sm:$0xff]
    %v2017 = vld [vmem:[#allocation6 + $0x250] sm:$0xff]
    %v2018 = vld [vmem:[#allocation6 + $0x258] sm:$0xff]
    %v2019 = vld [vmem:[#allocation6 + $0x260] sm:$0xff]
    %v2020 = vld [vmem:[#allocation6 + $0x268] sm:$0xff]
    %v2021 = vld [vmem:[#allocation6 + $0x270] sm:$0xff]
    %v2022 = vld [vmem:[#allocation6 + $0x278] sm:$0xff]
    %v2023 = vld [vmem:[#allocation6 + $0x280] sm:$0xff]
    %v2024 = vld [vmem:[#allocation6 + $0x288] sm:$0xff]
    %v2025 = vld [vmem:[#allocation6 + $0x290] sm:$0xff]
    %v2026 = vld [vmem:[#allocation6 + $0x298] sm:$0xff]
    %v2027 = vld [vmem:[#allocation6 + $0x2a0] sm:$0xff]
    %v2028 = vld [vmem:[#allocation6 + $0x2a8] sm:$0xff]
    %v2029 = vld [vmem:[#allocation6 + $0x2b0] sm:$0xff]
    %v2030 = vld [vmem:[#allocation6 + $0x2b8] sm:$0xff]
    %v2031 = vld [vmem:[#allocation6 + $0x2c0] sm:$0xff]
    %v2032 = vld [vmem:[#allocation6 + $0x2c8] sm:$0xff]
    %v2033 = vld [vmem:[#allocation6 + $0x2d0] sm:$0xff]
    %v2034 = vld [vmem:[#allocation6 + $0x2d8] sm:$0xff]
    %v2035 = vld [vmem:[#allocation6 + $0x2e0] sm:$0xff]
    %v2036 = vld [vmem:[#allocation6 + $0x2e8] sm:$0xff]
    %v2037 = vld [vmem:[#allocation6 + $0x2f0] sm:$0xff]
    %v2038 = vld [vmem:[#allocation6 + $0x2f8] sm:$0xff]
    %v2039 = vld [vmem:[#allocation6 + $0x300] sm:$0xff]
    %v2040 = vld [vmem:[#allocation6 + $0x308] sm:$0xff]
    %v2041 = vld [vmem:[#allocation6 + $0x310] sm:$0xff]
    %v2042 = vld [vmem:[#allocation6 + $0x318] sm:$0xff]
    %v2043 = vld [vmem:[#allocation6 + $0x320] sm:$0xff]
    %v2044 = vld [vmem:[#allocation6 + $0x328] sm:$0xff]
    %v2045 = vld [vmem:[#allocation6 + $0x330] sm:$0xff]
    %v2046 = vld [vmem:[#allocation6 + $0x338] sm:$0xff]
    %v2047 = vld [vmem:[#allocation6 + $0x340] sm:$0xff]
    %v2048 = vld [vmem:[#allocation6 + $0x348] sm:$0xff]
    %v2049 = vld [vmem:[#allocation6 + $0x350] sm:$0xff]
    %v2050 = vld [vmem:[#allocation6 + $0x358] sm:$0xff]
    %v2051 = vld [vmem:[#allocation6 + $0x360] sm:$0xff]
    %v2052 = vld [vmem:[#allocation6 + $0x368] sm:$0xff]
    %v2053 = vld [vmem:[#allocation6 + $0x370] sm:$0xff]
    %v2054 = vld [vmem:[#allocation6 + $0x378] sm:$0xff]
    %v2055 = vld [vmem:[#allocation6 + $0x380] sm:$0xff]
    %v2056 = vld [vmem:[#allocation6 + $0x388] sm:$0xff]
    %v2057 = vld [vmem:[#allocation6 + $0x390] sm:$0xff]
    %v2058 = vld [vmem:[#allocation6 + $0x398] sm:$0xff]
    %v2059 = vld [vmem:[#allocation6 + $0x3a0] sm:$0xff]
    %v2060 = vld [vmem:[#allocation6 + $0x3a8] sm:$0xff]
    %v2061 = vld [vmem:[#allocation6 + $0x3b0] sm:$0xff]
    %v2062 = vld [vmem:[#allocation6 + $0x3b8] sm:$0xff]
    %v2063 = vld [vmem:[#allocation6 + $0x3c0] sm:$0xff]
    %v2064 = vld [vmem:[#allocation6 + $0x3c8] sm:$0xff]
    %v2065 = vld [vmem:[#allocation6 + $0x3d0] sm:$0xff]
    %v2066 = vld [vmem:[#allocation6 + $0x3d8] sm:$0xff]
    %v2067 = vld [vmem:[#allocation6 + $0x3e0] sm:$0xff]
    %v2068 = vld [vmem:[#allocation6 + $0x3e8] sm:$0xff]
    %v2069 = vld [vmem:[#allocation6 + $0x3f0] sm:$0xff]
    %v2070 = vld [vmem:[#allocation6 + $0x3f8] sm:$0xff]
    %v2071 = vld [vmem:[#allocation6 + $0x400] sm:$0xff]
    %v2072 = vld [vmem:[#allocation6 + $0x408] sm:$0xff]
    %v2073 = vld [vmem:[#allocation6 + $0x410] sm:$0xff]
    %v2074 = vld [vmem:[#allocation6 + $0x418] sm:$0xff]
    %v2075 = vld [vmem:[#allocation6 + $0x420] sm:$0xff]
    %v2076 = vld [vmem:[#allocation6 + $0x428] sm:$0xff]
    %v2077 = vld [vmem:[#allocation6 + $0x430] sm:$0xff]
    %v2078 = vld [vmem:[#allocation6 + $0x438] sm:$0xff]
    %v2079 = vld [vmem:[#allocation6 + $0x440] sm:$0xff]
    %v2080 = vld [vmem:[#allocation6 + $0x448] sm:$0xff]
    %v2081 = vld [vmem:[#allocation6 + $0x450] sm:$0xff]
    %v2082 = vld [vmem:[#allocation6 + $0x458] sm:$0xff]
    %v2083 = vld [vmem:[#allocation6 + $0x460] sm:$0xff]
    %v2084 = vld [vmem:[#allocation6 + $0x468] sm:$0xff]
    %v2085 = vld [vmem:[#allocation6 + $0x470] sm:$0xff]
    %v2086 = vld [vmem:[#allocation6 + $0x478] sm:$0xff]
    %v2087 = vld [vmem:[#allocation6 + $0x480] sm:$0xff]
    %v2088 = vld [vmem:[#allocation6 + $0x488] sm:$0xff]
    %v2089 = vld [vmem:[#allocation6 + $0x490] sm:$0xff]
    %v2090 = vld [vmem:[#allocation6 + $0x498] sm:$0xff]
    %v2091 = vld [vmem:[#allocation6 + $0x4a0] sm:$0xff]
    %v2092 = vld [vmem:[#allocation6 + $0x4a8] sm:$0xff]
    %v2093 = vld [vmem:[#allocation6 + $0x4b0] sm:$0xff]
    %v2094 = vld [vmem:[#allocation6 + $0x4b8] sm:$0xff]
    %v2095 = vld [vmem:[#allocation6 + $0x4c0] sm:$0xff]
    %v2096 = vld [vmem:[#allocation6 + $0x4c8] sm:$0xff]
    %v2097 = vld [vmem:[#allocation6 + $0x4d0] sm:$0xff]
    %v2098 = vld [vmem:[#allocation6 + $0x4d8] sm:$0xff]
    %v2099 = vld [vmem:[#allocation6 + $0x4e0] sm:$0xff]
    %v2100 = vld [vmem:[#allocation6 + $0x4e8] sm:$0xff]
    %v2101 = vld [vmem:[#allocation6 + $0x4f0] sm:$0xff]
    %v2102 = vld [vmem:[#allocation6 + $0x4f8] sm:$0xff]
    %v2103 = vld [vmem:[#allocation6 + $0x500] sm:$0xff]
    %v2104 = vld [vmem:[#allocation6 + $0x508] sm:$0xff]
    %v2105 = vld [vmem:[#allocation6 + $0x510] sm:$0xff]
    %v2106 = vld [vmem:[#allocation6 + $0x518] sm:$0xff]
    %v2107 = vld [vmem:[#allocation6 + $0x520] sm:$0xff]
    %v2108 = vld [vmem:[#allocation6 + $0x528] sm:$0xff]
    %v2109 = vld [vmem:[#allocation6 + $0x530] sm:$0xff]
    %v2110 = vld [vmem:[#allocation6 + $0x538] sm:$0xff]
    %v2111 = vld [vmem:[#allocation6 + $0x540] sm:$0xff]
    %v2112 = vld [vmem:[#allocation6 + $0x548] sm:$0xff]
    %v2113 = vld [vmem:[#allocation6 + $0x550] sm:$0xff]
    %v2114 = vld [vmem:[#allocation6 + $0x558] sm:$0xff]
    %v2115 = vld [vmem:[#allocation6 + $0x560] sm:$0xff]
    %v2116 = vld [vmem:[#allocation6 + $0x568] sm:$0xff]
    %v2117 = vld [vmem:[#allocation6 + $0x570] sm:$0xff]
    %v2118 = vld [vmem:[#allocation6 + $0x578] sm:$0xff]
    %v2119 = vld [vmem:[#allocation6 + $0x580] sm:$0xff]
    %v2120 = vld [vmem:[#allocation6 + $0x588] sm:$0xff]
    %v2121 = vld [vmem:[#allocation6 + $0x590] sm:$0xff]
    %v2122 = vld [vmem:[#allocation6 + $0x598] sm:$0xff]
    %v2123 = vld [vmem:[#allocation6 + $0x5a0] sm:$0xff]
    %v2124 = vld [vmem:[#allocation6 + $0x5a8] sm:$0xff]
    %v2125 = vld [vmem:[#allocation6 + $0x5b0] sm:$0xff]
    %v2126 = vld [vmem:[#allocation6 + $0x5b8] sm:$0xff]
    %v2127 = vld [vmem:[#allocation6 + $0x5c0] sm:$0xff]
    %v2128 = vld [vmem:[#allocation6 + $0x5c8] sm:$0xff]
    %v2129 = vld [vmem:[#allocation6 + $0x5d0] sm:$0xff]
    %v2130 = vld [vmem:[#allocation6 + $0x5d8] sm:$0xff]
    %v2131 = vld [vmem:[#allocation6 + $0x5e0] sm:$0xff]
    %v2132 = vld [vmem:[#allocation6 + $0x5e8] sm:$0xff]
    %v2133 = vld [vmem:[#allocation6 + $0x5f0] sm:$0xff]
    %v2134 = vld [vmem:[#allocation6 + $0x5f8] sm:$0xff]
    %2135 = vmatprep.subr.mxu0 %v2034
    %2136 = vmatpush1.msra.mxu0 %v2033
    %2137 = vmatprep.subr.mxu0 %v2028
    %2138 = vmatpush1.msra.mxu0 %v2027
    %2139 = vmatprep.subr.mxu0 %v2022
    %2140 = vmatpush1.msra.mxu0 %v2021
    %2141 = vmatprep.subr.mxu0 %v2016
    %2142 = vmatpush1.msra.mxu0 %v2015
    %2143 = vmatprep.subr.mxu0 %v2010
    %2144 = vmatpush1.msra.mxu0 %v2009
    %2145 = vmatprep.subr.mxu0 %v2004
    %2146 = vmatpush1.msra.mxu0 %v2003
    %2147 = vmatprep.subr.mxu0 %v1998
    %2148 = vmatpush1.msra.mxu0 %v1997
    %2149 = vmatprep.subr.mxu0 %v1992
    %2150 = vmatpush1.msra.mxu0 %v1991
    %2151 = vmatprep.subr.mxu0 %v1986
    %2152 = vmatpush1.msra.mxu0 %v1985
    %2153 = vmatprep.subr.mxu0 %v1980
    %2154 = vmatpush1.msra.mxu0 %v1979
    %2155 = vmatprep.subr.mxu0 %v1974
    %2156 = vmatpush1.msra.mxu0 %v1973
    %2157 = vmatprep.subr.mxu0 %v1968
    %2158 = vmatpush1.msra.mxu0 %v1967
    %2159 = vmatprep.subr.mxu0 %v1962
    %2160 = vmatpush1.msra.mxu0 %v1961
    %2161 = vmatprep.subr.mxu0 %v1956
    %2162 = vmatpush1.msra.mxu0 %v1955
    %2163 = vmatprep.subr.mxu0 %v1950
    %2164 = vmatpush1.msra.mxu0 %v1949
    %2165 = vmatprep.subr.mxu0 %v1944
    %2166 = vmatpush1.msra.mxu0 %v1943
    %2167 = vmatprep.subr.mxu0 %v2130
    %2168 = vmatpush2.msra.mxu0 %v2129
    %2169 = vmatprep.subr.mxu0 %v2124
    %2170 = vmatpush2.msra.mxu0 %v2123
    %2171 = vmatprep.subr.mxu0 %v2118
    %2172 = vmatpush2.msra.mxu0 %v2117
    %2173 = vmatprep.subr.mxu0 %v2112
    %2174 = vmatpush2.msra.mxu0 %v2111
    %2175 = vmatprep.subr.mxu0 %v2106
    %2176 = vmatpush2.msra.mxu0 %v2105
    %2177 = vmatprep.subr.mxu0 %v2100
    %2178 = vmatpush2.msra.mxu0 %v2099
    %2179 = vmatprep.subr.mxu0 %v2094
    %2180 = vmatpush2.msra.mxu0 %v2093
    %2181 = vmatprep.subr.mxu0 %v2088
    %2182 = vmatpush2.msra.mxu0 %v2087
    %2183 = vmatprep.subr.mxu0 %v2082
    %2184 = vmatpush2.msra.mxu0 %v2081
    %2185 = vmatprep.subr.mxu0 %v2076
    %2186 = vmatpush2.msra.mxu0 %v2075
    %2187 = vmatprep.subr.mxu0 %v2070
    %2188 = vmatpush2.msra.mxu0 %v2069
    %2189 = vmatprep.subr.mxu0 %v2064
    %2190 = vmatpush2.msra.mxu0 %v2063
    %2191 = vmatprep.subr.mxu0 %v2058
    %2192 = vmatpush2.msra.mxu0 %v2057
    %2193 = vmatprep.subr.mxu0 %v2052
    %2194 = vmatpush2.msra.mxu0 %v2051
    %2195 = vmatprep.subr.mxu0 %v2046
    %2196 = vmatpush2.msra.mxu0 %v2045
    %2197 = vmatprep.subr.mxu0 %v2040
    %2198 = vmatpush2.msra.mxu0 %v2039
    %2199 = vmatprep.mubr.f32.mxu0 %v1930
    %2200 = vmatmul.mubr.f32.gmra.mxu0 %v1929
    %v2201 = vpop.f32.mrf.mxu0
    %v2202 = vadd.f32 0.0, %v2201
    %v2203 = vpop.f32.mrf.mxu0
    %v2204 = vadd.f32 0.0, %v2203
    %2205 = vdwg.mxu0
    %2206 = vmatprep.subr.mxu0 %v2036
    %2207 = vmatpush1.msra.mxu0 %v2035
    %2208 = vmatprep.subr.mxu0 %v2030
    %2209 = vmatpush1.msra.mxu0 %v2029
    %2210 = vmatprep.subr.mxu0 %v2024
    %2211 = vmatpush1.msra.mxu0 %v2023
    %2212 = vmatprep.subr.mxu0 %v2018
    %2213 = vmatpush1.msra.mxu0 %v2017
    %2214 = vmatprep.subr.mxu0 %v2012
    %2215 = vmatpush1.msra.mxu0 %v2011
    %2216 = vmatprep.subr.mxu0 %v2006
    %2217 = vmatpush1.msra.mxu0 %v2005
    %2218 = vmatprep.subr.mxu0 %v2000
    %2219 = vmatpush1.msra.mxu0 %v1999
    %2220 = vmatprep.subr.mxu0 %v1994
    %2221 = vmatpush1.msra.mxu0 %v1993
    %2222 = vmatprep.subr.mxu0 %v1988
    %2223 = vmatpush1.msra.mxu0 %v1987
    %2224 = vmatprep.subr.mxu0 %v1982
    %2225 = vmatpush1.msra.mxu0 %v1981
    %2226 = vmatprep.subr.mxu0 %v1976
    %2227 = vmatpush1.msra.mxu0 %v1975
    %2228 = vmatprep.subr.mxu0 %v1970
    %2229 = vmatpush1.msra.mxu0 %v1969
    %2230 = vmatprep.subr.mxu0 %v1964
    %2231 = vmatpush1.msra.mxu0 %v1963
    %2232 = vmatprep.subr.mxu0 %v1958
    %2233 = vmatpush1.msra.mxu0 %v1957
    %2234 = vmatprep.subr.mxu0 %v1952
    %2235 = vmatpush1.msra.mxu0 %v1951
    %2236 = vmatprep.subr.mxu0 %v1946
    %2237 = vmatpush1.msra.mxu0 %v1945
    %2238 = vmatprep.subr.mxu0 %v2132
    %2239 = vmatpush2.msra.mxu0 %v2131
    %2240 = vmatprep.subr.mxu0 %v2126
    %2241 = vmatpush2.msra.mxu0 %v2125
    %2242 = vmatprep.subr.mxu0 %v2120
    %2243 = vmatpush2.msra.mxu0 %v2119
    %2244 = vmatprep.subr.mxu0 %v2114
    %2245 = vmatpush2.msra.mxu0 %v2113
    %2246 = vmatprep.subr.mxu0 %v2108
    %2247 = vmatpush2.msra.mxu0 %v2107
    %2248 = vmatprep.subr.mxu0 %v2102
    %2249 = vmatpush2.msra.mxu0 %v2101
    %2250 = vmatprep.subr.mxu0 %v2096
    %2251 = vmatpush2.msra.mxu0 %v2095
    %2252 = vmatprep.subr.mxu0 %v2090
    %2253 = vmatpush2.msra.mxu0 %v2089
    %2254 = vmatprep.subr.mxu0 %v2084
    %2255 = vmatpush2.msra.mxu0 %v2083
    %2256 = vmatprep.subr.mxu0 %v2078
    %2257 = vmatpush2.msra.mxu0 %v2077
    %2258 = vmatprep.subr.mxu0 %v2072
    %2259 = vmatpush2.msra.mxu0 %v2071
    %2260 = vmatprep.subr.mxu0 %v2066
    %2261 = vmatpush2.msra.mxu0 %v2065
    %2262 = vmatprep.subr.mxu0 %v2060
    %2263 = vmatpush2.msra.mxu0 %v2059
    %2264 = vmatprep.subr.mxu0 %v2054
    %2265 = vmatpush2.msra.mxu0 %v2053
    %2266 = vmatprep.subr.mxu0 %v2048
    %2267 = vmatpush2.msra.mxu0 %v2047
    %2268 = vmatprep.subr.mxu0 %v2042
    %2269 = vmatpush2.msra.mxu0 %v2041
    %2270 = vmatprep.mubr.f32.mxu0 %v1930
    %2271 = vmatmul.mubr.f32.gmra.mxu0 %v1929
    %v2272 = vpop.f32.mrf.mxu0
    %v2273 = vadd.f32 0.0, %v2272
    %v2274 = vpop.f32.mrf.mxu0
    %v2275 = vadd.f32 0.0, %v2274
    %2276 = vdwg.mxu0
    %2277 = vmatprep.subr.mxu0 %v2038
    %2278 = vmatpush1.msra.mxu0 %v2037
    %2279 = vmatprep.subr.mxu0 %v2032
    %2280 = vmatpush1.msra.mxu0 %v2031
    %2281 = vmatprep.subr.mxu0 %v2026
    %2282 = vmatpush1.msra.mxu0 %v2025
    %2283 = vmatprep.subr.mxu0 %v2020
    %2284 = vmatpush1.msra.mxu0 %v2019
    %2285 = vmatprep.subr.mxu0 %v2014
    %2286 = vmatpush1.msra.mxu0 %v2013
    %2287 = vmatprep.subr.mxu0 %v2008
    %2288 = vmatpush1.msra.mxu0 %v2007
    %2289 = vmatprep.subr.mxu0 %v2002
    %2290 = vmatpush1.msra.mxu0 %v2001
    %2291 = vmatprep.subr.mxu0 %v1996
    %2292 = vmatpush1.msra.mxu0 %v1995
    %2293 = vmatprep.subr.mxu0 %v1990
    %2294 = vmatpush1.msra.mxu0 %v1989
    %2295 = vmatprep.subr.mxu0 %v1984
    %2296 = vmatpush1.msra.mxu0 %v1983
    %2297 = vmatprep.subr.mxu0 %v1978
    %2298 = vmatpush1.msra.mxu0 %v1977
    %2299 = vmatprep.subr.mxu0 %v1972
    %2300 = vmatpush1.msra.mxu0 %v1971
    %2301 = vmatprep.subr.mxu0 %v1966
    %2302 = vmatpush1.msra.mxu0 %v1965
    %2303 = vmatprep.subr.mxu0 %v1960
    %2304 = vmatpush1.msra.mxu0 %v1959
    %2305 = vmatprep.subr.mxu0 %v1954
    %2306 = vmatpush1.msra.mxu0 %v1953
    %2307 = vmatprep.subr.mxu0 %v1948
    %2308 = vmatpush1.msra.mxu0 %v1947
    %2309 = vmatprep.subr.mxu0 %v2134
    %2310 = vmatpush2.msra.mxu0 %v2133
    %2311 = vmatprep.subr.mxu0 %v2128
    %2312 = vmatpush2.msra.mxu0 %v2127
    %2313 = vmatprep.subr.mxu0 %v2122
    %2314 = vmatpush2.msra.mxu0 %v2121
    %2315 = vmatprep.subr.mxu0 %v2116
    %2316 = vmatpush2.msra.mxu0 %v2115
    %2317 = vmatprep.subr.mxu0 %v2110
    %2318 = vmatpush2.msra.mxu0 %v2109
    %2319 = vmatprep.subr.mxu0 %v2104
    %2320 = vmatpush2.msra.mxu0 %v2103
    %2321 = vmatprep.subr.mxu0 %v2098
    %2322 = vmatpush2.msra.mxu0 %v2097
    %2323 = vmatprep.subr.mxu0 %v2092
    %2324 = vmatpush2.msra.mxu0 %v2091
    %2325 = vmatprep.subr.mxu0 %v2086
    %2326 = vmatpush2.msra.mxu0 %v2085
    %2327 = vmatprep.subr.mxu0 %v2080
    %2328 = vmatpush2.msra.mxu0 %v2079
    %2329 = vmatprep.subr.mxu0 %v2074
    %2330 = vmatpush2.msra.mxu0 %v2073
    %2331 = vmatprep.subr.mxu0 %v2068
    %2332 = vmatpush2.msra.mxu0 %v2067
    %2333 = vmatprep.subr.mxu0 %v2062
    %2334 = vmatpush2.msra.mxu0 %v2061
    %2335 = vmatprep.subr.mxu0 %v2056
    %2336 = vmatpush2.msra.mxu0 %v2055
    %2337 = vmatprep.subr.mxu0 %v2050
    %2338 = vmatpush2.msra.mxu0 %v2049
    %2339 = vmatprep.subr.mxu0 %v2044
    %2340 = vmatpush2.msra.mxu0 %v2043
    %2341 = vmatprep.mubr.f32.mxu0 %v1930
    %2342 = vmatmul.mubr.f32.gmra.mxu0 %v1929
    %v2343 = vpop.f32.mrf.mxu0
    %v2344 = vadd.f32 0.0, %v2343
    %v2345 = vpop.f32.mrf.mxu0
    %v2346 = vadd.f32 0.0, %v2345
    %2347 = vdwg.mxu0
    %v2348 = vadd.f32 %v1937, %v2202
    %v2349 = vadd.f32 %v1938, %v2204
    %v2350 = vxor.u32 %v2348, 2147483648
    %v2351 = vxor.u32 %v2349, 2147483648
    %v2352 = vmul.f32 %v2350, 1.442695
    %v2353 = vpow.pop %v2352
    %v2354 = vmul.f32 %v2351, 1.442695
    %v2355 = vpow.pop %v2354
    %v2356 = vadd.f32 %v2353, 1.0
    %v2357 = vadd.f32 %v2355, 1.0
    %v2358 = vrcp.pop %v2356
    %v2359 = vmul.f32 1.0, %v2358
    %v2360 = vrcp.pop %v2357
    %v2361 = vmul.f32 1.0, %v2360
    %v2362 = vadd.f32 %v1939, %v2273
    %v2363 = vadd.f32 %v1940, %v2275
    %v2364 = vxor.u32 %v2362, 2147483648
    %v2365 = vxor.u32 %v2363, 2147483648
    %v2366 = vmul.f32 %v2364, 1.442695
    %v2367 = vpow.pop %v2366
    %v2368 = vmul.f32 %v2365, 1.442695
    %v2369 = vpow.pop %v2368
    %v2370 = vadd.f32 %v2367, 1.0
    %v2371 = vadd.f32 %v2369, 1.0
    %v2372 = vrcp.pop %v2370
    %v2373 = vmul.f32 1.0, %v2372
    %v2374 = vrcp.pop %v2371
    %v2375 = vmul.f32 1.0, %v2374
    %v2376 = vadd.f32 %v2344, %v82
    %v2377 = vadd.f32 %v2346, %v86
    %v2378 = vmul.f32 %v2359, %v2376
    %v2379 = vmul.f32 %v2361, %v2377
    %v2380 = vadd.f32 %v1941, %v2378
    %v2381 = vadd.f32 %v1942, %v2379
    %v2382 = vtanh.pop %v2380
    %v2383 = vtanh.pop %v2381
    %v2384 = vsub.f32 %v1929, %v2382
    %v2385 = vsub.f32 %v1930, %v2383
    %v2386 = vmul.f32 %v2373, %v2384
    %v2387 = vmul.f32 %v2375, %v2385
    %v2388 = vadd.f32 %v2382, %v2386
    %v2389 = vadd.f32 %v2383, %v2387
    %s2390 = smul.u32 4, 2
    %s2391 = smul.addr %s2390, 8
    %s2392 = scalar_lea.vmem [#allocation2], %s2391
    %2393 = vst [vmem:[%s2392] sm:$0xff] %v2388
    %2394 = vst [vmem:[%s2392 + $0x8] sm:$0xff] %v2389
    %s2395 = scalar_lea.vmem [#allocation3], 240
    %v2396 = vld [vmem:[%s2395] sm:$0xff]
    %v2397 = vld [vmem:[%s2395 + $0x8] sm:$0xff]
    %v2398 = vld [vmem:[%s2395 + $0x10] sm:$0xff]
    %v2399 = vld [vmem:[%s2395 + $0x18] sm:$0xff]
    %v2400 = vld [vmem:[%s2395 + $0x20] sm:$0xff]
    %v2401 = vld [vmem:[%s2395 + $0x28] sm:$0xff]
    %v2402 = vld [vmem:[#allocation6] sm:$0xff]
    %v2403 = vld [vmem:[#allocation6 + $0x8] sm:$0xff]
    %v2404 = vld [vmem:[#allocation6 + $0x10] sm:$0xff]
    %v2405 = vld [vmem:[#allocation6 + $0x18] sm:$0xff]
    %v2406 = vld [vmem:[#allocation6 + $0x20] sm:$0xff]
    %v2407 = vld [vmem:[#allocation6 + $0x28] sm:$0xff]
    %v2408 = vld [vmem:[#allocation6 + $0x30] sm:$0xff]
    %v2409 = vld [vmem:[#allocation6 + $0x38] sm:$0xff]
    %v2410 = vld [vmem:[#allocation6 + $0x40] sm:$0xff]
    %v2411 = vld [vmem:[#allocation6 + $0x48] sm:$0xff]
    %v2412 = vld [vmem:[#allocation6 + $0x50] sm:$0xff]
    %v2413 = vld [vmem:[#allocation6 + $0x58] sm:$0xff]
    %v2414 = vld [vmem:[#allocation6 + $0x60] sm:$0xff]
    %v2415 = vld [vmem:[#allocation6 + $0x68] sm:$0xff]
    %v2416 = vld [vmem:[#allocation6 + $0x70] sm:$0xff]
    %v2417 = vld [vmem:[#allocation6 + $0x78] sm:$0xff]
    %v2418 = vld [vmem:[#allocation6 + $0x80] sm:$0xff]
    %v2419 = vld [vmem:[#allocation6 + $0x88] sm:$0xff]
    %v2420 = vld [vmem:[#allocation6 + $0x90] sm:$0xff]
    %v2421 = vld [vmem:[#allocation6 + $0x98] sm:$0xff]
    %v2422 = vld [vmem:[#allocation6 + $0xa0] sm:$0xff]
    %v2423 = vld [vmem:[#allocation6 + $0xa8] sm:$0xff]
    %v2424 = vld [vmem:[#allocation6 + $0xb0] sm:$0xff]
    %v2425 = vld [vmem:[#allocation6 + $0xb8] sm:$0xff]
    %v2426 = vld [vmem:[#allocation6 + $0xc0] sm:$0xff]
    %v2427 = vld [vmem:[#allocation6 + $0xc8] sm:$0xff]
    %v2428 = vld [vmem:[#allocation6 + $0xd0] sm:$0xff]
    %v2429 = vld [vmem:[#allocation6 + $0xd8] sm:$0xff]
    %v2430 = vld [vmem:[#allocation6 + $0xe0] sm:$0xff]
    %v2431 = vld [vmem:[#allocation6 + $0xe8] sm:$0xff]
    %v2432 = vld [vmem:[#allocation6 + $0xf0] sm:$0xff]
    %v2433 = vld [vmem:[#allocation6 + $0xf8] sm:$0xff]
    %v2434 = vld [vmem:[#allocation6 + $0x100] sm:$0xff]
    %v2435 = vld [vmem:[#allocation6 + $0x108] sm:$0xff]
    %v2436 = vld [vmem:[#allocation6 + $0x110] sm:$0xff]
    %v2437 = vld [vmem:[#allocation6 + $0x118] sm:$0xff]
    %v2438 = vld [vmem:[#allocation6 + $0x120] sm:$0xff]
    %v2439 = vld [vmem:[#allocation6 + $0x128] sm:$0xff]
    %v2440 = vld [vmem:[#allocation6 + $0x130] sm:$0xff]
    %v2441 = vld [vmem:[#allocation6 + $0x138] sm:$0xff]
    %v2442 = vld [vmem:[#allocation6 + $0x140] sm:$0xff]
    %v2443 = vld [vmem:[#allocation6 + $0x148] sm:$0xff]
    %v2444 = vld [vmem:[#allocation6 + $0x150] sm:$0xff]
    %v2445 = vld [vmem:[#allocation6 + $0x158] sm:$0xff]
    %v2446 = vld [vmem:[#allocation6 + $0x160] sm:$0xff]
    %v2447 = vld [vmem:[#allocation6 + $0x168] sm:$0xff]
    %v2448 = vld [vmem:[#allocation6 + $0x170] sm:$0xff]
    %v2449 = vld [vmem:[#allocation6 + $0x178] sm:$0xff]
    %v2450 = vld [vmem:[#allocation6 + $0x180] sm:$0xff]
    %v2451 = vld [vmem:[#allocation6 + $0x188] sm:$0xff]
    %v2452 = vld [vmem:[#allocation6 + $0x190] sm:$0xff]
    %v2453 = vld [vmem:[#allocation6 + $0x198] sm:$0xff]
    %v2454 = vld [vmem:[#allocation6 + $0x1a0] sm:$0xff]
    %v2455 = vld [vmem:[#allocation6 + $0x1a8] sm:$0xff]
    %v2456 = vld [vmem:[#allocation6 + $0x1b0] sm:$0xff]
    %v2457 = vld [vmem:[#allocation6 + $0x1b8] sm:$0xff]
    %v2458 = vld [vmem:[#allocation6 + $0x1c0] sm:$0xff]
    %v2459 = vld [vmem:[#allocation6 + $0x1c8] sm:$0xff]
    %v2460 = vld [vmem:[#allocation6 + $0x1d0] sm:$0xff]
    %v2461 = vld [vmem:[#allocation6 + $0x1d8] sm:$0xff]
    %v2462 = vld [vmem:[#allocation6 + $0x1e0] sm:$0xff]
    %v2463 = vld [vmem:[#allocation6 + $0x1e8] sm:$0xff]
    %v2464 = vld [vmem:[#allocation6 + $0x1f0] sm:$0xff]
    %v2465 = vld [vmem:[#allocation6 + $0x1f8] sm:$0xff]
    %v2466 = vld [vmem:[#allocation6 + $0x200] sm:$0xff]
    %v2467 = vld [vmem:[#allocation6 + $0x208] sm:$0xff]
    %v2468 = vld [vmem:[#allocation6 + $0x210] sm:$0xff]
    %v2469 = vld [vmem:[#allocation6 + $0x218] sm:$0xff]
    %v2470 = vld [vmem:[#allocation6 + $0x220] sm:$0xff]
    %v2471 = vld [vmem:[#allocation6 + $0x228] sm:$0xff]
    %v2472 = vld [vmem:[#allocation6 + $0x230] sm:$0xff]
    %v2473 = vld [vmem:[#allocation6 + $0x238] sm:$0xff]
    %v2474 = vld [vmem:[#allocation6 + $0x240] sm:$0xff]
    %v2475 = vld [vmem:[#allocation6 + $0x248] sm:$0xff]
    %v2476 = vld [vmem:[#allocation6 + $0x250] sm:$0xff]
    %v2477 = vld [vmem:[#allocation6 + $0x258] sm:$0xff]
    %v2478 = vld [vmem:[#allocation6 + $0x260] sm:$0xff]
    %v2479 = vld [vmem:[#allocation6 + $0x268] sm:$0xff]
    %v2480 = vld [vmem:[#allocation6 + $0x270] sm:$0xff]
    %v2481 = vld [vmem:[#allocation6 + $0x278] sm:$0xff]
    %v2482 = vld [vmem:[#allocation6 + $0x280] sm:$0xff]
    %v2483 = vld [vmem:[#allocation6 + $0x288] sm:$0xff]
    %v2484 = vld [vmem:[#allocation6 + $0x290] sm:$0xff]
    %v2485 = vld [vmem:[#allocation6 + $0x298] sm:$0xff]
    %v2486 = vld [vmem:[#allocation6 + $0x2a0] sm:$0xff]
    %v2487 = vld [vmem:[#allocation6 + $0x2a8] sm:$0xff]
    %v2488 = vld [vmem:[#allocation6 + $0x2b0] sm:$0xff]
    %v2489 = vld [vmem:[#allocation6 + $0x2b8] sm:$0xff]
    %v2490 = vld [vmem:[#allocation6 + $0x2c0] sm:$0xff]
    %v2491 = vld [vmem:[#allocation6 + $0x2c8] sm:$0xff]
    %v2492 = vld [vmem:[#allocation6 + $0x2d0] sm:$0xff]
    %v2493 = vld [vmem:[#allocation6 + $0x2d8] sm:$0xff]
    %v2494 = vld [vmem:[#allocation6 + $0x2e0] sm:$0xff]
    %v2495 = vld [vmem:[#allocation6 + $0x2e8] sm:$0xff]
    %v2496 = vld [vmem:[#allocation6 + $0x2f0] sm:$0xff]
    %v2497 = vld [vmem:[#allocation6 + $0x2f8] sm:$0xff]
    %v2498 = vld [vmem:[#allocation6 + $0x300] sm:$0xff]
    %v2499 = vld [vmem:[#allocation6 + $0x308] sm:$0xff]
    %v2500 = vld [vmem:[#allocation6 + $0x310] sm:$0xff]
    %v2501 = vld [vmem:[#allocation6 + $0x318] sm:$0xff]
    %v2502 = vld [vmem:[#allocation6 + $0x320] sm:$0xff]
    %v2503 = vld [vmem:[#allocation6 + $0x328] sm:$0xff]
    %v2504 = vld [vmem:[#allocation6 + $0x330] sm:$0xff]
    %v2505 = vld [vmem:[#allocation6 + $0x338] sm:$0xff]
    %v2506 = vld [vmem:[#allocation6 + $0x340] sm:$0xff]
    %v2507 = vld [vmem:[#allocation6 + $0x348] sm:$0xff]
    %v2508 = vld [vmem:[#allocation6 + $0x350] sm:$0xff]
    %v2509 = vld [vmem:[#allocation6 + $0x358] sm:$0xff]
    %v2510 = vld [vmem:[#allocation6 + $0x360] sm:$0xff]
    %v2511 = vld [vmem:[#allocation6 + $0x368] sm:$0xff]
    %v2512 = vld [vmem:[#allocation6 + $0x370] sm:$0xff]
    %v2513 = vld [vmem:[#allocation6 + $0x378] sm:$0xff]
    %v2514 = vld [vmem:[#allocation6 + $0x380] sm:$0xff]
    %v2515 = vld [vmem:[#allocation6 + $0x388] sm:$0xff]
    %v2516 = vld [vmem:[#allocation6 + $0x390] sm:$0xff]
    %v2517 = vld [vmem:[#allocation6 + $0x398] sm:$0xff]
    %v2518 = vld [vmem:[#allocation6 + $0x3a0] sm:$0xff]
    %v2519 = vld [vmem:[#allocation6 + $0x3a8] sm:$0xff]
    %v2520 = vld [vmem:[#allocation6 + $0x3b0] sm:$0xff]
    %v2521 = vld [vmem:[#allocation6 + $0x3b8] sm:$0xff]
    %v2522 = vld [vmem:[#allocation6 + $0x3c0] sm:$0xff]
    %v2523 = vld [vmem:[#allocation6 + $0x3c8] sm:$0xff]
    %v2524 = vld [vmem:[#allocation6 + $0x3d0] sm:$0xff]
    %v2525 = vld [vmem:[#allocation6 + $0x3d8] sm:$0xff]
    %v2526 = vld [vmem:[#allocation6 + $0x3e0] sm:$0xff]
    %v2527 = vld [vmem:[#allocation6 + $0x3e8] sm:$0xff]
    %v2528 = vld [vmem:[#allocation6 + $0x3f0] sm:$0xff]
    %v2529 = vld [vmem:[#allocation6 + $0x3f8] sm:$0xff]
    %v2530 = vld [vmem:[#allocation6 + $0x400] sm:$0xff]
    %v2531 = vld [vmem:[#allocation6 + $0x408] sm:$0xff]
    %v2532 = vld [vmem:[#allocation6 + $0x410] sm:$0xff]
    %v2533 = vld [vmem:[#allocation6 + $0x418] sm:$0xff]
    %v2534 = vld [vmem:[#allocation6 + $0x420] sm:$0xff]
    %v2535 = vld [vmem:[#allocation6 + $0x428] sm:$0xff]
    %v2536 = vld [vmem:[#allocation6 + $0x430] sm:$0xff]
    %v2537 = vld [vmem:[#allocation6 + $0x438] sm:$0xff]
    %v2538 = vld [vmem:[#allocation6 + $0x440] sm:$0xff]
    %v2539 = vld [vmem:[#allocation6 + $0x448] sm:$0xff]
    %v2540 = vld [vmem:[#allocation6 + $0x450] sm:$0xff]
    %v2541 = vld [vmem:[#allocation6 + $0x458] sm:$0xff]
    %v2542 = vld [vmem:[#allocation6 + $0x460] sm:$0xff]
    %v2543 = vld [vmem:[#allocation6 + $0x468] sm:$0xff]
    %v2544 = vld [vmem:[#allocation6 + $0x470] sm:$0xff]
    %v2545 = vld [vmem:[#allocation6 + $0x478] sm:$0xff]
    %v2546 = vld [vmem:[#allocation6 + $0x480] sm:$0xff]
    %v2547 = vld [vmem:[#allocation6 + $0x488] sm:$0xff]
    %v2548 = vld [vmem:[#allocation6 + $0x490] sm:$0xff]
    %v2549 = vld [vmem:[#allocation6 + $0x498] sm:$0xff]
    %v2550 = vld [vmem:[#allocation6 + $0x4a0] sm:$0xff]
    %v2551 = vld [vmem:[#allocation6 + $0x4a8] sm:$0xff]
    %v2552 = vld [vmem:[#allocation6 + $0x4b0] sm:$0xff]
    %v2553 = vld [vmem:[#allocation6 + $0x4b8] sm:$0xff]
    %v2554 = vld [vmem:[#allocation6 + $0x4c0] sm:$0xff]
    %v2555 = vld [vmem:[#allocation6 + $0x4c8] sm:$0xff]
    %v2556 = vld [vmem:[#allocation6 + $0x4d0] sm:$0xff]
    %v2557 = vld [vmem:[#allocation6 + $0x4d8] sm:$0xff]
    %v2558 = vld [vmem:[#allocation6 + $0x4e0] sm:$0xff]
    %v2559 = vld [vmem:[#allocation6 + $0x4e8] sm:$0xff]
    %v2560 = vld [vmem:[#allocation6 + $0x4f0] sm:$0xff]
    %v2561 = vld [vmem:[#allocation6 + $0x4f8] sm:$0xff]
    %v2562 = vld [vmem:[#allocation6 + $0x500] sm:$0xff]
    %v2563 = vld [vmem:[#allocation6 + $0x508] sm:$0xff]
    %v2564 = vld [vmem:[#allocation6 + $0x510] sm:$0xff]
    %v2565 = vld [vmem:[#allocation6 + $0x518] sm:$0xff]
    %v2566 = vld [vmem:[#allocation6 + $0x520] sm:$0xff]
    %v2567 = vld [vmem:[#allocation6 + $0x528] sm:$0xff]
    %v2568 = vld [vmem:[#allocation6 + $0x530] sm:$0xff]
    %v2569 = vld [vmem:[#allocation6 + $0x538] sm:$0xff]
    %v2570 = vld [vmem:[#allocation6 + $0x540] sm:$0xff]
    %v2571 = vld [vmem:[#allocation6 + $0x548] sm:$0xff]
    %v2572 = vld [vmem:[#allocation6 + $0x550] sm:$0xff]
    %v2573 = vld [vmem:[#allocation6 + $0x558] sm:$0xff]
    %v2574 = vld [vmem:[#allocation6 + $0x560] sm:$0xff]
    %v2575 = vld [vmem:[#allocation6 + $0x568] sm:$0xff]
    %v2576 = vld [vmem:[#allocation6 + $0x570] sm:$0xff]
    %v2577 = vld [vmem:[#allocation6 + $0x578] sm:$0xff]
    %v2578 = vld [vmem:[#allocation6 + $0x580] sm:$0xff]
    %v2579 = vld [vmem:[#allocation6 + $0x588] sm:$0xff]
    %v2580 = vld [vmem:[#allocation6 + $0x590] sm:$0xff]
    %v2581 = vld [vmem:[#allocation6 + $0x598] sm:$0xff]
    %v2582 = vld [vmem:[#allocation6 + $0x5a0] sm:$0xff]
    %v2583 = vld [vmem:[#allocation6 + $0x5a8] sm:$0xff]
    %v2584 = vld [vmem:[#allocation6 + $0x5b0] sm:$0xff]
    %v2585 = vld [vmem:[#allocation6 + $0x5b8] sm:$0xff]
    %v2586 = vld [vmem:[#allocation6 + $0x5c0] sm:$0xff]
    %v2587 = vld [vmem:[#allocation6 + $0x5c8] sm:$0xff]
    %v2588 = vld [vmem:[#allocation6 + $0x5d0] sm:$0xff]
    %v2589 = vld [vmem:[#allocation6 + $0x5d8] sm:$0xff]
    %v2590 = vld [vmem:[#allocation6 + $0x5e0] sm:$0xff]
    %v2591 = vld [vmem:[#allocation6 + $0x5e8] sm:$0xff]
    %v2592 = vld [vmem:[#allocation6 + $0x5f0] sm:$0xff]
    %v2593 = vld [vmem:[#allocation6 + $0x5f8] sm:$0xff]
    %2594 = vmatprep.subr.mxu0 %v2493
    %2595 = vmatpush1.msra.mxu0 %v2492
    %2596 = vmatprep.subr.mxu0 %v2487
    %2597 = vmatpush1.msra.mxu0 %v2486
    %2598 = vmatprep.subr.mxu0 %v2481
    %2599 = vmatpush1.msra.mxu0 %v2480
    %2600 = vmatprep.subr.mxu0 %v2475
    %2601 = vmatpush1.msra.mxu0 %v2474
    %2602 = vmatprep.subr.mxu0 %v2469
    %2603 = vmatpush1.msra.mxu0 %v2468
    %2604 = vmatprep.subr.mxu0 %v2463
    %2605 = vmatpush1.msra.mxu0 %v2462
    %2606 = vmatprep.subr.mxu0 %v2457
    %2607 = vmatpush1.msra.mxu0 %v2456
    %2608 = vmatprep.subr.mxu0 %v2451
    %2609 = vmatpush1.msra.mxu0 %v2450
    %2610 = vmatprep.subr.mxu0 %v2445
    %2611 = vmatpush1.msra.mxu0 %v2444
    %2612 = vmatprep.subr.mxu0 %v2439
    %2613 = vmatpush1.msra.mxu0 %v2438
    %2614 = vmatprep.subr.mxu0 %v2433
    %2615 = vmatpush1.msra.mxu0 %v2432
    %2616 = vmatprep.subr.mxu0 %v2427
    %2617 = vmatpush1.msra.mxu0 %v2426
    %2618 = vmatprep.subr.mxu0 %v2421
    %2619 = vmatpush1.msra.mxu0 %v2420
    %2620 = vmatprep.subr.mxu0 %v2415
    %2621 = vmatpush1.msra.mxu0 %v2414
    %2622 = vmatprep.subr.mxu0 %v2409
    %2623 = vmatpush1.msra.mxu0 %v2408
    %2624 = vmatprep.subr.mxu0 %v2403
    %2625 = vmatpush1.msra.mxu0 %v2402
    %2626 = vmatprep.subr.mxu0 %v2589
    %2627 = vmatpush2.msra.mxu0 %v2588
    %2628 = vmatprep.subr.mxu0 %v2583
    %2629 = vmatpush2.msra.mxu0 %v2582
    %2630 = vmatprep.subr.mxu0 %v2577
    %2631 = vmatpush2.msra.mxu0 %v2576
    %2632 = vmatprep.subr.mxu0 %v2571
    %2633 = vmatpush2.msra.mxu0 %v2570
    %2634 = vmatprep.subr.mxu0 %v2565
    %2635 = vmatpush2.msra.mxu0 %v2564
    %2636 = vmatprep.subr.mxu0 %v2559
    %2637 = vmatpush2.msra.mxu0 %v2558
    %2638 = vmatprep.subr.mxu0 %v2553
    %2639 = vmatpush2.msra.mxu0 %v2552
    %2640 = vmatprep.subr.mxu0 %v2547
    %2641 = vmatpush2.msra.mxu0 %v2546
    %2642 = vmatprep.subr.mxu0 %v2541
    %2643 = vmatpush2.msra.mxu0 %v2540
    %2644 = vmatprep.subr.mxu0 %v2535
    %2645 = vmatpush2.msra.mxu0 %v2534
    %2646 = vmatprep.subr.mxu0 %v2529
    %2647 = vmatpush2.msra.mxu0 %v2528
    %2648 = vmatprep.subr.mxu0 %v2523
    %2649 = vmatpush2.msra.mxu0 %v2522
    %2650 = vmatprep.subr.mxu0 %v2517
    %2651 = vmatpush2.msra.mxu0 %v2516
    %2652 = vmatprep.subr.mxu0 %v2511
    %2653 = vmatpush2.msra.mxu0 %v2510
    %2654 = vmatprep.subr.mxu0 %v2505
    %2655 = vmatpush2.msra.mxu0 %v2504
    %2656 = vmatprep.subr.mxu0 %v2499
    %2657 = vmatpush2.msra.mxu0 %v2498
    %2658 = vmatprep.mubr.f32.mxu0 %v2389
    %2659 = vmatmul.mubr.f32.gmra.mxu0 %v2388
    %v2660 = vpop.f32.mrf.mxu0
    %v2661 = vadd.f32 0.0, %v2660
    %v2662 = vpop.f32.mrf.mxu0
    %v2663 = vadd.f32 0.0, %v2662
    %2664 = vdwg.mxu0
    %2665 = vmatprep.subr.mxu0 %v2495
    %2666 = vmatpush1.msra.mxu0 %v2494
    %2667 = vmatprep.subr.mxu0 %v2489
    %2668 = vmatpush1.msra.mxu0 %v2488
    %2669 = vmatprep.subr.mxu0 %v2483
    %2670 = vmatpush1.msra.mxu0 %v2482
    %2671 = vmatprep.subr.mxu0 %v2477
    %2672 = vmatpush1.msra.mxu0 %v2476
    %2673 = vmatprep.subr.mxu0 %v2471
    %2674 = vmatpush1.msra.mxu0 %v2470
    %2675 = vmatprep.subr.mxu0 %v2465
    %2676 = vmatpush1.msra.mxu0 %v2464
    %2677 = vmatprep.subr.mxu0 %v2459
    %2678 = vmatpush1.msra.mxu0 %v2458
    %2679 = vmatprep.subr.mxu0 %v2453
    %2680 = vmatpush1.msra.mxu0 %v2452
    %2681 = vmatprep.subr.mxu0 %v2447
    %2682 = vmatpush1.msra.mxu0 %v2446
    %2683 = vmatprep.subr.mxu0 %v2441
    %2684 = vmatpush1.msra.mxu0 %v2440
    %2685 = vmatprep.subr.mxu0 %v2435
    %2686 = vmatpush1.msra.mxu0 %v2434
    %2687 = vmatprep.subr.mxu0 %v2429
    %2688 = vmatpush1.msra.mxu0 %v2428
    %2689 = vmatprep.subr.mxu0 %v2423
    %2690 = vmatpush1.msra.mxu0 %v2422
    %2691 = vmatprep.subr.mxu0 %v2417
    %2692 = vmatpush1.msra.mxu0 %v2416
    %2693 = vmatprep.subr.mxu0 %v2411
    %2694 = vmatpush1.msra.mxu0 %v2410
    %2695 = vmatprep.subr.mxu0 %v2405
    %2696 = vmatpush1.msra.mxu0 %v2404
    %2697 = vmatprep.subr.mxu0 %v2591
    %2698 = vmatpush2.msra.mxu0 %v2590
    %2699 = vmatprep.subr.mxu0 %v2585
    %2700 = vmatpush2.msra.mxu0 %v2584
    %2701 = vmatprep.subr.mxu0 %v2579
    %2702 = vmatpush2.msra.mxu0 %v2578
    %2703 = vmatprep.subr.mxu0 %v2573
    %2704 = vmatpush2.msra.mxu0 %v2572
    %2705 = vmatprep.subr.mxu0 %v2567
    %2706 = vmatpush2.msra.mxu0 %v2566
    %2707 = vmatprep.subr.mxu0 %v2561
    %2708 = vmatpush2.msra.mxu0 %v2560
    %2709 = vmatprep.subr.mxu0 %v2555
    %2710 = vmatpush2.msra.mxu0 %v2554
    %2711 = vmatprep.subr.mxu0 %v2549
    %2712 = vmatpush2.msra.mxu0 %v2548
    %2713 = vmatprep.subr.mxu0 %v2543
    %2714 = vmatpush2.msra.mxu0 %v2542
    %2715 = vmatprep.subr.mxu0 %v2537
    %2716 = vmatpush2.msra.mxu0 %v2536
    %2717 = vmatprep.subr.mxu0 %v2531
    %2718 = vmatpush2.msra.mxu0 %v2530
    %2719 = vmatprep.subr.mxu0 %v2525
    %2720 = vmatpush2.msra.mxu0 %v2524
    %2721 = vmatprep.subr.mxu0 %v2519
    %2722 = vmatpush2.msra.mxu0 %v2518
    %2723 = vmatprep.subr.mxu0 %v2513
    %2724 = vmatpush2.msra.mxu0 %v2512
    %2725 = vmatprep.subr.mxu0 %v2507
    %2726 = vmatpush2.msra.mxu0 %v2506
    %2727 = vmatprep.subr.mxu0 %v2501
    %2728 = vmatpush2.msra.mxu0 %v2500
    %2729 = vmatprep.mubr.f32.mxu0 %v2389
    %2730 = vmatmul.mubr.f32.gmra.mxu0 %v2388
    %v2731 = vpop.f32.mrf.mxu0
    %v2732 = vadd.f32 0.0, %v2731
    %v2733 = vpop.f32.mrf.mxu0
    %v2734 = vadd.f32 0.0, %v2733
    %2735 = vdwg.mxu0
    %2736 = vmatprep.subr.mxu0 %v2497
    %2737 = vmatpush1.msra.mxu0 %v2496
    %2738 = vmatprep.subr.mxu0 %v2491
    %2739 = vmatpush1.msra.mxu0 %v2490
    %2740 = vmatprep.subr.mxu0 %v2485
    %2741 = vmatpush1.msra.mxu0 %v2484
    %2742 = vmatprep.subr.mxu0 %v2479
    %2743 = vmatpush1.msra.mxu0 %v2478
    %2744 = vmatprep.subr.mxu0 %v2473
    %2745 = vmatpush1.msra.mxu0 %v2472
    %2746 = vmatprep.subr.mxu0 %v2467
    %2747 = vmatpush1.msra.mxu0 %v2466
    %2748 = vmatprep.subr.mxu0 %v2461
    %2749 = vmatpush1.msra.mxu0 %v2460
    %2750 = vmatprep.subr.mxu0 %v2455
    %2751 = vmatpush1.msra.mxu0 %v2454
    %2752 = vmatprep.subr.mxu0 %v2449
    %2753 = vmatpush1.msra.mxu0 %v2448
    %2754 = vmatprep.subr.mxu0 %v2443
    %2755 = vmatpush1.msra.mxu0 %v2442
    %2756 = vmatprep.subr.mxu0 %v2437
    %2757 = vmatpush1.msra.mxu0 %v2436
    %2758 = vmatprep.subr.mxu0 %v2431
    %2759 = vmatpush1.msra.mxu0 %v2430
    %2760 = vmatprep.subr.mxu0 %v2425
    %2761 = vmatpush1.msra.mxu0 %v2424
    %2762 = vmatprep.subr.mxu0 %v2419
    %2763 = vmatpush1.msra.mxu0 %v2418
    %2764 = vmatprep.subr.mxu0 %v2413
    %2765 = vmatpush1.msra.mxu0 %v2412
    %2766 = vmatprep.subr.mxu0 %v2407
    %2767 = vmatpush1.msra.mxu0 %v2406
    %2768 = vmatprep.subr.mxu0 %v2593
    %2769 = vmatpush2.msra.mxu0 %v2592
    %2770 = vmatprep.subr.mxu0 %v2587
    %2771 = vmatpush2.msra.mxu0 %v2586
    %2772 = vmatprep.subr.mxu0 %v2581
    %2773 = vmatpush2.msra.mxu0 %v2580
    %2774 = vmatprep.subr.mxu0 %v2575
    %2775 = vmatpush2.msra.mxu0 %v2574
    %2776 = vmatprep.subr.mxu0 %v2569
    %2777 = vmatpush2.msra.mxu0 %v2568
    %2778 = vmatprep.subr.mxu0 %v2563
    %2779 = vmatpush2.msra.mxu0 %v2562
    %2780 = vmatprep.subr.mxu0 %v2557
    %2781 = vmatpush2.msra.mxu0 %v2556
    %2782 = vmatprep.subr.mxu0 %v2551
    %2783 = vmatpush2.msra.mxu0 %v2550
    %2784 = vmatprep.subr.mxu0 %v2545
    %2785 = vmatpush2.msra.mxu0 %v2544
    %2786 = vmatprep.subr.mxu0 %v2539
    %2787 = vmatpush2.msra.mxu0 %v2538
    %2788 = vmatprep.subr.mxu0 %v2533
    %2789 = vmatpush2.msra.mxu0 %v2532
    %2790 = vmatprep.subr.mxu0 %v2527
    %2791 = vmatpush2.msra.mxu0 %v2526
    %2792 = vmatprep.subr.mxu0 %v2521
    %2793 = vmatpush2.msra.mxu0 %v2520
    %2794 = vmatprep.subr.mxu0 %v2515
    %2795 = vmatpush2.msra.mxu0 %v2514
    %2796 = vmatprep.subr.mxu0 %v2509
    %2797 = vmatpush2.msra.mxu0 %v2508
    %2798 = vmatprep.subr.mxu0 %v2503
    %2799 = vmatpush2.msra.mxu0 %v2502
    %2800 = vmatprep.mubr.f32.mxu0 %v2389
    %2801 = vmatmul.mubr.f32.gmra.mxu0 %v2388
    %v2802 = vpop.f32.mrf.mxu0
    %v2803 = vadd.f32 0.0, %v2802
    %v2804 = vpop.f32.mrf.mxu0
    %v2805 = vadd.f32 0.0, %v2804
    %2806 = vdwg.mxu0
    %v2807 = vadd.f32 %v2396, %v2661
    %v2808 = vadd.f32 %v2397, %v2663
    %v2809 = vxor.u32 %v2807, 2147483648
    %v2810 = vxor.u32 %v2808, 2147483648
    %v2811 = vmul.f32 %v2809, 1.442695
    %v2812 = vpow.pop %v2811
    %v2813 = vmul.f32 %v2810, 1.442695
    %v2814 = vpow.pop %v2813
    %v2815 = vadd.f32 %v2812, 1.0
    %v2816 = vadd.f32 %v2814, 1.0
    %v2817 = vrcp.pop %v2815
    %v2818 = vmul.f32 1.0, %v2817
    %v2819 = vrcp.pop %v2816
    %v2820 = vmul.f32 1.0, %v2819
    %v2821 = vadd.f32 %v2398, %v2732
    %v2822 = vadd.f32 %v2399, %v2734
    %v2823 = vxor.u32 %v2821, 2147483648
    %v2824 = vxor.u32 %v2822, 2147483648
    %v2825 = vmul.f32 %v2823, 1.442695
    %v2826 = vpow.pop %v2825
    %v2827 = vmul.f32 %v2824, 1.442695
    %v2828 = vpow.pop %v2827
    %v2829 = vadd.f32 %v2826, 1.0
    %v2830 = vadd.f32 %v2828, 1.0
    %v2831 = vrcp.pop %v2829
    %v2832 = vmul.f32 1.0, %v2831
    %v2833 = vrcp.pop %v2830
    %v2834 = vmul.f32 1.0, %v2833
    %v2835 = vadd.f32 %v2803, %v82
    %v2836 = vadd.f32 %v2805, %v86
    %v2837 = vmul.f32 %v2818, %v2835
    %v2838 = vmul.f32 %v2820, %v2836
    %v2839 = vadd.f32 %v2400, %v2837
    %v2840 = vadd.f32 %v2401, %v2838
    %v2841 = vtanh.pop %v2839
    %v2842 = vtanh.pop %v2840
    %v2843 = vsub.f32 %v2388, %v2841
    %v2844 = vsub.f32 %v2389, %v2842
    %v2845 = vmul.f32 %v2832, %v2843
    %v2846 = vmul.f32 %v2834, %v2844
    %v2847 = vadd.f32 %v2841, %v2845
    %v2848 = vadd.f32 %v2842, %v2846
    %s2849 = smul.u32 5, 2
    %s2850 = smul.addr %s2849, 8
    %s2851 = scalar_lea.vmem [#allocation2], %s2850
    %2852 = vst [vmem:[%s2851] sm:$0xff] %v2847
    %2853 = vst [vmem:[%s2851 + $0x8] sm:$0xff] %v2848
    %s2854 = scalar_lea.vmem [#allocation3], 288
    %v2855 = vld [vmem:[%s2854] sm:$0xff]
    %v2856 = vld [vmem:[%s2854 + $0x8] sm:$0xff]
    %v2857 = vld [vmem:[%s2854 + $0x10] sm:$0xff]
    %v2858 = vld [vmem:[%s2854 + $0x18] sm:$0xff]
    %v2859 = vld [vmem:[%s2854 + $0x20] sm:$0xff]
    %v2860 = vld [vmem:[%s2854 + $0x28] sm:$0xff]
    %v2861 = vld [vmem:[#allocation6] sm:$0xff]
    %v2862 = vld [vmem:[#allocation6 + $0x8] sm:$0xff]
    %v2863 = vld [vmem:[#allocation6 + $0x10] sm:$0xff]
    %v2864 = vld [vmem:[#allocation6 + $0x18] sm:$0xff]
    %v2865 = vld [vmem:[#allocation6 + $0x20] sm:$0xff]
    %v2866 = vld [vmem:[#allocation6 + $0x28] sm:$0xff]
    %v2867 = vld [vmem:[#allocation6 + $0x30] sm:$0xff]
    %v2868 = vld [vmem:[#allocation6 + $0x38] sm:$0xff]
    %v2869 = vld [vmem:[#allocation6 + $0x40] sm:$0xff]
    %v2870 = vld [vmem:[#allocation6 + $0x48] sm:$0xff]
    %v2871 = vld [vmem:[#allocation6 + $0x50] sm:$0xff]
    %v2872 = vld [vmem:[#allocation6 + $0x58] sm:$0xff]
    %v2873 = vld [vmem:[#allocation6 + $0x60] sm:$0xff]
    %v2874 = vld [vmem:[#allocation6 + $0x68] sm:$0xff]
    %v2875 = vld [vmem:[#allocation6 + $0x70] sm:$0xff]
    %v2876 = vld [vmem:[#allocation6 + $0x78] sm:$0xff]
    %v2877 = vld [vmem:[#allocation6 + $0x80] sm:$0xff]
    %v2878 = vld [vmem:[#allocation6 + $0x88] sm:$0xff]
    %v2879 = vld [vmem:[#allocation6 + $0x90] sm:$0xff]
    %v2880 = vld [vmem:[#allocation6 + $0x98] sm:$0xff]
    %v2881 = vld [vmem:[#allocation6 + $0xa0] sm:$0xff]
    %v2882 = vld [vmem:[#allocation6 + $0xa8] sm:$0xff]
    %v2883 = vld [vmem:[#allocation6 + $0xb0] sm:$0xff]
    %v2884 = vld [vmem:[#allocation6 + $0xb8] sm:$0xff]
    %v2885 = vld [vmem:[#allocation6 + $0xc0] sm:$0xff]
    %v2886 = vld [vmem:[#allocation6 + $0xc8] sm:$0xff]
    %v2887 = vld [vmem:[#allocation6 + $0xd0] sm:$0xff]
    %v2888 = vld [vmem:[#allocation6 + $0xd8] sm:$0xff]
    %v2889 = vld [vmem:[#allocation6 + $0xe0] sm:$0xff]
    %v2890 = vld [vmem:[#allocation6 + $0xe8] sm:$0xff]
    %v2891 = vld [vmem:[#allocation6 + $0xf0] sm:$0xff]
    %v2892 = vld [vmem:[#allocation6 + $0xf8] sm:$0xff]
    %v2893 = vld [vmem:[#allocation6 + $0x100] sm:$0xff]
    %v2894 = vld [vmem:[#allocation6 + $0x108] sm:$0xff]
    %v2895 = vld [vmem:[#allocation6 + $0x110] sm:$0xff]
    %v2896 = vld [vmem:[#allocation6 + $0x118] sm:$0xff]
    %v2897 = vld [vmem:[#allocation6 + $0x120] sm:$0xff]
    %v2898 = vld [vmem:[#allocation6 + $0x128] sm:$0xff]
    %v2899 = vld [vmem:[#allocation6 + $0x130] sm:$0xff]
    %v2900 = vld [vmem:[#allocation6 + $0x138] sm:$0xff]
    %v2901 = vld [vmem:[#allocation6 + $0x140] sm:$0xff]
    %v2902 = vld [vmem:[#allocation6 + $0x148] sm:$0xff]
    %v2903 = vld [vmem:[#allocation6 + $0x150] sm:$0xff]
    %v2904 = vld [vmem:[#allocation6 + $0x158] sm:$0xff]
    %v2905 = vld [vmem:[#allocation6 + $0x160] sm:$0xff]
    %v2906 = vld [vmem:[#allocation6 + $0x168] sm:$0xff]
    %v2907 = vld [vmem:[#allocation6 + $0x170] sm:$0xff]
    %v2908 = vld [vmem:[#allocation6 + $0x178] sm:$0xff]
    %v2909 = vld [vmem:[#allocation6 + $0x180] sm:$0xff]
    %v2910 = vld [vmem:[#allocation6 + $0x188] sm:$0xff]
    %v2911 = vld [vmem:[#allocation6 + $0x190] sm:$0xff]
    %v2912 = vld [vmem:[#allocation6 + $0x198] sm:$0xff]
    %v2913 = vld [vmem:[#allocation6 + $0x1a0] sm:$0xff]
    %v2914 = vld [vmem:[#allocation6 + $0x1a8] sm:$0xff]
    %v2915 = vld [vmem:[#allocation6 + $0x1b0] sm:$0xff]
    %v2916 = vld [vmem:[#allocation6 + $0x1b8] sm:$0xff]
    %v2917 = vld [vmem:[#allocation6 + $0x1c0] sm:$0xff]
    %v2918 = vld [vmem:[#allocation6 + $0x1c8] sm:$0xff]
    %v2919 = vld [vmem:[#allocation6 + $0x1d0] sm:$0xff]
    %v2920 = vld [vmem:[#allocation6 + $0x1d8] sm:$0xff]
    %v2921 = vld [vmem:[#allocation6 + $0x1e0] sm:$0xff]
    %v2922 = vld [vmem:[#allocation6 + $0x1e8] sm:$0xff]
    %v2923 = vld [vmem:[#allocation6 + $0x1f0] sm:$0xff]
    %v2924 = vld [vmem:[#allocation6 + $0x1f8] sm:$0xff]
    %v2925 = vld [vmem:[#allocation6 + $0x200] sm:$0xff]
    %v2926 = vld [vmem:[#allocation6 + $0x208] sm:$0xff]
    %v2927 = vld [vmem:[#allocation6 + $0x210] sm:$0xff]
    %v2928 = vld [vmem:[#allocation6 + $0x218] sm:$0xff]
    %v2929 = vld [vmem:[#allocation6 + $0x220] sm:$0xff]
    %v2930 = vld [vmem:[#allocation6 + $0x228] sm:$0xff]
    %v2931 = vld [vmem:[#allocation6 + $0x230] sm:$0xff]
    %v2932 = vld [vmem:[#allocation6 + $0x238] sm:$0xff]
    %v2933 = vld [vmem:[#allocation6 + $0x240] sm:$0xff]
    %v2934 = vld [vmem:[#allocation6 + $0x248] sm:$0xff]
    %v2935 = vld [vmem:[#allocation6 + $0x250] sm:$0xff]
    %v2936 = vld [vmem:[#allocation6 + $0x258] sm:$0xff]
    %v2937 = vld [vmem:[#allocation6 + $0x260] sm:$0xff]
    %v2938 = vld [vmem:[#allocation6 + $0x268] sm:$0xff]
    %v2939 = vld [vmem:[#allocation6 + $0x270] sm:$0xff]
    %v2940 = vld [vmem:[#allocation6 + $0x278] sm:$0xff]
    %v2941 = vld [vmem:[#allocation6 + $0x280] sm:$0xff]
    %v2942 = vld [vmem:[#allocation6 + $0x288] sm:$0xff]
    %v2943 = vld [vmem:[#allocation6 + $0x290] sm:$0xff]
    %v2944 = vld [vmem:[#allocation6 + $0x298] sm:$0xff]
    %v2945 = vld [vmem:[#allocation6 + $0x2a0] sm:$0xff]
    %v2946 = vld [vmem:[#allocation6 + $0x2a8] sm:$0xff]
    %v2947 = vld [vmem:[#allocation6 + $0x2b0] sm:$0xff]
    %v2948 = vld [vmem:[#allocation6 + $0x2b8] sm:$0xff]
    %v2949 = vld [vmem:[#allocation6 + $0x2c0] sm:$0xff]
    %v2950 = vld [vmem:[#allocation6 + $0x2c8] sm:$0xff]
    %v2951 = vld [vmem:[#allocation6 + $0x2d0] sm:$0xff]
    %v2952 = vld [vmem:[#allocation6 + $0x2d8] sm:$0xff]
    %v2953 = vld [vmem:[#allocation6 + $0x2e0] sm:$0xff]
    %v2954 = vld [vmem:[#allocation6 + $0x2e8] sm:$0xff]
    %v2955 = vld [vmem:[#allocation6 + $0x2f0] sm:$0xff]
    %v2956 = vld [vmem:[#allocation6 + $0x2f8] sm:$0xff]
    %v2957 = vld [vmem:[#allocation6 + $0x300] sm:$0xff]
    %v2958 = vld [vmem:[#allocation6 + $0x308] sm:$0xff]
    %v2959 = vld [vmem:[#allocation6 + $0x310] sm:$0xff]
    %v2960 = vld [vmem:[#allocation6 + $0x318] sm:$0xff]
    %v2961 = vld [vmem:[#allocation6 + $0x320] sm:$0xff]
    %v2962 = vld [vmem:[#allocation6 + $0x328] sm:$0xff]
    %v2963 = vld [vmem:[#allocation6 + $0x330] sm:$0xff]
    %v2964 = vld [vmem:[#allocation6 + $0x338] sm:$0xff]
    %v2965 = vld [vmem:[#allocation6 + $0x340] sm:$0xff]
    %v2966 = vld [vmem:[#allocation6 + $0x348] sm:$0xff]
    %v2967 = vld [vmem:[#allocation6 + $0x350] sm:$0xff]
    %v2968 = vld [vmem:[#allocation6 + $0x358] sm:$0xff]
    %v2969 = vld [vmem:[#allocation6 + $0x360] sm:$0xff]
    %v2970 = vld [vmem:[#allocation6 + $0x368] sm:$0xff]
    %v2971 = vld [vmem:[#allocation6 + $0x370] sm:$0xff]
    %v2972 = vld [vmem:[#allocation6 + $0x378] sm:$0xff]
    %v2973 = vld [vmem:[#allocation6 + $0x380] sm:$0xff]
    %v2974 = vld [vmem:[#allocation6 + $0x388] sm:$0xff]
    %v2975 = vld [vmem:[#allocation6 + $0x390] sm:$0xff]
    %v2976 = vld [vmem:[#allocation6 + $0x398] sm:$0xff]
    %v2977 = vld [vmem:[#allocation6 + $0x3a0] sm:$0xff]
    %v2978 = vld [vmem:[#allocation6 + $0x3a8] sm:$0xff]
    %v2979 = vld [vmem:[#allocation6 + $0x3b0] sm:$0xff]
    %v2980 = vld [vmem:[#allocation6 + $0x3b8] sm:$0xff]
    %v2981 = vld [vmem:[#allocation6 + $0x3c0] sm:$0xff]
    %v2982 = vld [vmem:[#allocation6 + $0x3c8] sm:$0xff]
    %v2983 = vld [vmem:[#allocation6 + $0x3d0] sm:$0xff]
    %v2984 = vld [vmem:[#allocation6 + $0x3d8] sm:$0xff]
    %v2985 = vld [vmem:[#allocation6 + $0x3e0] sm:$0xff]
    %v2986 = vld [vmem:[#allocation6 + $0x3e8] sm:$0xff]
    %v2987 = vld [vmem:[#allocation6 + $0x3f0] sm:$0xff]
    %v2988 = vld [vmem:[#allocation6 + $0x3f8] sm:$0xff]
    %v2989 = vld [vmem:[#allocation6 + $0x400] sm:$0xff]
    %v2990 = vld [vmem:[#allocation6 + $0x408] sm:$0xff]
    %v2991 = vld [vmem:[#allocation6 + $0x410] sm:$0xff]
    %v2992 = vld [vmem:[#allocation6 + $0x418] sm:$0xff]
    %v2993 = vld [vmem:[#allocation6 + $0x420] sm:$0xff]
    %v2994 = vld [vmem:[#allocation6 + $0x428] sm:$0xff]
    %v2995 = vld [vmem:[#allocation6 + $0x430] sm:$0xff]
    %v2996 = vld [vmem:[#allocation6 + $0x438] sm:$0xff]
    %v2997 = vld [vmem:[#allocation6 + $0x440] sm:$0xff]
    %v2998 = vld [vmem:[#allocation6 + $0x448] sm:$0xff]
    %v2999 = vld [vmem:[#allocation6 + $0x450] sm:$0xff]
    %v3000 = vld [vmem:[#allocation6 + $0x458] sm:$0xff]
    %v3001 = vld [vmem:[#allocation6 + $0x460] sm:$0xff]
    %v3002 = vld [vmem:[#allocation6 + $0x468] sm:$0xff]
    %v3003 = vld [vmem:[#allocation6 + $0x470] sm:$0xff]
    %v3004 = vld [vmem:[#allocation6 + $0x478] sm:$0xff]
    %v3005 = vld [vmem:[#allocation6 + $0x480] sm:$0xff]
    %v3006 = vld [vmem:[#allocation6 + $0x488] sm:$0xff]
    %v3007 = vld [vmem:[#allocation6 + $0x490] sm:$0xff]
    %v3008 = vld [vmem:[#allocation6 + $0x498] sm:$0xff]
    %v3009 = vld [vmem:[#allocation6 + $0x4a0] sm:$0xff]
    %v3010 = vld [vmem:[#allocation6 + $0x4a8] sm:$0xff]
    %v3011 = vld [vmem:[#allocation6 + $0x4b0] sm:$0xff]
    %v3012 = vld [vmem:[#allocation6 + $0x4b8] sm:$0xff]
    %v3013 = vld [vmem:[#allocation6 + $0x4c0] sm:$0xff]
    %v3014 = vld [vmem:[#allocation6 + $0x4c8] sm:$0xff]
    %v3015 = vld [vmem:[#allocation6 + $0x4d0] sm:$0xff]
    %v3016 = vld [vmem:[#allocation6 + $0x4d8] sm:$0xff]
    %v3017 = vld [vmem:[#allocation6 + $0x4e0] sm:$0xff]
    %v3018 = vld [vmem:[#allocation6 + $0x4e8] sm:$0xff]
    %v3019 = vld [vmem:[#allocation6 + $0x4f0] sm:$0xff]
    %v3020 = vld [vmem:[#allocation6 + $0x4f8] sm:$0xff]
    %v3021 = vld [vmem:[#allocation6 + $0x500] sm:$0xff]
    %v3022 = vld [vmem:[#allocation6 + $0x508] sm:$0xff]
    %v3023 = vld [vmem:[#allocation6 + $0x510] sm:$0xff]
    %v3024 = vld [vmem:[#allocation6 + $0x518] sm:$0xff]
    %v3025 = vld [vmem:[#allocation6 + $0x520] sm:$0xff]
    %v3026 = vld [vmem:[#allocation6 + $0x528] sm:$0xff]
    %v3027 = vld [vmem:[#allocation6 + $0x530] sm:$0xff]
    %v3028 = vld [vmem:[#allocation6 + $0x538] sm:$0xff]
    %v3029 = vld [vmem:[#allocation6 + $0x540] sm:$0xff]
    %v3030 = vld [vmem:[#allocation6 + $0x548] sm:$0xff]
    %v3031 = vld [vmem:[#allocation6 + $0x550] sm:$0xff]
    %v3032 = vld [vmem:[#allocation6 + $0x558] sm:$0xff]
    %v3033 = vld [vmem:[#allocation6 + $0x560] sm:$0xff]
    %v3034 = vld [vmem:[#allocation6 + $0x568] sm:$0xff]
    %v3035 = vld [vmem:[#allocation6 + $0x570] sm:$0xff]
    %v3036 = vld [vmem:[#allocation6 + $0x578] sm:$0xff]
    %v3037 = vld [vmem:[#allocation6 + $0x580] sm:$0xff]
    %v3038 = vld [vmem:[#allocation6 + $0x588] sm:$0xff]
    %v3039 = vld [vmem:[#allocation6 + $0x590] sm:$0xff]
    %v3040 = vld [vmem:[#allocation6 + $0x598] sm:$0xff]
    %v3041 = vld [vmem:[#allocation6 + $0x5a0] sm:$0xff]
    %v3042 = vld [vmem:[#allocation6 + $0x5a8] sm:$0xff]
    %v3043 = vld [vmem:[#allocation6 + $0x5b0] sm:$0xff]
    %v3044 = vld [vmem:[#allocation6 + $0x5b8] sm:$0xff]
    %v3045 = vld [vmem:[#allocation6 + $0x5c0] sm:$0xff]
    %v3046 = vld [vmem:[#allocation6 + $0x5c8] sm:$0xff]
    %v3047 = vld [vmem:[#allocation6 + $0x5d0] sm:$0xff]
    %v3048 = vld [vmem:[#allocation6 + $0x5d8] sm:$0xff]
    %v3049 = vld [vmem:[#allocation6 + $0x5e0] sm:$0xff]
    %v3050 = vld [vmem:[#allocation6 + $0x5e8] sm:$0xff]
    %v3051 = vld [vmem:[#allocation6 + $0x5f0] sm:$0xff]
    %v3052 = vld [vmem:[#allocation6 + $0x5f8] sm:$0xff]
    %3053 = vmatprep.subr.mxu0 %v2952
    %3054 = vmatpush1.msra.mxu0 %v2951
    %3055 = vmatprep.subr.mxu0 %v2946
    %3056 = vmatpush1.msra.mxu0 %v2945
    %3057 = vmatprep.subr.mxu0 %v2940
    %3058 = vmatpush1.msra.mxu0 %v2939
    %3059 = vmatprep.subr.mxu0 %v2934
    %3060 = vmatpush1.msra.mxu0 %v2933
    %3061 = vmatprep.subr.mxu0 %v2928
    %3062 = vmatpush1.msra.mxu0 %v2927
    %3063 = vmatprep.subr.mxu0 %v2922
    %3064 = vmatpush1.msra.mxu0 %v2921
    %3065 = vmatprep.subr.mxu0 %v2916
    %3066 = vmatpush1.msra.mxu0 %v2915
    %3067 = vmatprep.subr.mxu0 %v2910
    %3068 = vmatpush1.msra.mxu0 %v2909
    %3069 = vmatprep.subr.mxu0 %v2904
    %3070 = vmatpush1.msra.mxu0 %v2903
    %3071 = vmatprep.subr.mxu0 %v2898
    %3072 = vmatpush1.msra.mxu0 %v2897
    %3073 = vmatprep.subr.mxu0 %v2892
    %3074 = vmatpush1.msra.mxu0 %v2891
    %3075 = vmatprep.subr.mxu0 %v2886
    %3076 = vmatpush1.msra.mxu0 %v2885
    %3077 = vmatprep.subr.mxu0 %v2880
    %3078 = vmatpush1.msra.mxu0 %v2879
    %3079 = vmatprep.subr.mxu0 %v2874
    %3080 = vmatpush1.msra.mxu0 %v2873
    %3081 = vmatprep.subr.mxu0 %v2868
    %3082 = vmatpush1.msra.mxu0 %v2867
    %3083 = vmatprep.subr.mxu0 %v2862
    %3084 = vmatpush1.msra.mxu0 %v2861
    %3085 = vmatprep.subr.mxu0 %v3048
    %3086 = vmatpush2.msra.mxu0 %v3047
    %3087 = vmatprep.subr.mxu0 %v3042
    %3088 = vmatpush2.msra.mxu0 %v3041
    %3089 = vmatprep.subr.mxu0 %v3036
    %3090 = vmatpush2.msra.mxu0 %v3035
    %3091 = vmatprep.subr.mxu0 %v3030
    %3092 = vmatpush2.msra.mxu0 %v3029
    %3093 = vmatprep.subr.mxu0 %v3024
    %3094 = vmatpush2.msra.mxu0 %v3023
    %3095 = vmatprep.subr.mxu0 %v3018
    %3096 = vmatpush2.msra.mxu0 %v3017
    %3097 = vmatprep.subr.mxu0 %v3012
    %3098 = vmatpush2.msra.mxu0 %v3011
    %3099 = vmatprep.subr.mxu0 %v3006
    %3100 = vmatpush2.msra.mxu0 %v3005
    %3101 = vmatprep.subr.mxu0 %v3000
    %3102 = vmatpush2.msra.mxu0 %v2999
    %3103 = vmatprep.subr.mxu0 %v2994
    %3104 = vmatpush2.msra.mxu0 %v2993
    %3105 = vmatprep.subr.mxu0 %v2988
    %3106 = vmatpush2.msra.mxu0 %v2987
    %3107 = vmatprep.subr.mxu0 %v2982
    %3108 = vmatpush2.msra.mxu0 %v2981
    %3109 = vmatprep.subr.mxu0 %v2976
    %3110 = vmatpush2.msra.mxu0 %v2975
    %3111 = vmatprep.subr.mxu0 %v2970
    %3112 = vmatpush2.msra.mxu0 %v2969
    %3113 = vmatprep.subr.mxu0 %v2964
    %3114 = vmatpush2.msra.mxu0 %v2963
    %3115 = vmatprep.subr.mxu0 %v2958
    %3116 = vmatpush2.msra.mxu0 %v2957
    %3117 = vmatprep.mubr.f32.mxu0 %v2848
    %3118 = vmatmul.mubr.f32.gmra.mxu0 %v2847
    %v3119 = vpop.f32.mrf.mxu0
    %v3120 = vadd.f32 0.0, %v3119
    %v3121 = vpop.f32.mrf.mxu0
    %v3122 = vadd.f32 0.0, %v3121
    %3123 = vdwg.mxu0
    %3124 = vmatprep.subr.mxu0 %v2954
    %3125 = vmatpush1.msra.mxu0 %v2953
    %3126 = vmatprep.subr.mxu0 %v2948
    %3127 = vmatpush1.msra.mxu0 %v2947
    %3128 = vmatprep.subr.mxu0 %v2942
    %3129 = vmatpush1.msra.mxu0 %v2941
    %3130 = vmatprep.subr.mxu0 %v2936
    %3131 = vmatpush1.msra.mxu0 %v2935
    %3132 = vmatprep.subr.mxu0 %v2930
    %3133 = vmatpush1.msra.mxu0 %v2929
    %3134 = vmatprep.subr.mxu0 %v2924
    %3135 = vmatpush1.msra.mxu0 %v2923
    %3136 = vmatprep.subr.mxu0 %v2918
    %3137 = vmatpush1.msra.mxu0 %v2917
    %3138 = vmatprep.subr.mxu0 %v2912
    %3139 = vmatpush1.msra.mxu0 %v2911
    %3140 = vmatprep.subr.mxu0 %v2906
    %3141 = vmatpush1.msra.mxu0 %v2905
    %3142 = vmatprep.subr.mxu0 %v2900
    %3143 = vmatpush1.msra.mxu0 %v2899
    %3144 = vmatprep.subr.mxu0 %v2894
    %3145 = vmatpush1.msra.mxu0 %v2893
    %3146 = vmatprep.subr.mxu0 %v2888
    %3147 = vmatpush1.msra.mxu0 %v2887
    %3148 = vmatprep.subr.mxu0 %v2882
    %3149 = vmatpush1.msra.mxu0 %v2881
    %3150 = vmatprep.subr.mxu0 %v2876
    %3151 = vmatpush1.msra.mxu0 %v2875
    %3152 = vmatprep.subr.mxu0 %v2870
    %3153 = vmatpush1.msra.mxu0 %v2869
    %3154 = vmatprep.subr.mxu0 %v2864
    %3155 = vmatpush1.msra.mxu0 %v2863
    %3156 = vmatprep.subr.mxu0 %v3050
    %3157 = vmatpush2.msra.mxu0 %v3049
    %3158 = vmatprep.subr.mxu0 %v3044
    %3159 = vmatpush2.msra.mxu0 %v3043
    %3160 = vmatprep.subr.mxu0 %v3038
    %3161 = vmatpush2.msra.mxu0 %v3037
    %3162 = vmatprep.subr.mxu0 %v3032
    %3163 = vmatpush2.msra.mxu0 %v3031
    %3164 = vmatprep.subr.mxu0 %v3026
    %3165 = vmatpush2.msra.mxu0 %v3025
    %3166 = vmatprep.subr.mxu0 %v3020
    %3167 = vmatpush2.msra.mxu0 %v3019
    %3168 = vmatprep.subr.mxu0 %v3014
    %3169 = vmatpush2.msra.mxu0 %v3013
    %3170 = vmatprep.subr.mxu0 %v3008
    %3171 = vmatpush2.msra.mxu0 %v3007
    %3172 = vmatprep.subr.mxu0 %v3002
    %3173 = vmatpush2.msra.mxu0 %v3001
    %3174 = vmatprep.subr.mxu0 %v2996
    %3175 = vmatpush2.msra.mxu0 %v2995
    %3176 = vmatprep.subr.mxu0 %v2990
    %3177 = vmatpush2.msra.mxu0 %v2989
    %3178 = vmatprep.subr.mxu0 %v2984
    %3179 = vmatpush2.msra.mxu0 %v2983
    %3180 = vmatprep.subr.mxu0 %v2978
    %3181 = vmatpush2.msra.mxu0 %v2977
    %3182 = vmatprep.subr.mxu0 %v2972
    %3183 = vmatpush2.msra.mxu0 %v2971
    %3184 = vmatprep.subr.mxu0 %v2966
    %3185 = vmatpush2.msra.mxu0 %v2965
    %3186 = vmatprep.subr.mxu0 %v2960
    %3187 = vmatpush2.msra.mxu0 %v2959
    %3188 = vmatprep.mubr.f32.mxu0 %v2848
    %3189 = vmatmul.mubr.f32.gmra.mxu0 %v2847
    %v3190 = vpop.f32.mrf.mxu0
    %v3191 = vadd.f32 0.0, %v3190
    %v3192 = vpop.f32.mrf.mxu0
    %v3193 = vadd.f32 0.0, %v3192
    %3194 = vdwg.mxu0
    %3195 = vmatprep.subr.mxu0 %v2956
    %3196 = vmatpush1.msra.mxu0 %v2955
    %3197 = vmatprep.subr.mxu0 %v2950
    %3198 = vmatpush1.msra.mxu0 %v2949
    %3199 = vmatprep.subr.mxu0 %v2944
    %3200 = vmatpush1.msra.mxu0 %v2943
    %3201 = vmatprep.subr.mxu0 %v2938
    %3202 = vmatpush1.msra.mxu0 %v2937
    %3203 = vmatprep.subr.mxu0 %v2932
    %3204 = vmatpush1.msra.mxu0 %v2931
    %3205 = vmatprep.subr.mxu0 %v2926
    %3206 = vmatpush1.msra.mxu0 %v2925
    %3207 = vmatprep.subr.mxu0 %v2920
    %3208 = vmatpush1.msra.mxu0 %v2919
    %3209 = vmatprep.subr.mxu0 %v2914
    %3210 = vmatpush1.msra.mxu0 %v2913
    %3211 = vmatprep.subr.mxu0 %v2908
    %3212 = vmatpush1.msra.mxu0 %v2907
    %3213 = vmatprep.subr.mxu0 %v2902
    %3214 = vmatpush1.msra.mxu0 %v2901
    %3215 = vmatprep.subr.mxu0 %v2896
    %3216 = vmatpush1.msra.mxu0 %v2895
    %3217 = vmatprep.subr.mxu0 %v2890
    %3218 = vmatpush1.msra.mxu0 %v2889
    %3219 = vmatprep.subr.mxu0 %v2884
    %3220 = vmatpush1.msra.mxu0 %v2883
    %3221 = vmatprep.subr.mxu0 %v2878
    %3222 = vmatpush1.msra.mxu0 %v2877
    %3223 = vmatprep.subr.mxu0 %v2872
    %3224 = vmatpush1.msra.mxu0 %v2871
    %3225 = vmatprep.subr.mxu0 %v2866
    %3226 = vmatpush1.msra.mxu0 %v2865
    %3227 = vmatprep.subr.mxu0 %v3052
    %3228 = vmatpush2.msra.mxu0 %v3051
    %3229 = vmatprep.subr.mxu0 %v3046
    %3230 = vmatpush2.msra.mxu0 %v3045
    %3231 = vmatprep.subr.mxu0 %v3040
    %3232 = vmatpush2.msra.mxu0 %v3039
    %3233 = vmatprep.subr.mxu0 %v3034
    %3234 = vmatpush2.msra.mxu0 %v3033
    %3235 = vmatprep.subr.mxu0 %v3028
    %3236 = vmatpush2.msra.mxu0 %v3027
    %3237 = vmatprep.subr.mxu0 %v3022
    %3238 = vmatpush2.msra.mxu0 %v3021
    %3239 = vmatprep.subr.mxu0 %v3016
    %3240 = vmatpush2.msra.mxu0 %v3015
    %3241 = vmatprep.subr.mxu0 %v3010
    %3242 = vmatpush2.msra.mxu0 %v3009
    %3243 = vmatprep.subr.mxu0 %v3004
    %3244 = vmatpush2.msra.mxu0 %v3003
    %3245 = vmatprep.subr.mxu0 %v2998
    %3246 = vmatpush2.msra.mxu0 %v2997
    %3247 = vmatprep.subr.mxu0 %v2992
    %3248 = vmatpush2.msra.mxu0 %v2991
    %3249 = vmatprep.subr.mxu0 %v2986
    %3250 = vmatpush2.msra.mxu0 %v2985
    %3251 = vmatprep.subr.mxu0 %v2980
    %3252 = vmatpush2.msra.mxu0 %v2979
    %3253 = vmatprep.subr.mxu0 %v2974
    %3254 = vmatpush2.msra.mxu0 %v2973
    %3255 = vmatprep.subr.mxu0 %v2968
    %3256 = vmatpush2.msra.mxu0 %v2967
    %3257 = vmatprep.subr.mxu0 %v2962
    %3258 = vmatpush2.msra.mxu0 %v2961
    %3259 = vmatprep.mubr.f32.mxu0 %v2848
    %3260 = vmatmul.mubr.f32.gmra.mxu0 %v2847
    %v3261 = vpop.f32.mrf.mxu0
    %v3262 = vadd.f32 0.0, %v3261
    %v3263 = vpop.f32.mrf.mxu0
    %v3264 = vadd.f32 0.0, %v3263
    %3265 = vdwg.mxu0
    %v3266 = vadd.f32 %v2855, %v3120
    %v3267 = vadd.f32 %v2856, %v3122
    %v3268 = vxor.u32 %v3266, 2147483648
    %v3269 = vxor.u32 %v3267, 2147483648
    %v3270 = vmul.f32 %v3268, 1.442695
    %v3271 = vpow.pop %v3270
    %v3272 = vmul.f32 %v3269, 1.442695
    %v3273 = vpow.pop %v3272
    %v3274 = vadd.f32 %v3271, 1.0
    %v3275 = vadd.f32 %v3273, 1.0
    %v3276 = vrcp.pop %v3274
    %v3277 = vmul.f32 1.0, %v3276
    %v3278 = vrcp.pop %v3275
    %v3279 = vmul.f32 1.0, %v3278
    %v3280 = vadd.f32 %v2857, %v3191
    %v3281 = vadd.f32 %v2858, %v3193
    %v3282 = vxor.u32 %v3280, 2147483648
    %v3283 = vxor.u32 %v3281, 2147483648
    %v3284 = vmul.f32 %v3282, 1.442695
    %v3285 = vpow.pop %v3284
    %v3286 = vmul.f32 %v3283, 1.442695
    %v3287 = vpow.pop %v3286
    %v3288 = vadd.f32 %v3285, 1.0
    %v3289 = vadd.f32 %v3287, 1.0
    %v3290 = vrcp.pop %v3288
    %v3291 = vmul.f32 1.0, %v3290
    %v3292 = vrcp.pop %v3289
    %v3293 = vmul.f32 1.0, %v3292
    %v3294 = vadd.f32 %v3262, %v82
    %v3295 = vadd.f32 %v3264, %v86
    %v3296 = vmul.f32 %v3277, %v3294
    %v3297 = vmul.f32 %v3279, %v3295
    %v3298 = vadd.f32 %v2859, %v3296
    %v3299 = vadd.f32 %v2860, %v3297
    %v3300 = vtanh.pop %v3298
    %v3301 = vtanh.pop %v3299
    %v3302 = vsub.f32 %v2847, %v3300
    %v3303 = vsub.f32 %v2848, %v3301
    %v3304 = vmul.f32 %v3291, %v3302
    %v3305 = vmul.f32 %v3293, %v3303
    %v3306 = vadd.f32 %v3300, %v3304
    %v3307 = vadd.f32 %v3301, %v3305
    %s3308 = smul.u32 6, 2
    %s3309 = smul.addr %s3308, 8
    %s3310 = scalar_lea.vmem [#allocation2], %s3309
    %3311 = vst [vmem:[%s3310] sm:$0xff] %v3306
    %3312 = vst [vmem:[%s3310 + $0x8] sm:$0xff] %v3307
    %s3313 = scalar_lea.vmem [#allocation3], 336
    %v3314 = vld [vmem:[%s3313] sm:$0xff]
    %v3315 = vld [vmem:[%s3313 + $0x8] sm:$0xff]
    %v3316 = vld [vmem:[%s3313 + $0x10] sm:$0xff]
    %v3317 = vld [vmem:[%s3313 + $0x18] sm:$0xff]
    %v3318 = vld [vmem:[%s3313 + $0x20] sm:$0xff]
    %v3319 = vld [vmem:[%s3313 + $0x28] sm:$0xff]
    %v3320 = vld [vmem:[#allocation6] sm:$0xff]
    %v3321 = vld [vmem:[#allocation6 + $0x8] sm:$0xff]
    %v3322 = vld [vmem:[#allocation6 + $0x10] sm:$0xff]
    %v3323 = vld [vmem:[#allocation6 + $0x18] sm:$0xff]
    %v3324 = vld [vmem:[#allocation6 + $0x20] sm:$0xff]
    %v3325 = vld [vmem:[#allocation6 + $0x28] sm:$0xff]
    %v3326 = vld [vmem:[#allocation6 + $0x30] sm:$0xff]
    %v3327 = vld [vmem:[#allocation6 + $0x38] sm:$0xff]
    %v3328 = vld [vmem:[#allocation6 + $0x40] sm:$0xff]
    %v3329 = vld [vmem:[#allocation6 + $0x48] sm:$0xff]
    %v3330 = vld [vmem:[#allocation6 + $0x50] sm:$0xff]
    %v3331 = vld [vmem:[#allocation6 + $0x58] sm:$0xff]
    %v3332 = vld [vmem:[#allocation6 + $0x60] sm:$0xff]
    %v3333 = vld [vmem:[#allocation6 + $0x68] sm:$0xff]
    %v3334 = vld [vmem:[#allocation6 + $0x70] sm:$0xff]
    %v3335 = vld [vmem:[#allocation6 + $0x78] sm:$0xff]
    %v3336 = vld [vmem:[#allocation6 + $0x80] sm:$0xff]
    %v3337 = vld [vmem:[#allocation6 + $0x88] sm:$0xff]
    %v3338 = vld [vmem:[#allocation6 + $0x90] sm:$0xff]
    %v3339 = vld [vmem:[#allocation6 + $0x98] sm:$0xff]
    %v3340 = vld [vmem:[#allocation6 + $0xa0] sm:$0xff]
    %v3341 = vld [vmem:[#allocation6 + $0xa8] sm:$0xff]
    %v3342 = vld [vmem:[#allocation6 + $0xb0] sm:$0xff]
    %v3343 = vld [vmem:[#allocation6 + $0xb8] sm:$0xff]
    %v3344 = vld [vmem:[#allocation6 + $0xc0] sm:$0xff]
    %v3345 = vld [vmem:[#allocation6 + $0xc8] sm:$0xff]
    %v3346 = vld [vmem:[#allocation6 + $0xd0] sm:$0xff]
    %v3347 = vld [vmem:[#allocation6 + $0xd8] sm:$0xff]
    %v3348 = vld [vmem:[#allocation6 + $0xe0] sm:$0xff]
    %v3349 = vld [vmem:[#allocation6 + $0xe8] sm:$0xff]
    %v3350 = vld [vmem:[#allocation6 + $0xf0] sm:$0xff]
    %v3351 = vld [vmem:[#allocation6 + $0xf8] sm:$0xff]
    %v3352 = vld [vmem:[#allocation6 + $0x100] sm:$0xff]
    %v3353 = vld [vmem:[#allocation6 + $0x108] sm:$0xff]
    %v3354 = vld [vmem:[#allocation6 + $0x110] sm:$0xff]
    %v3355 = vld [vmem:[#allocation6 + $0x118] sm:$0xff]
    %v3356 = vld [vmem:[#allocation6 + $0x120] sm:$0xff]
    %v3357 = vld [vmem:[#allocation6 + $0x128] sm:$0xff]
    %v3358 = vld [vmem:[#allocation6 + $0x130] sm:$0xff]
    %v3359 = vld [vmem:[#allocation6 + $0x138] sm:$0xff]
    %v3360 = vld [vmem:[#allocation6 + $0x140] sm:$0xff]
    %v3361 = vld [vmem:[#allocation6 + $0x148] sm:$0xff]
    %v3362 = vld [vmem:[#allocation6 + $0x150] sm:$0xff]
    %v3363 = vld [vmem:[#allocation6 + $0x158] sm:$0xff]
    %v3364 = vld [vmem:[#allocation6 + $0x160] sm:$0xff]
    %v3365 = vld [vmem:[#allocation6 + $0x168] sm:$0xff]
    %v3366 = vld [vmem:[#allocation6 + $0x170] sm:$0xff]
    %v3367 = vld [vmem:[#allocation6 + $0x178] sm:$0xff]
    %v3368 = vld [vmem:[#allocation6 + $0x180] sm:$0xff]
    %v3369 = vld [vmem:[#allocation6 + $0x188] sm:$0xff]
    %v3370 = vld [vmem:[#allocation6 + $0x190] sm:$0xff]
    %v3371 = vld [vmem:[#allocation6 + $0x198] sm:$0xff]
    %v3372 = vld [vmem:[#allocation6 + $0x1a0] sm:$0xff]
    %v3373 = vld [vmem:[#allocation6 + $0x1a8] sm:$0xff]
    %v3374 = vld [vmem:[#allocation6 + $0x1b0] sm:$0xff]
    %v3375 = vld [vmem:[#allocation6 + $0x1b8] sm:$0xff]
    %v3376 = vld [vmem:[#allocation6 + $0x1c0] sm:$0xff]
    %v3377 = vld [vmem:[#allocation6 + $0x1c8] sm:$0xff]
    %v3378 = vld [vmem:[#allocation6 + $0x1d0] sm:$0xff]
    %v3379 = vld [vmem:[#allocation6 + $0x1d8] sm:$0xff]
    %v3380 = vld [vmem:[#allocation6 + $0x1e0] sm:$0xff]
    %v3381 = vld [vmem:[#allocation6 + $0x1e8] sm:$0xff]
    %v3382 = vld [vmem:[#allocation6 + $0x1f0] sm:$0xff]
    %v3383 = vld [vmem:[#allocation6 + $0x1f8] sm:$0xff]
    %v3384 = vld [vmem:[#allocation6 + $0x200] sm:$0xff]
    %v3385 = vld [vmem:[#allocation6 + $0x208] sm:$0xff]
    %v3386 = vld [vmem:[#allocation6 + $0x210] sm:$0xff]
    %v3387 = vld [vmem:[#allocation6 + $0x218] sm:$0xff]
    %v3388 = vld [vmem:[#allocation6 + $0x220] sm:$0xff]
    %v3389 = vld [vmem:[#allocation6 + $0x228] sm:$0xff]
    %v3390 = vld [vmem:[#allocation6 + $0x230] sm:$0xff]
    %v3391 = vld [vmem:[#allocation6 + $0x238] sm:$0xff]
    %v3392 = vld [vmem:[#allocation6 + $0x240] sm:$0xff]
    %v3393 = vld [vmem:[#allocation6 + $0x248] sm:$0xff]
    %v3394 = vld [vmem:[#allocation6 + $0x250] sm:$0xff]
    %v3395 = vld [vmem:[#allocation6 + $0x258] sm:$0xff]
    %v3396 = vld [vmem:[#allocation6 + $0x260] sm:$0xff]
    %v3397 = vld [vmem:[#allocation6 + $0x268] sm:$0xff]
    %v3398 = vld [vmem:[#allocation6 + $0x270] sm:$0xff]
    %v3399 = vld [vmem:[#allocation6 + $0x278] sm:$0xff]
    %v3400 = vld [vmem:[#allocation6 + $0x280] sm:$0xff]
    %v3401 = vld [vmem:[#allocation6 + $0x288] sm:$0xff]
    %v3402 = vld [vmem:[#allocation6 + $0x290] sm:$0xff]
    %v3403 = vld [vmem:[#allocation6 + $0x298] sm:$0xff]
    %v3404 = vld [vmem:[#allocation6 + $0x2a0] sm:$0xff]
    %v3405 = vld [vmem:[#allocation6 + $0x2a8] sm:$0xff]
    %v3406 = vld [vmem:[#allocation6 + $0x2b0] sm:$0xff]
    %v3407 = vld [vmem:[#allocation6 + $0x2b8] sm:$0xff]
    %v3408 = vld [vmem:[#allocation6 + $0x2c0] sm:$0xff]
    %v3409 = vld [vmem:[#allocation6 + $0x2c8] sm:$0xff]
    %v3410 = vld [vmem:[#allocation6 + $0x2d0] sm:$0xff]
    %v3411 = vld [vmem:[#allocation6 + $0x2d8] sm:$0xff]
    %v3412 = vld [vmem:[#allocation6 + $0x2e0] sm:$0xff]
    %v3413 = vld [vmem:[#allocation6 + $0x2e8] sm:$0xff]
    %v3414 = vld [vmem:[#allocation6 + $0x2f0] sm:$0xff]
    %v3415 = vld [vmem:[#allocation6 + $0x2f8] sm:$0xff]
    %v3416 = vld [vmem:[#allocation6 + $0x300] sm:$0xff]
    %v3417 = vld [vmem:[#allocation6 + $0x308] sm:$0xff]
    %v3418 = vld [vmem:[#allocation6 + $0x310] sm:$0xff]
    %v3419 = vld [vmem:[#allocation6 + $0x318] sm:$0xff]
    %v3420 = vld [vmem:[#allocation6 + $0x320] sm:$0xff]
    %v3421 = vld [vmem:[#allocation6 + $0x328] sm:$0xff]
    %v3422 = vld [vmem:[#allocation6 + $0x330] sm:$0xff]
    %v3423 = vld [vmem:[#allocation6 + $0x338] sm:$0xff]
    %v3424 = vld [vmem:[#allocation6 + $0x340] sm:$0xff]
    %v3425 = vld [vmem:[#allocation6 + $0x348] sm:$0xff]
    %v3426 = vld [vmem:[#allocation6 + $0x350] sm:$0xff]
    %v3427 = vld [vmem:[#allocation6 + $0x358] sm:$0xff]
    %v3428 = vld [vmem:[#allocation6 + $0x360] sm:$0xff]
    %v3429 = vld [vmem:[#allocation6 + $0x368] sm:$0xff]
    %v3430 = vld [vmem:[#allocation6 + $0x370] sm:$0xff]
    %v3431 = vld [vmem:[#allocation6 + $0x378] sm:$0xff]
    %v3432 = vld [vmem:[#allocation6 + $0x380] sm:$0xff]
    %v3433 = vld [vmem:[#allocation6 + $0x388] sm:$0xff]
    %v3434 = vld [vmem:[#allocation6 + $0x390] sm:$0xff]
    %v3435 = vld [vmem:[#allocation6 + $0x398] sm:$0xff]
    %v3436 = vld [vmem:[#allocation6 + $0x3a0] sm:$0xff]
    %v3437 = vld [vmem:[#allocation6 + $0x3a8] sm:$0xff]
    %v3438 = vld [vmem:[#allocation6 + $0x3b0] sm:$0xff]
    %v3439 = vld [vmem:[#allocation6 + $0x3b8] sm:$0xff]
    %v3440 = vld [vmem:[#allocation6 + $0x3c0] sm:$0xff]
    %v3441 = vld [vmem:[#allocation6 + $0x3c8] sm:$0xff]
    %v3442 = vld [vmem:[#allocation6 + $0x3d0] sm:$0xff]
    %v3443 = vld [vmem:[#allocation6 + $0x3d8] sm:$0xff]
    %v3444 = vld [vmem:[#allocation6 + $0x3e0] sm:$0xff]
    %v3445 = vld [vmem:[#allocation6 + $0x3e8] sm:$0xff]
    %v3446 = vld [vmem:[#allocation6 + $0x3f0] sm:$0xff]
    %v3447 = vld [vmem:[#allocation6 + $0x3f8] sm:$0xff]
    %v3448 = vld [vmem:[#allocation6 + $0x400] sm:$0xff]
    %v3449 = vld [vmem:[#allocation6 + $0x408] sm:$0xff]
    %v3450 = vld [vmem:[#allocation6 + $0x410] sm:$0xff]
    %v3451 = vld [vmem:[#allocation6 + $0x418] sm:$0xff]
    %v3452 = vld [vmem:[#allocation6 + $0x420] sm:$0xff]
    %v3453 = vld [vmem:[#allocation6 + $0x428] sm:$0xff]
    %v3454 = vld [vmem:[#allocation6 + $0x430] sm:$0xff]
    %v3455 = vld [vmem:[#allocation6 + $0x438] sm:$0xff]
    %v3456 = vld [vmem:[#allocation6 + $0x440] sm:$0xff]
    %v3457 = vld [vmem:[#allocation6 + $0x448] sm:$0xff]
    %v3458 = vld [vmem:[#allocation6 + $0x450] sm:$0xff]
    %v3459 = vld [vmem:[#allocation6 + $0x458] sm:$0xff]
    %v3460 = vld [vmem:[#allocation6 + $0x460] sm:$0xff]
    %v3461 = vld [vmem:[#allocation6 + $0x468] sm:$0xff]
    %v3462 = vld [vmem:[#allocation6 + $0x470] sm:$0xff]
    %v3463 = vld [vmem:[#allocation6 + $0x478] sm:$0xff]
    %v3464 = vld [vmem:[#allocation6 + $0x480] sm:$0xff]
    %v3465 = vld [vmem:[#allocation6 + $0x488] sm:$0xff]
    %v3466 = vld [vmem:[#allocation6 + $0x490] sm:$0xff]
    %v3467 = vld [vmem:[#allocation6 + $0x498] sm:$0xff]
    %v3468 = vld [vmem:[#allocation6 + $0x4a0] sm:$0xff]
    %v3469 = vld [vmem:[#allocation6 + $0x4a8] sm:$0xff]
    %v3470 = vld [vmem:[#allocation6 + $0x4b0] sm:$0xff]
    %v3471 = vld [vmem:[#allocation6 + $0x4b8] sm:$0xff]
    %v3472 = vld [vmem:[#allocation6 + $0x4c0] sm:$0xff]
    %v3473 = vld [vmem:[#allocation6 + $0x4c8] sm:$0xff]
    %v3474 = vld [vmem:[#allocation6 + $0x4d0] sm:$0xff]
    %v3475 = vld [vmem:[#allocation6 + $0x4d8] sm:$0xff]
    %v3476 = vld [vmem:[#allocation6 + $0x4e0] sm:$0xff]
    %v3477 = vld [vmem:[#allocation6 + $0x4e8] sm:$0xff]
    %v3478 = vld [vmem:[#allocation6 + $0x4f0] sm:$0xff]
    %v3479 = vld [vmem:[#allocation6 + $0x4f8] sm:$0xff]
    %v3480 = vld [vmem:[#allocation6 + $0x500] sm:$0xff]
    %v3481 = vld [vmem:[#allocation6 + $0x508] sm:$0xff]
    %v3482 = vld [vmem:[#allocation6 + $0x510] sm:$0xff]
    %v3483 = vld [vmem:[#allocation6 + $0x518] sm:$0xff]
    %v3484 = vld [vmem:[#allocation6 + $0x520] sm:$0xff]
    %v3485 = vld [vmem:[#allocation6 + $0x528] sm:$0xff]
    %v3486 = vld [vmem:[#allocation6 + $0x530] sm:$0xff]
    %v3487 = vld [vmem:[#allocation6 + $0x538] sm:$0xff]
    %v3488 = vld [vmem:[#allocation6 + $0x540] sm:$0xff]
    %v3489 = vld [vmem:[#allocation6 + $0x548] sm:$0xff]
    %v3490 = vld [vmem:[#allocation6 + $0x550] sm:$0xff]
    %v3491 = vld [vmem:[#allocation6 + $0x558] sm:$0xff]
    %v3492 = vld [vmem:[#allocation6 + $0x560] sm:$0xff]
    %v3493 = vld [vmem:[#allocation6 + $0x568] sm:$0xff]
    %v3494 = vld [vmem:[#allocation6 + $0x570] sm:$0xff]
    %v3495 = vld [vmem:[#allocation6 + $0x578] sm:$0xff]
    %v3496 = vld [vmem:[#allocation6 + $0x580] sm:$0xff]
    %v3497 = vld [vmem:[#allocation6 + $0x588] sm:$0xff]
    %v3498 = vld [vmem:[#allocation6 + $0x590] sm:$0xff]
    %v3499 = vld [vmem:[#allocation6 + $0x598] sm:$0xff]
    %v3500 = vld [vmem:[#allocation6 + $0x5a0] sm:$0xff]
    %v3501 = vld [vmem:[#allocation6 + $0x5a8] sm:$0xff]
    %v3502 = vld [vmem:[#allocation6 + $0x5b0] sm:$0xff]
    %v3503 = vld [vmem:[#allocation6 + $0x5b8] sm:$0xff]
    %v3504 = vld [vmem:[#allocation6 + $0x5c0] sm:$0xff]
    %v3505 = vld [vmem:[#allocation6 + $0x5c8] sm:$0xff]
    %v3506 = vld [vmem:[#allocation6 + $0x5d0] sm:$0xff]
    %v3507 = vld [vmem:[#allocation6 + $0x5d8] sm:$0xff]
    %v3508 = vld [vmem:[#allocation6 + $0x5e0] sm:$0xff]
    %v3509 = vld [vmem:[#allocation6 + $0x5e8] sm:$0xff]
    %v3510 = vld [vmem:[#allocation6 + $0x5f0] sm:$0xff]
    %v3511 = vld [vmem:[#allocation6 + $0x5f8] sm:$0xff]
    %3512 = vmatprep.subr.mxu0 %v3411
    %3513 = vmatpush1.msra.mxu0 %v3410
    %3514 = vmatprep.subr.mxu0 %v3405
    %3515 = vmatpush1.msra.mxu0 %v3404
    %3516 = vmatprep.subr.mxu0 %v3399
    %3517 = vmatpush1.msra.mxu0 %v3398
    %3518 = vmatprep.subr.mxu0 %v3393
    %3519 = vmatpush1.msra.mxu0 %v3392
    %3520 = vmatprep.subr.mxu0 %v3387
    %3521 = vmatpush1.msra.mxu0 %v3386
    %3522 = vmatprep.subr.mxu0 %v3381
    %3523 = vmatpush1.msra.mxu0 %v3380
    %3524 = vmatprep.subr.mxu0 %v3375
    %3525 = vmatpush1.msra.mxu0 %v3374
    %3526 = vmatprep.subr.mxu0 %v3369
    %3527 = vmatpush1.msra.mxu0 %v3368
    %3528 = vmatprep.subr.mxu0 %v3363
    %3529 = vmatpush1.msra.mxu0 %v3362
    %3530 = vmatprep.subr.mxu0 %v3357
    %3531 = vmatpush1.msra.mxu0 %v3356
    %3532 = vmatprep.subr.mxu0 %v3351
    %3533 = vmatpush1.msra.mxu0 %v3350
    %3534 = vmatprep.subr.mxu0 %v3345
    %3535 = vmatpush1.msra.mxu0 %v3344
    %3536 = vmatprep.subr.mxu0 %v3339
    %3537 = vmatpush1.msra.mxu0 %v3338
    %3538 = vmatprep.subr.mxu0 %v3333
    %3539 = vmatpush1.msra.mxu0 %v3332
    %3540 = vmatprep.subr.mxu0 %v3327
    %3541 = vmatpush1.msra.mxu0 %v3326
    %3542 = vmatprep.subr.mxu0 %v3321
    %3543 = vmatpush1.msra.mxu0 %v3320
    %3544 = vmatprep.subr.mxu0 %v3507
    %3545 = vmatpush2.msra.mxu0 %v3506
    %3546 = vmatprep.subr.mxu0 %v3501
    %3547 = vmatpush2.msra.mxu0 %v3500
    %3548 = vmatprep.subr.mxu0 %v3495
    %3549 = vmatpush2.msra.mxu0 %v3494
    %3550 = vmatprep.subr.mxu0 %v3489
    %3551 = vmatpush2.msra.mxu0 %v3488
    %3552 = vmatprep.subr.mxu0 %v3483
    %3553 = vmatpush2.msra.mxu0 %v3482
    %3554 = vmatprep.subr.mxu0 %v3477
    %3555 = vmatpush2.msra.mxu0 %v3476
    %3556 = vmatprep.subr.mxu0 %v3471
    %3557 = vmatpush2.msra.mxu0 %v3470
    %3558 = vmatprep.subr.mxu0 %v3465
    %3559 = vmatpush2.msra.mxu0 %v3464
    %3560 = vmatprep.subr.mxu0 %v3459
    %3561 = vmatpush2.msra.mxu0 %v3458
    %3562 = vmatprep.subr.mxu0 %v3453
    %3563 = vmatpush2.msra.mxu0 %v3452
    %3564 = vmatprep.subr.mxu0 %v3447
    %3565 = vmatpush2.msra.mxu0 %v3446
    %3566 = vmatprep.subr.mxu0 %v3441
    %3567 = vmatpush2.msra.mxu0 %v3440
    %3568 = vmatprep.subr.mxu0 %v3435
    %3569 = vmatpush2.msra.mxu0 %v3434
    %3570 = vmatprep.subr.mxu0 %v3429
    %3571 = vmatpush2.msra.mxu0 %v3428
    %3572 = vmatprep.subr.mxu0 %v3423
    %3573 = vmatpush2.msra.mxu0 %v3422
    %3574 = vmatprep.subr.mxu0 %v3417
    %3575 = vmatpush2.msra.mxu0 %v3416
    %3576 = vmatprep.mubr.f32.mxu0 %v3307
    %3577 = vmatmul.mubr.f32.gmra.mxu0 %v3306
    %v3578 = vpop.f32.mrf.mxu0
    %v3579 = vadd.f32 0.0, %v3578
    %v3580 = vpop.f32.mrf.mxu0
    %v3581 = vadd.f32 0.0, %v3580
    %3582 = vdwg.mxu0
    %3583 = vmatprep.subr.mxu0 %v3413
    %3584 = vmatpush1.msra.mxu0 %v3412
    %3585 = vmatprep.subr.mxu0 %v3407
    %3586 = vmatpush1.msra.mxu0 %v3406
    %3587 = vmatprep.subr.mxu0 %v3401
    %3588 = vmatpush1.msra.mxu0 %v3400
    %3589 = vmatprep.subr.mxu0 %v3395
    %3590 = vmatpush1.msra.mxu0 %v3394
    %3591 = vmatprep.subr.mxu0 %v3389
    %3592 = vmatpush1.msra.mxu0 %v3388
    %3593 = vmatprep.subr.mxu0 %v3383
    %3594 = vmatpush1.msra.mxu0 %v3382
    %3595 = vmatprep.subr.mxu0 %v3377
    %3596 = vmatpush1.msra.mxu0 %v3376
    %3597 = vmatprep.subr.mxu0 %v3371
    %3598 = vmatpush1.msra.mxu0 %v3370
    %3599 = vmatprep.subr.mxu0 %v3365
    %3600 = vmatpush1.msra.mxu0 %v3364
    %3601 = vmatprep.subr.mxu0 %v3359
    %3602 = vmatpush1.msra.mxu0 %v3358
    %3603 = vmatprep.subr.mxu0 %v3353
    %3604 = vmatpush1.msra.mxu0 %v3352
    %3605 = vmatprep.subr.mxu0 %v3347
    %3606 = vmatpush1.msra.mxu0 %v3346
    %3607 = vmatprep.subr.mxu0 %v3341
    %3608 = vmatpush1.msra.mxu0 %v3340
    %3609 = vmatprep.subr.mxu0 %v3335
    %3610 = vmatpush1.msra.mxu0 %v3334
    %3611 = vmatprep.subr.mxu0 %v3329
    %3612 = vmatpush1.msra.mxu0 %v3328
    %3613 = vmatprep.subr.mxu0 %v3323
    %3614 = vmatpush1.msra.mxu0 %v3322
    %3615 = vmatprep.subr.mxu0 %v3509
    %3616 = vmatpush2.msra.mxu0 %v3508
    %3617 = vmatprep.subr.mxu0 %v3503
    %3618 = vmatpush2.msra.mxu0 %v3502
    %3619 = vmatprep.subr.mxu0 %v3497
    %3620 = vmatpush2.msra.mxu0 %v3496
    %3621 = vmatprep.subr.mxu0 %v3491
    %3622 = vmatpush2.msra.mxu0 %v3490
    %3623 = vmatprep.subr.mxu0 %v3485
    %3624 = vmatpush2.msra.mxu0 %v3484
    %3625 = vmatprep.subr.mxu0 %v3479
    %3626 = vmatpush2.msra.mxu0 %v3478
    %3627 = vmatprep.subr.mxu0 %v3473
    %3628 = vmatpush2.msra.mxu0 %v3472
    %3629 = vmatprep.subr.mxu0 %v3467
    %3630 = vmatpush2.msra.mxu0 %v3466
    %3631 = vmatprep.subr.mxu0 %v3461
    %3632 = vmatpush2.msra.mxu0 %v3460
    %3633 = vmatprep.subr.mxu0 %v3455
    %3634 = vmatpush2.msra.mxu0 %v3454
    %3635 = vmatprep.subr.mxu0 %v3449
    %3636 = vmatpush2.msra.mxu0 %v3448
    %3637 = vmatprep.subr.mxu0 %v3443
    %3638 = vmatpush2.msra.mxu0 %v3442
    %3639 = vmatprep.subr.mxu0 %v3437
    %3640 = vmatpush2.msra.mxu0 %v3436
    %3641 = vmatprep.subr.mxu0 %v3431
    %3642 = vmatpush2.msra.mxu0 %v3430
    %3643 = vmatprep.subr.mxu0 %v3425
    %3644 = vmatpush2.msra.mxu0 %v3424
    %3645 = vmatprep.subr.mxu0 %v3419
    %3646 = vmatpush2.msra.mxu0 %v3418
    %3647 = vmatprep.mubr.f32.mxu0 %v3307
    %3648 = vmatmul.mubr.f32.gmra.mxu0 %v3306
    %v3649 = vpop.f32.mrf.mxu0
    %v3650 = vadd.f32 0.0, %v3649
    %v3651 = vpop.f32.mrf.mxu0
    %v3652 = vadd.f32 0.0, %v3651
    %3653 = vdwg.mxu0
    %3654 = vmatprep.subr.mxu0 %v3415
    %3655 = vmatpush1.msra.mxu0 %v3414
    %3656 = vmatprep.subr.mxu0 %v3409
    %3657 = vmatpush1.msra.mxu0 %v3408
    %3658 = vmatprep.subr.mxu0 %v3403
    %3659 = vmatpush1.msra.mxu0 %v3402
    %3660 = vmatprep.subr.mxu0 %v3397
    %3661 = vmatpush1.msra.mxu0 %v3396
    %3662 = vmatprep.subr.mxu0 %v3391
    %3663 = vmatpush1.msra.mxu0 %v3390
    %3664 = vmatprep.subr.mxu0 %v3385
    %3665 = vmatpush1.msra.mxu0 %v3384
    %3666 = vmatprep.subr.mxu0 %v3379
    %3667 = vmatpush1.msra.mxu0 %v3378
    %3668 = vmatprep.subr.mxu0 %v3373
    %3669 = vmatpush1.msra.mxu0 %v3372
    %3670 = vmatprep.subr.mxu0 %v3367
    %3671 = vmatpush1.msra.mxu0 %v3366
    %3672 = vmatprep.subr.mxu0 %v3361
    %3673 = vmatpush1.msra.mxu0 %v3360
    %3674 = vmatprep.subr.mxu0 %v3355
    %3675 = vmatpush1.msra.mxu0 %v3354
    %3676 = vmatprep.subr.mxu0 %v3349
    %3677 = vmatpush1.msra.mxu0 %v3348
    %3678 = vmatprep.subr.mxu0 %v3343
    %3679 = vmatpush1.msra.mxu0 %v3342
    %3680 = vmatprep.subr.mxu0 %v3337
    %3681 = vmatpush1.msra.mxu0 %v3336
    %3682 = vmatprep.subr.mxu0 %v3331
    %3683 = vmatpush1.msra.mxu0 %v3330
    %3684 = vmatprep.subr.mxu0 %v3325
    %3685 = vmatpush1.msra.mxu0 %v3324
    %3686 = vmatprep.subr.mxu0 %v3511
    %3687 = vmatpush2.msra.mxu0 %v3510
    %3688 = vmatprep.subr.mxu0 %v3505
    %3689 = vmatpush2.msra.mxu0 %v3504
    %3690 = vmatprep.subr.mxu0 %v3499
    %3691 = vmatpush2.msra.mxu0 %v3498
    %3692 = vmatprep.subr.mxu0 %v3493
    %3693 = vmatpush2.msra.mxu0 %v3492
    %3694 = vmatprep.subr.mxu0 %v3487
    %3695 = vmatpush2.msra.mxu0 %v3486
    %3696 = vmatprep.subr.mxu0 %v3481
    %3697 = vmatpush2.msra.mxu0 %v3480
    %3698 = vmatprep.subr.mxu0 %v3475
    %3699 = vmatpush2.msra.mxu0 %v3474
    %3700 = vmatprep.subr.mxu0 %v3469
    %3701 = vmatpush2.msra.mxu0 %v3468
    %3702 = vmatprep.subr.mxu0 %v3463
    %3703 = vmatpush2.msra.mxu0 %v3462
    %3704 = vmatprep.subr.mxu0 %v3457
    %3705 = vmatpush2.msra.mxu0 %v3456
    %3706 = vmatprep.subr.mxu0 %v3451
    %3707 = vmatpush2.msra.mxu0 %v3450
    %3708 = vmatprep.subr.mxu0 %v3445
    %3709 = vmatpush2.msra.mxu0 %v3444
    %3710 = vmatprep.subr.mxu0 %v3439
    %3711 = vmatpush2.msra.mxu0 %v3438
    %3712 = vmatprep.subr.mxu0 %v3433
    %3713 = vmatpush2.msra.mxu0 %v3432
    %3714 = vmatprep.subr.mxu0 %v3427
    %3715 = vmatpush2.msra.mxu0 %v3426
    %3716 = vmatprep.subr.mxu0 %v3421
    %3717 = vmatpush2.msra.mxu0 %v3420
    %3718 = vmatprep.mubr.f32.mxu0 %v3307
    %3719 = vmatmul.mubr.f32.gmra.mxu0 %v3306
    %v3720 = vpop.f32.mrf.mxu0
    %v3721 = vadd.f32 0.0, %v3720
    %v3722 = vpop.f32.mrf.mxu0
    %v3723 = vadd.f32 0.0, %v3722
    %3724 = vdwg.mxu0
    %v3725 = vadd.f32 %v3314, %v3579
    %v3726 = vadd.f32 %v3315, %v3581
    %v3727 = vxor.u32 %v3725, 2147483648
    %v3728 = vxor.u32 %v3726, 2147483648
    %v3729 = vmul.f32 %v3727, 1.442695
    %v3730 = vpow.pop %v3729
    %v3731 = vmul.f32 %v3728, 1.442695
    %v3732 = vpow.pop %v3731
    %v3733 = vadd.f32 %v3730, 1.0
    %v3734 = vadd.f32 %v3732, 1.0
    %v3735 = vrcp.pop %v3733
    %v3736 = vmul.f32 1.0, %v3735
    %v3737 = vrcp.pop %v3734
    %v3738 = vmul.f32 1.0, %v3737
    %v3739 = vadd.f32 %v3316, %v3650
    %v3740 = vadd.f32 %v3317, %v3652
    %v3741 = vxor.u32 %v3739, 2147483648
    %v3742 = vxor.u32 %v3740, 2147483648
    %v3743 = vmul.f32 %v3741, 1.442695
    %v3744 = vpow.pop %v3743
    %v3745 = vmul.f32 %v3742, 1.442695
    %v3746 = vpow.pop %v3745
    %v3747 = vadd.f32 %v3744, 1.0
    %v3748 = vadd.f32 %v3746, 1.0
    %v3749 = vrcp.pop %v3747
    %v3750 = vmul.f32 1.0, %v3749
    %v3751 = vrcp.pop %v3748
    %v3752 = vmul.f32 1.0, %v3751
    %v3753 = vadd.f32 %v3721, %v82
    %v3754 = vadd.f32 %v3723, %v86
    %v3755 = vmul.f32 %v3736, %v3753
    %v3756 = vmul.f32 %v3738, %v3754
    %v3757 = vadd.f32 %v3318, %v3755
    %v3758 = vadd.f32 %v3319, %v3756
    %v3759 = vtanh.pop %v3757
    %v3760 = vtanh.pop %v3758
    %v3761 = vsub.f32 %v3306, %v3759
    %v3762 = vsub.f32 %v3307, %v3760
    %v3763 = vmul.f32 %v3750, %v3761
    %v3764 = vmul.f32 %v3752, %v3762
    %v3765 = vadd.f32 %v3759, %v3763
    %v3766 = vadd.f32 %v3760, %v3764
    %s3767 = smul.u32 7, 2
    %s3768 = smul.addr %s3767, 8
    %s3769 = scalar_lea.vmem [#allocation2], %s3768
    %3770 = vst [vmem:[%s3769] sm:$0xff] %v3765
    %3771 = vst [vmem:[%s3769 + $0x8] sm:$0xff] %v3766
    %s3772 = scalar_lea.vmem [#allocation3], 384
    %v3773 = vld [vmem:[%s3772] sm:$0xff]
    %v3774 = vld [vmem:[%s3772 + $0x8] sm:$0xff]
    %v3775 = vld [vmem:[%s3772 + $0x10] sm:$0xff]
    %v3776 = vld [vmem:[%s3772 + $0x18] sm:$0xff]
    %v3777 = vld [vmem:[%s3772 + $0x20] sm:$0xff]
    %v3778 = vld [vmem:[%s3772 + $0x28] sm:$0xff]
    %v3779 = vld [vmem:[#allocation6] sm:$0xff]
    %v3780 = vld [vmem:[#allocation6 + $0x8] sm:$0xff]
    %v3781 = vld [vmem:[#allocation6 + $0x10] sm:$0xff]
    %v3782 = vld [vmem:[#allocation6 + $0x18] sm:$0xff]
    %v3783 = vld [vmem:[#allocation6 + $0x20] sm:$0xff]
    %v3784 = vld [vmem:[#allocation6 + $0x28] sm:$0xff]
    %v3785 = vld [vmem:[#allocation6 + $0x30] sm:$0xff]
    %v3786 = vld [vmem:[#allocation6 + $0x38] sm:$0xff]
    %v3787 = vld [vmem:[#allocation6 + $0x40] sm:$0xff]
    %v3788 = vld [vmem:[#allocation6 + $0x48] sm:$0xff]
    %v3789 = vld [vmem:[#allocation6 + $0x50] sm:$0xff]
    %v3790 = vld [vmem:[#allocation6 + $0x58] sm:$0xff]
    %v3791 = vld [vmem:[#allocation6 + $0x60] sm:$0xff]
    %v3792 = vld [vmem:[#allocation6 + $0x68] sm:$0xff]
    %v3793 = vld [vmem:[#allocation6 + $0x70] sm:$0xff]
    %v3794 = vld [vmem:[#allocation6 + $0x78] sm:$0xff]
    %v3795 = vld [vmem:[#allocation6 + $0x80] sm:$0xff]
    %v3796 = vld [vmem:[#allocation6 + $0x88] sm:$0xff]
    %v3797 = vld [vmem:[#allocation6 + $0x90] sm:$0xff]
    %v3798 = vld [vmem:[#allocation6 + $0x98] sm:$0xff]
    %v3799 = vld [vmem:[#allocation6 + $0xa0] sm:$0xff]
    %v3800 = vld [vmem:[#allocation6 + $0xa8] sm:$0xff]
    %v3801 = vld [vmem:[#allocation6 + $0xb0] sm:$0xff]
    %v3802 = vld [vmem:[#allocation6 + $0xb8] sm:$0xff]
    %v3803 = vld [vmem:[#allocation6 + $0xc0] sm:$0xff]
    %v3804 = vld [vmem:[#allocation6 + $0xc8] sm:$0xff]
    %v3805 = vld [vmem:[#allocation6 + $0xd0] sm:$0xff]
    %v3806 = vld [vmem:[#allocation6 + $0xd8] sm:$0xff]
    %v3807 = vld [vmem:[#allocation6 + $0xe0] sm:$0xff]
    %v3808 = vld [vmem:[#allocation6 + $0xe8] sm:$0xff]
    %v3809 = vld [vmem:[#allocation6 + $0xf0] sm:$0xff]
    %v3810 = vld [vmem:[#allocation6 + $0xf8] sm:$0xff]
    %v3811 = vld [vmem:[#allocation6 + $0x100] sm:$0xff]
    %v3812 = vld [vmem:[#allocation6 + $0x108] sm:$0xff]
    %v3813 = vld [vmem:[#allocation6 + $0x110] sm:$0xff]
    %v3814 = vld [vmem:[#allocation6 + $0x118] sm:$0xff]
    %v3815 = vld [vmem:[#allocation6 + $0x120] sm:$0xff]
    %v3816 = vld [vmem:[#allocation6 + $0x128] sm:$0xff]
    %v3817 = vld [vmem:[#allocation6 + $0x130] sm:$0xff]
    %v3818 = vld [vmem:[#allocation6 + $0x138] sm:$0xff]
    %v3819 = vld [vmem:[#allocation6 + $0x140] sm:$0xff]
    %v3820 = vld [vmem:[#allocation6 + $0x148] sm:$0xff]
    %v3821 = vld [vmem:[#allocation6 + $0x150] sm:$0xff]
    %v3822 = vld [vmem:[#allocation6 + $0x158] sm:$0xff]
    %v3823 = vld [vmem:[#allocation6 + $0x160] sm:$0xff]
    %v3824 = vld [vmem:[#allocation6 + $0x168] sm:$0xff]
    %v3825 = vld [vmem:[#allocation6 + $0x170] sm:$0xff]
    %v3826 = vld [vmem:[#allocation6 + $0x178] sm:$0xff]
    %v3827 = vld [vmem:[#allocation6 + $0x180] sm:$0xff]
    %v3828 = vld [vmem:[#allocation6 + $0x188] sm:$0xff]
    %v3829 = vld [vmem:[#allocation6 + $0x190] sm:$0xff]
    %v3830 = vld [vmem:[#allocation6 + $0x198] sm:$0xff]
    %v3831 = vld [vmem:[#allocation6 + $0x1a0] sm:$0xff]
    %v3832 = vld [vmem:[#allocation6 + $0x1a8] sm:$0xff]
    %v3833 = vld [vmem:[#allocation6 + $0x1b0] sm:$0xff]
    %v3834 = vld [vmem:[#allocation6 + $0x1b8] sm:$0xff]
    %v3835 = vld [vmem:[#allocation6 + $0x1c0] sm:$0xff]
    %v3836 = vld [vmem:[#allocation6 + $0x1c8] sm:$0xff]
    %v3837 = vld [vmem:[#allocation6 + $0x1d0] sm:$0xff]
    %v3838 = vld [vmem:[#allocation6 + $0x1d8] sm:$0xff]
    %v3839 = vld [vmem:[#allocation6 + $0x1e0] sm:$0xff]
    %v3840 = vld [vmem:[#allocation6 + $0x1e8] sm:$0xff]
    %v3841 = vld [vmem:[#allocation6 + $0x1f0] sm:$0xff]
    %v3842 = vld [vmem:[#allocation6 + $0x1f8] sm:$0xff]
    %v3843 = vld [vmem:[#allocation6 + $0x200] sm:$0xff]
    %v3844 = vld [vmem:[#allocation6 + $0x208] sm:$0xff]
    %v3845 = vld [vmem:[#allocation6 + $0x210] sm:$0xff]
    %v3846 = vld [vmem:[#allocation6 + $0x218] sm:$0xff]
    %v3847 = vld [vmem:[#allocation6 + $0x220] sm:$0xff]
    %v3848 = vld [vmem:[#allocation6 + $0x228] sm:$0xff]
    %v3849 = vld [vmem:[#allocation6 + $0x230] sm:$0xff]
    %v3850 = vld [vmem:[#allocation6 + $0x238] sm:$0xff]
    %v3851 = vld [vmem:[#allocation6 + $0x240] sm:$0xff]
    %v3852 = vld [vmem:[#allocation6 + $0x248] sm:$0xff]
    %v3853 = vld [vmem:[#allocation6 + $0x250] sm:$0xff]
    %v3854 = vld [vmem:[#allocation6 + $0x258] sm:$0xff]
    %v3855 = vld [vmem:[#allocation6 + $0x260] sm:$0xff]
    %v3856 = vld [vmem:[#allocation6 + $0x268] sm:$0xff]
    %v3857 = vld [vmem:[#allocation6 + $0x270] sm:$0xff]
    %v3858 = vld [vmem:[#allocation6 + $0x278] sm:$0xff]
    %v3859 = vld [vmem:[#allocation6 + $0x280] sm:$0xff]
    %v3860 = vld [vmem:[#allocation6 + $0x288] sm:$0xff]
    %v3861 = vld [vmem:[#allocation6 + $0x290] sm:$0xff]
    %v3862 = vld [vmem:[#allocation6 + $0x298] sm:$0xff]
    %v3863 = vld [vmem:[#allocation6 + $0x2a0] sm:$0xff]
    %v3864 = vld [vmem:[#allocation6 + $0x2a8] sm:$0xff]
    %v3865 = vld [vmem:[#allocation6 + $0x2b0] sm:$0xff]
    %v3866 = vld [vmem:[#allocation6 + $0x2b8] sm:$0xff]
    %v3867 = vld [vmem:[#allocation6 + $0x2c0] sm:$0xff]
    %v3868 = vld [vmem:[#allocation6 + $0x2c8] sm:$0xff]
    %v3869 = vld [vmem:[#allocation6 + $0x2d0] sm:$0xff]
    %v3870 = vld [vmem:[#allocation6 + $0x2d8] sm:$0xff]
    %v3871 = vld [vmem:[#allocation6 + $0x2e0] sm:$0xff]
    %v3872 = vld [vmem:[#allocation6 + $0x2e8] sm:$0xff]
    %v3873 = vld [vmem:[#allocation6 + $0x2f0] sm:$0xff]
    %v3874 = vld [vmem:[#allocation6 + $0x2f8] sm:$0xff]
    %v3875 = vld [vmem:[#allocation6 + $0x300] sm:$0xff]
    %v3876 = vld [vmem:[#allocation6 + $0x308] sm:$0xff]
    %v3877 = vld [vmem:[#allocation6 + $0x310] sm:$0xff]
    %v3878 = vld [vmem:[#allocation6 + $0x318] sm:$0xff]
    %v3879 = vld [vmem:[#allocation6 + $0x320] sm:$0xff]
    %v3880 = vld [vmem:[#allocation6 + $0x328] sm:$0xff]
    %v3881 = vld [vmem:[#allocation6 + $0x330] sm:$0xff]
    %v3882 = vld [vmem:[#allocation6 + $0x338] sm:$0xff]
    %v3883 = vld [vmem:[#allocation6 + $0x340] sm:$0xff]
    %v3884 = vld [vmem:[#allocation6 + $0x348] sm:$0xff]
    %v3885 = vld [vmem:[#allocation6 + $0x350] sm:$0xff]
    %v3886 = vld [vmem:[#allocation6 + $0x358] sm:$0xff]
    %v3887 = vld [vmem:[#allocation6 + $0x360] sm:$0xff]
    %v3888 = vld [vmem:[#allocation6 + $0x368] sm:$0xff]
    %v3889 = vld [vmem:[#allocation6 + $0x370] sm:$0xff]
    %v3890 = vld [vmem:[#allocation6 + $0x378] sm:$0xff]
    %v3891 = vld [vmem:[#allocation6 + $0x380] sm:$0xff]
    %v3892 = vld [vmem:[#allocation6 + $0x388] sm:$0xff]
    %v3893 = vld [vmem:[#allocation6 + $0x390] sm:$0xff]
    %v3894 = vld [vmem:[#allocation6 + $0x398] sm:$0xff]
    %v3895 = vld [vmem:[#allocation6 + $0x3a0] sm:$0xff]
    %v3896 = vld [vmem:[#allocation6 + $0x3a8] sm:$0xff]
    %v3897 = vld [vmem:[#allocation6 + $0x3b0] sm:$0xff]
    %v3898 = vld [vmem:[#allocation6 + $0x3b8] sm:$0xff]
    %v3899 = vld [vmem:[#allocation6 + $0x3c0] sm:$0xff]
    %v3900 = vld [vmem:[#allocation6 + $0x3c8] sm:$0xff]
    %v3901 = vld [vmem:[#allocation6 + $0x3d0] sm:$0xff]
    %v3902 = vld [vmem:[#allocation6 + $0x3d8] sm:$0xff]
    %v3903 = vld [vmem:[#allocation6 + $0x3e0] sm:$0xff]
    %v3904 = vld [vmem:[#allocation6 + $0x3e8] sm:$0xff]
    %v3905 = vld [vmem:[#allocation6 + $0x3f0] sm:$0xff]
    %v3906 = vld [vmem:[#allocation6 + $0x3f8] sm:$0xff]
    %v3907 = vld [vmem:[#allocation6 + $0x400] sm:$0xff]
    %v3908 = vld [vmem:[#allocation6 + $0x408] sm:$0xff]
    %v3909 = vld [vmem:[#allocation6 + $0x410] sm:$0xff]
    %v3910 = vld [vmem:[#allocation6 + $0x418] sm:$0xff]
    %v3911 = vld [vmem:[#allocation6 + $0x420] sm:$0xff]
    %v3912 = vld [vmem:[#allocation6 + $0x428] sm:$0xff]
    %v3913 = vld [vmem:[#allocation6 + $0x430] sm:$0xff]
    %v3914 = vld [vmem:[#allocation6 + $0x438] sm:$0xff]
    %v3915 = vld [vmem:[#allocation6 + $0x440] sm:$0xff]
    %v3916 = vld [vmem:[#allocation6 + $0x448] sm:$0xff]
    %v3917 = vld [vmem:[#allocation6 + $0x450] sm:$0xff]
    %v3918 = vld [vmem:[#allocation6 + $0x458] sm:$0xff]
    %v3919 = vld [vmem:[#allocation6 + $0x460] sm:$0xff]
    %v3920 = vld [vmem:[#allocation6 + $0x468] sm:$0xff]
    %v3921 = vld [vmem:[#allocation6 + $0x470] sm:$0xff]
    %v3922 = vld [vmem:[#allocation6 + $0x478] sm:$0xff]
    %v3923 = vld [vmem:[#allocation6 + $0x480] sm:$0xff]
    %v3924 = vld [vmem:[#allocation6 + $0x488] sm:$0xff]
    %v3925 = vld [vmem:[#allocation6 + $0x490] sm:$0xff]
    %v3926 = vld [vmem:[#allocation6 + $0x498] sm:$0xff]
    %v3927 = vld [vmem:[#allocation6 + $0x4a0] sm:$0xff]
    %v3928 = vld [vmem:[#allocation6 + $0x4a8] sm:$0xff]
    %v3929 = vld [vmem:[#allocation6 + $0x4b0] sm:$0xff]
    %v3930 = vld [vmem:[#allocation6 + $0x4b8] sm:$0xff]
    %v3931 = vld [vmem:[#allocation6 + $0x4c0] sm:$0xff]
    %v3932 = vld [vmem:[#allocation6 + $0x4c8] sm:$0xff]
    %v3933 = vld [vmem:[#allocation6 + $0x4d0] sm:$0xff]
    %v3934 = vld [vmem:[#allocation6 + $0x4d8] sm:$0xff]
    %v3935 = vld [vmem:[#allocation6 + $0x4e0] sm:$0xff]
    %v3936 = vld [vmem:[#allocation6 + $0x4e8] sm:$0xff]
    %v3937 = vld [vmem:[#allocation6 + $0x4f0] sm:$0xff]
    %v3938 = vld [vmem:[#allocation6 + $0x4f8] sm:$0xff]
    %v3939 = vld [vmem:[#allocation6 + $0x500] sm:$0xff]
    %v3940 = vld [vmem:[#allocation6 + $0x508] sm:$0xff]
    %v3941 = vld [vmem:[#allocation6 + $0x510] sm:$0xff]
    %v3942 = vld [vmem:[#allocation6 + $0x518] sm:$0xff]
    %v3943 = vld [vmem:[#allocation6 + $0x520] sm:$0xff]
    %v3944 = vld [vmem:[#allocation6 + $0x528] sm:$0xff]
    %v3945 = vld [vmem:[#allocation6 + $0x530] sm:$0xff]
    %v3946 = vld [vmem:[#allocation6 + $0x538] sm:$0xff]
    %v3947 = vld [vmem:[#allocation6 + $0x540] sm:$0xff]
    %v3948 = vld [vmem:[#allocation6 + $0x548] sm:$0xff]
    %v3949 = vld [vmem:[#allocation6 + $0x550] sm:$0xff]
    %v3950 = vld [vmem:[#allocation6 + $0x558] sm:$0xff]
    %v3951 = vld [vmem:[#allocation6 + $0x560] sm:$0xff]
    %v3952 = vld [vmem:[#allocation6 + $0x568] sm:$0xff]
    %v3953 = vld [vmem:[#allocation6 + $0x570] sm:$0xff]
    %v3954 = vld [vmem:[#allocation6 + $0x578] sm:$0xff]
    %v3955 = vld [vmem:[#allocation6 + $0x580] sm:$0xff]
    %v3956 = vld [vmem:[#allocation6 + $0x588] sm:$0xff]
    %v3957 = vld [vmem:[#allocation6 + $0x590] sm:$0xff]
    %v3958 = vld [vmem:[#allocation6 + $0x598] sm:$0xff]
    %v3959 = vld [vmem:[#allocation6 + $0x5a0] sm:$0xff]
    %v3960 = vld [vmem:[#allocation6 + $0x5a8] sm:$0xff]
    %v3961 = vld [vmem:[#allocation6 + $0x5b0] sm:$0xff]
    %v3962 = vld [vmem:[#allocation6 + $0x5b8] sm:$0xff]
    %v3963 = vld [vmem:[#allocation6 + $0x5c0] sm:$0xff]
    %v3964 = vld [vmem:[#allocation6 + $0x5c8] sm:$0xff]
    %v3965 = vld [vmem:[#allocation6 + $0x5d0] sm:$0xff]
    %v3966 = vld [vmem:[#allocation6 + $0x5d8] sm:$0xff]
    %v3967 = vld [vmem:[#allocation6 + $0x5e0] sm:$0xff]
    %v3968 = vld [vmem:[#allocation6 + $0x5e8] sm:$0xff]
    %v3969 = vld [vmem:[#allocation6 + $0x5f0] sm:$0xff]
    %v3970 = vld [vmem:[#allocation6 + $0x5f8] sm:$0xff]
    %3971 = vmatprep.subr.mxu0 %v3870
    %3972 = vmatpush1.msra.mxu0 %v3869
    %3973 = vmatprep.subr.mxu0 %v3864
    %3974 = vmatpush1.msra.mxu0 %v3863
    %3975 = vmatprep.subr.mxu0 %v3858
    %3976 = vmatpush1.msra.mxu0 %v3857
    %3977 = vmatprep.subr.mxu0 %v3852
    %3978 = vmatpush1.msra.mxu0 %v3851
    %3979 = vmatprep.subr.mxu0 %v3846
    %3980 = vmatpush1.msra.mxu0 %v3845
    %3981 = vmatprep.subr.mxu0 %v3840
    %3982 = vmatpush1.msra.mxu0 %v3839
    %3983 = vmatprep.subr.mxu0 %v3834
    %3984 = vmatpush1.msra.mxu0 %v3833
    %3985 = vmatprep.subr.mxu0 %v3828
    %3986 = vmatpush1.msra.mxu0 %v3827
    %3987 = vmatprep.subr.mxu0 %v3822
    %3988 = vmatpush1.msra.mxu0 %v3821
    %3989 = vmatprep.subr.mxu0 %v3816
    %3990 = vmatpush1.msra.mxu0 %v3815
    %3991 = vmatprep.subr.mxu0 %v3810
    %3992 = vmatpush1.msra.mxu0 %v3809
    %3993 = vmatprep.subr.mxu0 %v3804
    %3994 = vmatpush1.msra.mxu0 %v3803
    %3995 = vmatprep.subr.mxu0 %v3798
    %3996 = vmatpush1.msra.mxu0 %v3797
    %3997 = vmatprep.subr.mxu0 %v3792
    %3998 = vmatpush1.msra.mxu0 %v3791
    %3999 = vmatprep.subr.mxu0 %v3786
    %4000 = vmatpush1.msra.mxu0 %v3785
    %4001 = vmatprep.subr.mxu0 %v3780
    %4002 = vmatpush1.msra.mxu0 %v3779
    %4003 = vmatprep.subr.mxu0 %v3966
    %4004 = vmatpush2.msra.mxu0 %v3965
    %4005 = vmatprep.subr.mxu0 %v3960
    %4006 = vmatpush2.msra.mxu0 %v3959
    %4007 = vmatprep.subr.mxu0 %v3954
    %4008 = vmatpush2.msra.mxu0 %v3953
    %4009 = vmatprep.subr.mxu0 %v3948
    %4010 = vmatpush2.msra.mxu0 %v3947
    %4011 = vmatprep.subr.mxu0 %v3942
    %4012 = vmatpush2.msra.mxu0 %v3941
    %4013 = vmatprep.subr.mxu0 %v3936
    %4014 = vmatpush2.msra.mxu0 %v3935
    %4015 = vmatprep.subr.mxu0 %v3930
    %4016 = vmatpush2.msra.mxu0 %v3929
    %4017 = vmatprep.subr.mxu0 %v3924
    %4018 = vmatpush2.msra.mxu0 %v3923
    %4019 = vmatprep.subr.mxu0 %v3918
    %4020 = vmatpush2.msra.mxu0 %v3917
    %4021 = vmatprep.subr.mxu0 %v3912
    %4022 = vmatpush2.msra.mxu0 %v3911
    %4023 = vmatprep.subr.mxu0 %v3906
    %4024 = vmatpush2.msra.mxu0 %v3905
    %4025 = vmatprep.subr.mxu0 %v3900
    %4026 = vmatpush2.msra.mxu0 %v3899
    %4027 = vmatprep.subr.mxu0 %v3894
    %4028 = vmatpush2.msra.mxu0 %v3893
    %4029 = vmatprep.subr.mxu0 %v3888
    %4030 = vmatpush2.msra.mxu0 %v3887
    %4031 = vmatprep.subr.mxu0 %v3882
    %4032 = vmatpush2.msra.mxu0 %v3881
    %4033 = vmatprep.subr.mxu0 %v3876
    %4034 = vmatpush2.msra.mxu0 %v3875
    %4035 = vmatprep.mubr.f32.mxu0 %v3766
    %4036 = vmatmul.mubr.f32.gmra.mxu0 %v3765
    %v4037 = vpop.f32.mrf.mxu0
    %v4038 = vadd.f32 0.0, %v4037
    %v4039 = vpop.f32.mrf.mxu0
    %v4040 = vadd.f32 0.0, %v4039
    %4041 = vdwg.mxu0
    %4042 = vmatprep.subr.mxu0 %v3872
    %4043 = vmatpush1.msra.mxu0 %v3871
    %4044 = vmatprep.subr.mxu0 %v3866
    %4045 = vmatpush1.msra.mxu0 %v3865
    %4046 = vmatprep.subr.mxu0 %v3860
    %4047 = vmatpush1.msra.mxu0 %v3859
    %4048 = vmatprep.subr.mxu0 %v3854
    %4049 = vmatpush1.msra.mxu0 %v3853
    %4050 = vmatprep.subr.mxu0 %v3848
    %4051 = vmatpush1.msra.mxu0 %v3847
    %4052 = vmatprep.subr.mxu0 %v3842
    %4053 = vmatpush1.msra.mxu0 %v3841
    %4054 = vmatprep.subr.mxu0 %v3836
    %4055 = vmatpush1.msra.mxu0 %v3835
    %4056 = vmatprep.subr.mxu0 %v3830
    %4057 = vmatpush1.msra.mxu0 %v3829
    %4058 = vmatprep.subr.mxu0 %v3824
    %4059 = vmatpush1.msra.mxu0 %v3823
    %4060 = vmatprep.subr.mxu0 %v3818
    %4061 = vmatpush1.msra.mxu0 %v3817
    %4062 = vmatprep.subr.mxu0 %v3812
    %4063 = vmatpush1.msra.mxu0 %v3811
    %4064 = vmatprep.subr.mxu0 %v3806
    %4065 = vmatpush1.msra.mxu0 %v3805
    %4066 = vmatprep.subr.mxu0 %v3800
    %4067 = vmatpush1.msra.mxu0 %v3799
    %4068 = vmatprep.subr.mxu0 %v3794
    %4069 = vmatpush1.msra.mxu0 %v3793
    %4070 = vmatprep.subr.mxu0 %v3788
    %4071 = vmatpush1.msra.mxu0 %v3787
    %4072 = vmatprep.subr.mxu0 %v3782
    %4073 = vmatpush1.msra.mxu0 %v3781
    %4074 = vmatprep.subr.mxu0 %v3968
    %4075 = vmatpush2.msra.mxu0 %v3967
    %4076 = vmatprep.subr.mxu0 %v3962
    %4077 = vmatpush2.msra.mxu0 %v3961
    %4078 = vmatprep.subr.mxu0 %v3956
    %4079 = vmatpush2.msra.mxu0 %v3955
    %4080 = vmatprep.subr.mxu0 %v3950
    %4081 = vmatpush2.msra.mxu0 %v3949
    %4082 = vmatprep.subr.mxu0 %v3944
    %4083 = vmatpush2.msra.mxu0 %v3943
    %4084 = vmatprep.subr.mxu0 %v3938
    %4085 = vmatpush2.msra.mxu0 %v3937
    %4086 = vmatprep.subr.mxu0 %v3932
    %4087 = vmatpush2.msra.mxu0 %v3931
    %4088 = vmatprep.subr.mxu0 %v3926
    %4089 = vmatpush2.msra.mxu0 %v3925
    %4090 = vmatprep.subr.mxu0 %v3920
    %4091 = vmatpush2.msra.mxu0 %v3919
    %4092 = vmatprep.subr.mxu0 %v3914
    %4093 = vmatpush2.msra.mxu0 %v3913
    %4094 = vmatprep.subr.mxu0 %v3908
    %4095 = vmatpush2.msra.mxu0 %v3907
    %4096 = vmatprep.subr.mxu0 %v3902
    %4097 = vmatpush2.msra.mxu0 %v3901
    %4098 = vmatprep.subr.mxu0 %v3896
    %4099 = vmatpush2.msra.mxu0 %v3895
    %4100 = vmatprep.subr.mxu0 %v3890
    %4101 = vmatpush2.msra.mxu0 %v3889
    %4102 = vmatprep.subr.mxu0 %v3884
    %4103 = vmatpush2.msra.mxu0 %v3883
    %4104 = vmatprep.subr.mxu0 %v3878
    %4105 = vmatpush2.msra.mxu0 %v3877
    %4106 = vmatprep.mubr.f32.mxu0 %v3766
    %4107 = vmatmul.mubr.f32.gmra.mxu0 %v3765
    %v4108 = vpop.f32.mrf.mxu0
    %v4109 = vadd.f32 0.0, %v4108
    %v4110 = vpop.f32.mrf.mxu0
    %v4111 = vadd.f32 0.0, %v4110
    %4112 = vdwg.mxu0
    %4113 = vmatprep.subr.mxu0 %v3874
    %4114 = vmatpush1.msra.mxu0 %v3873
    %4115 = vmatprep.subr.mxu0 %v3868
    %4116 = vmatpush1.msra.mxu0 %v3867
    %4117 = vmatprep.subr.mxu0 %v3862
    %4118 = vmatpush1.msra.mxu0 %v3861
    %4119 = vmatprep.subr.mxu0 %v3856
    %4120 = vmatpush1.msra.mxu0 %v3855
    %4121 = vmatprep.subr.mxu0 %v3850
    %4122 = vmatpush1.msra.mxu0 %v3849
    %4123 = vmatprep.subr.mxu0 %v3844
    %4124 = vmatpush1.msra.mxu0 %v3843
    %4125 = vmatprep.subr.mxu0 %v3838
    %4126 = vmatpush1.msra.mxu0 %v3837
    %4127 = vmatprep.subr.mxu0 %v3832
    %4128 = vmatpush1.msra.mxu0 %v3831
    %4129 = vmatprep.subr.mxu0 %v3826
    %4130 = vmatpush1.msra.mxu0 %v3825
    %4131 = vmatprep.subr.mxu0 %v3820
    %4132 = vmatpush1.msra.mxu0 %v3819
    %4133 = vmatprep.subr.mxu0 %v3814
    %4134 = vmatpush1.msra.mxu0 %v3813
    %4135 = vmatprep.subr.mxu0 %v3808
    %4136 = vmatpush1.msra.mxu0 %v3807
    %4137 = vmatprep.subr.mxu0 %v3802
    %4138 = vmatpush1.msra.mxu0 %v3801
    %4139 = vmatprep.subr.mxu0 %v3796
    %4140 = vmatpush1.msra.mxu0 %v3795
    %4141 = vmatprep.subr.mxu0 %v3790
    %4142 = vmatpush1.msra.mxu0 %v3789
    %4143 = vmatprep.subr.mxu0 %v3784
    %4144 = vmatpush1.msra.mxu0 %v3783
    %4145 = vmatprep.subr.mxu0 %v3970
    %4146 = vmatpush2.msra.mxu0 %v3969
    %4147 = vmatprep.subr.mxu0 %v3964
    %4148 = vmatpush2.msra.mxu0 %v3963
    %4149 = vmatprep.subr.mxu0 %v3958
    %4150 = vmatpush2.msra.mxu0 %v3957
    %4151 = vmatprep.subr.mxu0 %v3952
    %4152 = vmatpush2.msra.mxu0 %v3951
    %4153 = vmatprep.subr.mxu0 %v3946
    %4154 = vmatpush2.msra.mxu0 %v3945
    %4155 = vmatprep.subr.mxu0 %v3940
    %4156 = vmatpush2.msra.mxu0 %v3939
    %4157 = vmatprep.subr.mxu0 %v3934
    %4158 = vmatpush2.msra.mxu0 %v3933
    %4159 = vmatprep.subr.mxu0 %v3928
    %4160 = vmatpush2.msra.mxu0 %v3927
    %4161 = vmatprep.subr.mxu0 %v3922
    %4162 = vmatpush2.msra.mxu0 %v3921
    %4163 = vmatprep.subr.mxu0 %v3916
    %4164 = vmatpush2.msra.mxu0 %v3915
    %4165 = vmatprep.subr.mxu0 %v3910
    %4166 = vmatpush2.msra.mxu0 %v3909
    %4167 = vmatprep.subr.mxu0 %v3904
    %4168 = vmatpush2.msra.mxu0 %v3903
    %4169 = vmatprep.subr.mxu0 %v3898
    %4170 = vmatpush2.msra.mxu0 %v3897
    %4171 = vmatprep.subr.mxu0 %v3892
    %4172 = vmatpush2.msra.mxu0 %v3891
    %4173 = vmatprep.subr.mxu0 %v3886
    %4174 = vmatpush2.msra.mxu0 %v3885
    %4175 = vmatprep.subr.mxu0 %v3880
    %4176 = vmatpush2.msra.mxu0 %v3879
    %4177 = vmatprep.mubr.f32.mxu0 %v3766
    %4178 = vmatmul.mubr.f32.gmra.mxu0 %v3765
    %v4179 = vpop.f32.mrf.mxu0
    %v4180 = vadd.f32 0.0, %v4179
    %v4181 = vpop.f32.mrf.mxu0
    %v4182 = vadd.f32 0.0, %v4181
    %4183 = vdwg.mxu0
    %v4184 = vadd.f32 %v3773, %v4038
    %v4185 = vadd.f32 %v3774, %v4040
    %v4186 = vxor.u32 %v4184, 2147483648
    %v4187 = vxor.u32 %v4185, 2147483648
    %v4188 = vmul.f32 %v4186, 1.442695
    %v4189 = vpow.pop %v4188
    %v4190 = vmul.f32 %v4187, 1.442695
    %v4191 = vpow.pop %v4190
    %v4192 = vadd.f32 %v4189, 1.0
    %v4193 = vadd.f32 %v4191, 1.0
    %v4194 = vrcp.pop %v4192
    %v4195 = vmul.f32 1.0, %v4194
    %v4196 = vrcp.pop %v4193
    %v4197 = vmul.f32 1.0, %v4196
    %v4198 = vadd.f32 %v3775, %v4109
    %v4199 = vadd.f32 %v3776, %v4111
    %v4200 = vxor.u32 %v4198, 2147483648
    %v4201 = vxor.u32 %v4199, 2147483648
    %v4202 = vmul.f32 %v4200, 1.442695
    %v4203 = vpow.pop %v4202
    %v4204 = vmul.f32 %v4201, 1.442695
    %v4205 = vpow.pop %v4204
    %v4206 = vadd.f32 %v4203, 1.0
    %v4207 = vadd.f32 %v4205, 1.0
    %v4208 = vrcp.pop %v4206
    %v4209 = vmul.f32 1.0, %v4208
    %v4210 = vrcp.pop %v4207
    %v4211 = vmul.f32 1.0, %v4210
    %v4212 = vadd.f32 %v4180, %v82
    %v4213 = vadd.f32 %v4182, %v86
    %v4214 = vmul.f32 %v4195, %v4212
    %v4215 = vmul.f32 %v4197, %v4213
    %v4216 = vadd.f32 %v3777, %v4214
    %v4217 = vadd.f32 %v3778, %v4215
    %v4218 = vtanh.pop %v4216
    %v4219 = vtanh.pop %v4217
    %v4220 = vsub.f32 %v3765, %v4218
    %v4221 = vsub.f32 %v3766, %v4219
    %v4222 = vmul.f32 %v4209, %v4220
    %v4223 = vmul.f32 %v4211, %v4221
    %v4224 = vadd.f32 %v4218, %v4222
    %v4225 = vadd.f32 %v4219, %v4223
    %s4226 = smul.u32 8, 2
    %s4227 = smul.addr %s4226, 8
    %s4228 = scalar_lea.vmem [#allocation2], %s4227
    %4229 = vst [vmem:[%s4228] sm:$0xff] %v4224
    %4230 = vst [vmem:[%s4228 + $0x8] sm:$0xff] %v4225
    %v4231 = vld [vmem:[#allocation2] sm:$0xff]
    %v4232 = vld [vmem:[#allocation2 + $0x8] sm:$0xff]
    %v4233 = vld [vmem:[#allocation2 + $0x10] sm:$0xff]
    %v4234 = vld [vmem:[#allocation2 + $0x18] sm:$0xff]
    %v4235 = vld [vmem:[#allocation2 + $0x20] sm:$0xff]
    %v4236 = vld [vmem:[#allocation2 + $0x28] sm:$0xff]
    %v4237 = vld [vmem:[#allocation2 + $0x30] sm:$0xff]
    %v4238 = vld [vmem:[#allocation2 + $0x38] sm:$0xff]
    %v4239 = vld [vmem:[#allocation2 + $0x40] sm:$0xff]
    %v4240 = vld [vmem:[#allocation2 + $0x48] sm:$0xff]
    %v4241 = vld [vmem:[#allocation2 + $0x50] sm:$0xff]
    %v4242 = vld [vmem:[#allocation2 + $0x58] sm:$0xff]
    %v4243 = vld [vmem:[#allocation2 + $0x60] sm:$0xff]
    %v4244 = vld [vmem:[#allocation2 + $0x68] sm:$0xff]
    %v4245 = vld [vmem:[#allocation2 + $0x70] sm:$0xff]
    %v4246 = vld [vmem:[#allocation2 + $0x78] sm:$0xff]
    %v4247 = vld [vmem:[#allocation2 + $0x80] sm:$0xff]
    %v4248 = vld [vmem:[#allocation2 + $0x88] sm:$0xff]
    %v4249 = vld [vmem:[#allocation9] sm:$0xff]
    %v4250 = vld [vmem:[#allocation9 + $0x8] sm:$0xff]
    %v4251 = vld [vmem:[#allocation9 + $0x10] sm:$0xff]
    %v4252 = vld [vmem:[#allocation9 + $0x18] sm:$0xff]
    %v4253 = vld [vmem:[#allocation9 + $0x20] sm:$0xff]
    %v4254 = vld [vmem:[#allocation9 + $0x28] sm:$0xff]
    %v4255 = vld [vmem:[#allocation9 + $0x30] sm:$0xff]
    %v4256 = vld [vmem:[#allocation9 + $0x38] sm:$0xff]
    %v4257 = vld [vmem:[#allocation9 + $0x40] sm:$0xff]
    %v4258 = vld [vmem:[#allocation9 + $0x48] sm:$0xff]
    %v4259 = vld [vmem:[#allocation9 + $0x50] sm:$0xff]
    %v4260 = vld [vmem:[#allocation9 + $0x58] sm:$0xff]
    %v4261 = vld [vmem:[#allocation9 + $0x60] sm:$0xff]
    %v4262 = vld [vmem:[#allocation9 + $0x68] sm:$0xff]
    %v4263 = vld [vmem:[#allocation9 + $0x70] sm:$0xff]
    %v4264 = vld [vmem:[#allocation9 + $0x78] sm:$0xff]
    %v4265 = vld [vmem:[#allocation9 + $0x80] sm:$0xff]
    %v4266 = vld [vmem:[#allocation9 + $0x88] sm:$0xff]
    %v4267 = vld [vmem:[#allocation9 + $0x90] sm:$0xff]
    %v4268 = vld [vmem:[#allocation9 + $0x98] sm:$0xff]
    %v4269 = vld [vmem:[#allocation9 + $0xa0] sm:$0xff]
    %v4270 = vld [vmem:[#allocation9 + $0xa8] sm:$0xff]
    %v4271 = vld [vmem:[#allocation9 + $0xb0] sm:$0xff]
    %v4272 = vld [vmem:[#allocation9 + $0xb8] sm:$0xff]
    %v4273 = vld [vmem:[#allocation9 + $0xc0] sm:$0xff]
    %v4274 = vld [vmem:[#allocation9 + $0xc8] sm:$0xff]
    %v4275 = vld [vmem:[#allocation9 + $0xd0] sm:$0xff]
    %v4276 = vld [vmem:[#allocation9 + $0xd8] sm:$0xff]
    %v4277 = vld [vmem:[#allocation9 + $0xe0] sm:$0xff]
    %v4278 = vld [vmem:[#allocation9 + $0xe8] sm:$0xff]
    %v4279 = vld [vmem:[#allocation9 + $0xf0] sm:$0xff]
    %v4280 = vld [vmem:[#allocation9 + $0xf8] sm:$0xff]
    %v4281 = vld [vmem:[#allocation9 + $0x100] sm:$0xff]
    %v4282 = vld [vmem:[#allocation9 + $0x108] sm:$0xff]
    %v4283 = vld [vmem:[#allocation9 + $0x110] sm:$0xff]
    %v4284 = vld [vmem:[#allocation9 + $0x118] sm:$0xff]
    %v4285 = vld [vmem:[#allocation9 + $0x120] sm:$0xff]
    %v4286 = vld [vmem:[#allocation9 + $0x128] sm:$0xff]
    %v4287 = vld [vmem:[#allocation9 + $0x130] sm:$0xff]
    %v4288 = vld [vmem:[#allocation9 + $0x138] sm:$0xff]
    %v4289 = vld [vmem:[#allocation9 + $0x140] sm:$0xff]
    %v4290 = vld [vmem:[#allocation9 + $0x148] sm:$0xff]
    %v4291 = vld [vmem:[#allocation9 + $0x150] sm:$0xff]
    %v4292 = vld [vmem:[#allocation9 + $0x158] sm:$0xff]
    %v4293 = vld [vmem:[#allocation9 + $0x160] sm:$0xff]
    %v4294 = vld [vmem:[#allocation9 + $0x168] sm:$0xff]
    %v4295 = vld [vmem:[#allocation9 + $0x170] sm:$0xff]
    %v4296 = vld [vmem:[#allocation9 + $0x178] sm:$0xff]
    %v4297 = vld [vmem:[#allocation9 + $0x180] sm:$0xff]
    %v4298 = vld [vmem:[#allocation9 + $0x188] sm:$0xff]
    %v4299 = vld [vmem:[#allocation9 + $0x190] sm:$0xff]
    %v4300 = vld [vmem:[#allocation9 + $0x198] sm:$0xff]
    %v4301 = vld [vmem:[#allocation9 + $0x1a0] sm:$0xff]
    %v4302 = vld [vmem:[#allocation9 + $0x1a8] sm:$0xff]
    %v4303 = vld [vmem:[#allocation9 + $0x1b0] sm:$0xff]
    %v4304 = vld [vmem:[#allocation9 + $0x1b8] sm:$0xff]
    %v4305 = vld [vmem:[#allocation9 + $0x1c0] sm:$0xff]
    %v4306 = vld [vmem:[#allocation9 + $0x1c8] sm:$0xff]
    %v4307 = vld [vmem:[#allocation9 + $0x1d0] sm:$0xff]
    %v4308 = vld [vmem:[#allocation9 + $0x1d8] sm:$0xff]
    %v4309 = vld [vmem:[#allocation9 + $0x1e0] sm:$0xff]
    %v4310 = vld [vmem:[#allocation9 + $0x1e8] sm:$0xff]
    %v4311 = vld [vmem:[#allocation9 + $0x1f0] sm:$0xff]
    %v4312 = vld [vmem:[#allocation9 + $0x1f8] sm:$0xff]
    %v4313 = vld [vmem:[#allocation9 + $0x200] sm:$0xff]
    %v4314 = vld [vmem:[#allocation9 + $0x208] sm:$0xff]
    %v4315 = vld [vmem:[#allocation9 + $0x210] sm:$0xff]
    %v4316 = vld [vmem:[#allocation9 + $0x218] sm:$0xff]
    %v4317 = vld [vmem:[#allocation9 + $0x220] sm:$0xff]
    %v4318 = vld [vmem:[#allocation9 + $0x228] sm:$0xff]
    %v4319 = vld [vmem:[#allocation9 + $0x230] sm:$0xff]
    %v4320 = vld [vmem:[#allocation9 + $0x238] sm:$0xff]
    %v4321 = vld [vmem:[#allocation9 + $0x240] sm:$0xff]
    %v4322 = vld [vmem:[#allocation9 + $0x248] sm:$0xff]
    %v4323 = vld [vmem:[#allocation9 + $0x250] sm:$0xff]
    %v4324 = vld [vmem:[#allocation9 + $0x258] sm:$0xff]
    %v4325 = vld [vmem:[#allocation9 + $0x260] sm:$0xff]
    %v4326 = vld [vmem:[#allocation9 + $0x268] sm:$0xff]
    %v4327 = vld [vmem:[#allocation9 + $0x270] sm:$0xff]
    %v4328 = vld [vmem:[#allocation9 + $0x278] sm:$0xff]
    %v4329 = vld [vmem:[#allocation9 + $0x280] sm:$0xff]
    %v4330 = vld [vmem:[#allocation9 + $0x288] sm:$0xff]
    %v4331 = vld [vmem:[#allocation9 + $0x290] sm:$0xff]
    %v4332 = vld [vmem:[#allocation9 + $0x298] sm:$0xff]
    %v4333 = vld [vmem:[#allocation9 + $0x2a0] sm:$0xff]
    %v4334 = vld [vmem:[#allocation9 + $0x2a8] sm:$0xff]
    %v4335 = vld [vmem:[#allocation9 + $0x2b0] sm:$0xff]
    %v4336 = vld [vmem:[#allocation9 + $0x2b8] sm:$0xff]
    %v4337 = vld [vmem:[#allocation9 + $0x2c0] sm:$0xff]
    %v4338 = vld [vmem:[#allocation9 + $0x2c8] sm:$0xff]
    %v4339 = vld [vmem:[#allocation9 + $0x2d0] sm:$0xff]
    %v4340 = vld [vmem:[#allocation9 + $0x2d8] sm:$0xff]
    %v4341 = vld [vmem:[#allocation9 + $0x2e0] sm:$0xff]
    %v4342 = vld [vmem:[#allocation9 + $0x2e8] sm:$0xff]
    %v4343 = vld [vmem:[#allocation9 + $0x2f0] sm:$0xff]
    %v4344 = vld [vmem:[#allocation9 + $0x2f8] sm:$0xff]
    %v4345 = vld [vmem:[%s5] sm:$0x7]
    %v4347 = vlaneseq
    %v4348 = vshrl.u32 %v4347, 7
    %v4349 = vsub.s32 0, %v4348
    %v4350 = vrot.slane %v4345, %v4349
    %v4351 = vlaneseq
    %v4352 = vshrl.u32 %v4351, 7
    %v4353 = vsub.s32 1, %v4352
    %v4354 = vrot.slane %v4345, %v4353
    %v4355 = vlaneseq
    %v4356 = vshrl.u32 %v4355, 7
    %v4357 = vsub.s32 2, %v4356
    %v4358 = vrot.slane %v4345, %v4357
    %4362 = vmatprep.subr.mxu0 %v4295
    %4363 = vmatpush1.msra.mxu0 %v4294
    %4364 = vmatprep.subr.mxu0 %v4292
    %4365 = vmatpush1.msra.mxu0 %v4291
    %4366 = vmatprep.subr.mxu0 %v4289
    %4367 = vmatpush1.msra.mxu0 %v4288
    %4368 = vmatprep.subr.mxu0 %v4286
    %4369 = vmatpush1.msra.mxu0 %v4285
    %4370 = vmatprep.subr.mxu0 %v4283
    %4371 = vmatpush1.msra.mxu0 %v4282
    %4372 = vmatprep.subr.mxu0 %v4280
    %4373 = vmatpush1.msra.mxu0 %v4279
    %4374 = vmatprep.subr.mxu0 %v4277
    %4375 = vmatpush1.msra.mxu0 %v4276
    %4376 = vmatprep.subr.mxu0 %v4274
    %4377 = vmatpush1.msra.mxu0 %v4273
    %4378 = vmatprep.subr.mxu0 %v4271
    %4379 = vmatpush1.msra.mxu0 %v4270
    %4380 = vmatprep.subr.mxu0 %v4268
    %4381 = vmatpush1.msra.mxu0 %v4267
    %4382 = vmatprep.subr.mxu0 %v4265
    %4383 = vmatpush1.msra.mxu0 %v4264
    %4384 = vmatprep.subr.mxu0 %v4262
    %4385 = vmatpush1.msra.mxu0 %v4261
    %4386 = vmatprep.subr.mxu0 %v4259
    %4387 = vmatpush1.msra.mxu0 %v4258
    %4388 = vmatprep.subr.mxu0 %v4256
    %4389 = vmatpush1.msra.mxu0 %v4255
    %4390 = vmatprep.subr.mxu0 %v4253
    %4391 = vmatpush1.msra.mxu0 %v4252
    %4392 = vmatprep.subr.mxu0 %v4250
    %4393 = vmatpush1.msra.mxu0 %v4249
    %4394 = vmatprep.subr.mxu0 %v4343
    %4395 = vmatpush2.msra.mxu0 %v4342
    %4396 = vmatprep.subr.mxu0 %v4340
    %4397 = vmatpush2.msra.mxu0 %v4339
    %4398 = vmatprep.subr.mxu0 %v4337
    %4399 = vmatpush2.msra.mxu0 %v4336
    %4400 = vmatprep.subr.mxu0 %v4334
    %4401 = vmatpush2.msra.mxu0 %v4333
    %4402 = vmatprep.subr.mxu0 %v4331
    %4403 = vmatpush2.msra.mxu0 %v4330
    %4404 = vmatprep.subr.mxu0 %v4328
    %4405 = vmatpush2.msra.mxu0 %v4327
    %4406 = vmatprep.subr.mxu0 %v4325
    %4407 = vmatpush2.msra.mxu0 %v4324
    %4408 = vmatprep.subr.mxu0 %v4322
    %4409 = vmatpush2.msra.mxu0 %v4321
    %4410 = vmatprep.subr.mxu0 %v4319
    %4411 = vmatpush2.msra.mxu0 %v4318
    %4412 = vmatprep.subr.mxu0 %v4316
    %4413 = vmatpush2.msra.mxu0 %v4315
    %4414 = vmatprep.subr.mxu0 %v4313
    %4415 = vmatpush2.msra.mxu0 %v4312
    %4416 = vmatprep.subr.mxu0 %v4310
    %4417 = vmatpush2.msra.mxu0 %v4309
    %4418 = vmatprep.subr.mxu0 %v4307
    %4419 = vmatpush2.msra.mxu0 %v4306
    %4420 = vmatprep.subr.mxu0 %v4304
    %4421 = vmatpush2.msra.mxu0 %v4303
    %4422 = vmatprep.subr.mxu0 %v4301
    %4423 = vmatpush2.msra.mxu0 %v4300
    %4424 = vmatprep.subr.mxu0 %v4298
    %4425 = vmatpush2.msra.mxu0 %v4297
    %4426 = vmatprep.mubr.f32.mxu0 %v4232
    %4427 = vmatmul.mubr.f32.gmra.mxu0 %v4231
    %v4428 = vpop.f32.mrf.mxu0
    %v4429 = vadd.f32 %v4350, %v4428
    %v4430 = vpop.f32.mrf.mxu0
    %v4431 = vadd.f32 %v4354, %v4430
    %4432 = vmatprep.mubr.f32.mxu0 %v4234
    %4433 = vmatmul.mubr.f32.gmra.mxu0 %v4233
    %v4434 = vpop.f32.mrf.mxu0
    %v4435 = vadd.f32 %v4350, %v4434
    %v4436 = vpop.f32.mrf.mxu0
    %v4437 = vadd.f32 %v4354, %v4436
    %4438 = vmatprep.mubr.f32.mxu0 %v4236
    %4439 = vmatmul.mubr.f32.gmra.mxu0 %v4235
    %v4440 = vpop.f32.mrf.mxu0
    %v4441 = vadd.f32 %v4350, %v4440
    %v4442 = vpop.f32.mrf.mxu0
    %v4443 = vadd.f32 %v4354, %v4442
    %4444 = vmatprep.mubr.f32.mxu0 %v4238
    %4445 = vmatmul.mubr.f32.gmra.mxu0 %v4237
    %v4446 = vpop.f32.mrf.mxu0
    %v4447 = vadd.f32 %v4350, %v4446
    %v4448 = vpop.f32.mrf.mxu0
    %v4449 = vadd.f32 %v4354, %v4448
    %4450 = vmatprep.mubr.f32.mxu0 %v4240
    %4451 = vmatmul.mubr.f32.gmra.mxu0 %v4239
    %v4452 = vpop.f32.mrf.mxu0
    %v4453 = vadd.f32 %v4350, %v4452
    %v4454 = vpop.f32.mrf.mxu0
    %v4455 = vadd.f32 %v4354, %v4454
    %4456 = vmatprep.mubr.f32.mxu0 %v4242
    %4457 = vmatmul.mubr.f32.gmra.mxu0 %v4241
    %v4458 = vpop.f32.mrf.mxu0
    %v4459 = vadd.f32 %v4350, %v4458
    %v4460 = vpop.f32.mrf.mxu0
    %v4461 = vadd.f32 %v4354, %v4460
    %4462 = vmatprep.mubr.f32.mxu0 %v4244
    %4463 = vmatmul.mubr.f32.gmra.mxu0 %v4243
    %v4464 = vpop.f32.mrf.mxu0
    %v4465 = vadd.f32 %v4350, %v4464
    %v4466 = vpop.f32.mrf.mxu0
    %v4467 = vadd.f32 %v4354, %v4466
    %4468 = vmatprep.mubr.f32.mxu0 %v4246
    %4469 = vmatmul.mubr.f32.gmra.mxu0 %v4245
    %v4470 = vpop.f32.mrf.mxu0
    %v4471 = vadd.f32 %v4350, %v4470
    %v4472 = vpop.f32.mrf.mxu0
    %v4473 = vadd.f32 %v4354, %v4472
    %4474 = vmatprep.mubr.f32.mxu0 %v4248
    %4475 = vmatmul.mubr.f32.gmra.mxu0 %v4247
    %v4476 = vpop.f32.mrf.mxu0
    %v4477 = vadd.f32 %v4350, %v4476
    %v4478 = vpop.f32.mrf.mxu0
    %v4479 = vadd.f32 %v4354, %v4478
    %4480 = vdwg.mxu0
    %4481 = vmatprep.subr.mxu0 0.0
    %4482 = vmatpush1.msra.mxu0 %v4296
    %4483 = vmatprep.subr.mxu0 0.0
    %4484 = vmatpush1.msra.mxu0 %v4293
    %4485 = vmatprep.subr.mxu0 0.0
    %4486 = vmatpush1.msra.mxu0 %v4290
    %4487 = vmatprep.subr.mxu0 0.0
    %4488 = vmatpush1.msra.mxu0 %v4287
    %4489 = vmatprep.subr.mxu0 0.0
    %4490 = vmatpush1.msra.mxu0 %v4284
    %4491 = vmatprep.subr.mxu0 0.0
    %4492 = vmatpush1.msra.mxu0 %v4281
    %4493 = vmatprep.subr.mxu0 0.0
    %4494 = vmatpush1.msra.mxu0 %v4278
    %4495 = vmatprep.subr.mxu0 0.0
    %4496 = vmatpush1.msra.mxu0 %v4275
    %4497 = vmatprep.subr.mxu0 0.0
    %4498 = vmatpush1.msra.mxu0 %v4272
    %4499 = vmatprep.subr.mxu0 0.0
    %4500 = vmatpush1.msra.mxu0 %v4269
    %4501 = vmatprep.subr.mxu0 0.0
    %4502 = vmatpush1.msra.mxu0 %v4266
    %4503 = vmatprep.subr.mxu0 0.0
    %4504 = vmatpush1.msra.mxu0 %v4263
    %4505 = vmatprep.subr.mxu0 0.0
    %4506 = vmatpush1.msra.mxu0 %v4260
    %4507 = vmatprep.subr.mxu0 0.0
    %4508 = vmatpush1.msra.mxu0 %v4257
    %4509 = vmatprep.subr.mxu0 0.0
    %4510 = vmatpush1.msra.mxu0 %v4254
    %4511 = vmatprep.subr.mxu0 0.0
    %4512 = vmatpush1.msra.mxu0 %v4251
    %4513 = vmatprep.subr.mxu0 0.0
    %4514 = vmatpush2.msra.mxu0 %v4344
    %4515 = vmatprep.subr.mxu0 0.0
    %4516 = vmatpush2.msra.mxu0 %v4341
    %4517 = vmatprep.subr.mxu0 0.0
    %4518 = vmatpush2.msra.mxu0 %v4338
    %4519 = vmatprep.subr.mxu0 0.0
    %4520 = vmatpush2.msra.mxu0 %v4335
    %4521 = vmatprep.subr.mxu0 0.0
    %4522 = vmatpush2.msra.mxu0 %v4332
    %4523 = vmatprep.subr.mxu0 0.0
    %4524 = vmatpush2.msra.mxu0 %v4329
    %4525 = vmatprep.subr.mxu0 0.0
    %4526 = vmatpush2.msra.mxu0 %v4326
    %4527 = vmatprep.subr.mxu0 0.0
    %4528 = vmatpush2.msra.mxu0 %v4323
    %4529 = vmatprep.subr.mxu0 0.0
    %4530 = vmatpush2.msra.mxu0 %v4320
    %4531 = vmatprep.subr.mxu0 0.0
    %4532 = vmatpush2.msra.mxu0 %v4317
    %4533 = vmatprep.subr.mxu0 0.0
    %4534 = vmatpush2.msra.mxu0 %v4314
    %4535 = vmatprep.subr.mxu0 0.0
    %4536 = vmatpush2.msra.mxu0 %v4311
    %4537 = vmatprep.subr.mxu0 0.0
    %4538 = vmatpush2.msra.mxu0 %v4308
    %4539 = vmatprep.subr.mxu0 0.0
    %4540 = vmatpush2.msra.mxu0 %v4305
    %4541 = vmatprep.subr.mxu0 0.0
    %4542 = vmatpush2.msra.mxu0 %v4302
    %4543 = vmatprep.subr.mxu0 0.0
    %4544 = vmatpush2.msra.mxu0 %v4299
    %4545 = vmatprep.mubr.f32.mxu0 %v4232
    %4546 = vmatmul.mubr.f32.gmra.mxu0 %v4231
    %v4547 = vpop.f32.mrf.mxu0
    %v4548 = vadd.f32 %v4358, %v4547
    %v4549 = vpop.f32.mrf.mxu0
    %4550 = vmatprep.mubr.f32.mxu0 %v4234
    %4551 = vmatmul.mubr.f32.gmra.mxu0 %v4233
    %v4552 = vpop.f32.mrf.mxu0
    %v4553 = vadd.f32 %v4358, %v4552
    %v4554 = vpop.f32.mrf.mxu0
    %4555 = vmatprep.mubr.f32.mxu0 %v4236
    %4556 = vmatmul.mubr.f32.gmra.mxu0 %v4235
    %v4557 = vpop.f32.mrf.mxu0
    %v4558 = vadd.f32 %v4358, %v4557
    %v4559 = vpop.f32.mrf.mxu0
    %4560 = vmatprep.mubr.f32.mxu0 %v4238
    %4561 = vmatmul.mubr.f32.gmra.mxu0 %v4237
    %v4562 = vpop.f32.mrf.mxu0
    %v4563 = vadd.f32 %v4358, %v4562
    %v4564 = vpop.f32.mrf.mxu0
    %4565 = vmatprep.mubr.f32.mxu0 %v4240
    %4566 = vmatmul.mubr.f32.gmra.mxu0 %v4239
    %v4567 = vpop.f32.mrf.mxu0
    %v4568 = vadd.f32 %v4358, %v4567
    %v4569 = vpop.f32.mrf.mxu0
    %4570 = vmatprep.mubr.f32.mxu0 %v4242
    %4571 = vmatmul.mubr.f32.gmra.mxu0 %v4241
    %v4572 = vpop.f32.mrf.mxu0
    %v4573 = vadd.f32 %v4358, %v4572
    %v4574 = vpop.f32.mrf.mxu0
    %4575 = vmatprep.mubr.f32.mxu0 %v4244
    %4576 = vmatmul.mubr.f32.gmra.mxu0 %v4243
    %v4577 = vpop.f32.mrf.mxu0
    %v4578 = vadd.f32 %v4358, %v4577
    %v4579 = vpop.f32.mrf.mxu0
    %4580 = vmatprep.mubr.f32.mxu0 %v4246
    %4581 = vmatmul.mubr.f32.gmra.mxu0 %v4245
    %v4582 = vpop.f32.mrf.mxu0
    %v4583 = vadd.f32 %v4358, %v4582
    %v4584 = vpop.f32.mrf.mxu0
    %4585 = vmatprep.mubr.f32.mxu0 %v4248
    %4586 = vmatmul.mubr.f32.gmra.mxu0 %v4247
    %v4587 = vpop.f32.mrf.mxu0
    %v4588 = vadd.f32 %v4358, %v4587
    %v4589 = vpop.f32.mrf.mxu0
    %4590 = vdwg.mxu0
    %4591 = vst [vmem:[#allocation11] sm:$0xff] %v4429
    %4592 = vst [vmem:[#allocation11 + $0x8] sm:$0xff] %v4431
    %4593 = vst [vmem:[#allocation11 + $0x10] sm:$0xff] %v4548
    %4594 = vst [vmem:[#allocation11 + $0x18] sm:$0xff] %v4435
    %4595 = vst [vmem:[#allocation11 + $0x20] sm:$0xff] %v4437
    %4596 = vst [vmem:[#allocation11 + $0x28] sm:$0xff] %v4553
    %4597 = vst [vmem:[#allocation11 + $0x30] sm:$0xff] %v4441
    %4598 = vst [vmem:[#allocation11 + $0x38] sm:$0xff] %v4443
    %4599 = vst [vmem:[#allocation11 + $0x40] sm:$0xff] %v4558
    %4600 = vst [vmem:[#allocation11 + $0x48] sm:$0xff] %v4447
    %4601 = vst [vmem:[#allocation11 + $0x50] sm:$0xff] %v4449
    %4602 = vst [vmem:[#allocation11 + $0x58] sm:$0xff] %v4563
    %4603 = vst [vmem:[#allocation11 + $0x60] sm:$0xff] %v4453
    %4604 = vst [vmem:[#allocation11 + $0x68] sm:$0xff] %v4455
    %4605 = vst [vmem:[#allocation11 + $0x70] sm:$0xff] %v4568
    %4606 = vst [vmem:[#allocation11 + $0x78] sm:$0xff] %v4459
    %4607 = vst [vmem:[#allocation11 + $0x80] sm:$0xff] %v4461
    %4608 = vst [vmem:[#allocation11 + $0x88] sm:$0xff] %v4573
    %4609 = vst [vmem:[#allocation11 + $0x90] sm:$0xff] %v4465
    %4610 = vst [vmem:[#allocation11 + $0x98] sm:$0xff] %v4467
    %4611 = vst [vmem:[#allocation11 + $0xa0] sm:$0xff] %v4578
    %4612 = vst [vmem:[#allocation11 + $0xa8] sm:$0xff] %v4471
    %4613 = vst [vmem:[#allocation11 + $0xb0] sm:$0xff] %v4473
    %4614 = vst [vmem:[#allocation11 + $0xb8] sm:$0xff] %v4583
    %4615 = vst [vmem:[#allocation11 + $0xc0] sm:$0xff] %v4477
    %4616 = vst [vmem:[#allocation11 + $0xc8] sm:$0xff] %v4479
    %4617 = vst [vmem:[#allocation11 + $0xd0] sm:$0xff] %v4588
    // Predicated region
    $region42: #{tpu_custom_call.1} parent=1 // pred_check
      _
    $region43: #{tpu_custom_call.1} parent=1 // pred_check_branch
      %4619 = sbr.rel (0) target = $region45
    $region44: #{tpu_custom_call.1} parent=1 // pred_region
      %s4621 = ssub.s32 3456, 3456
      %4622 = vsyncadd [#allocation5], %s4621
      %s4623 = sshll.u32 [#allocation11], 4
      %s4624 = int_to_ptr.vmem [resolvable:$true] %s4623
      %4629 = dma.vmem_to_hbm [thread:$0]  %s4624, 3456, %s6, [#allocation5], 384, 384, 24
    $region45: #{tpu_custom_call.1} parent=1 // pred_fallthru
      _
    // Predicated region
    $region46: #{tpu_custom_call.1} parent=1 // pred_check
      _
    $region47: #{tpu_custom_call.1} parent=1 // pred_check_branch
      %4631 = sbr.rel (0) target = $region49
    $region48: #{tpu_custom_call.1} parent=1 // pred_region
      %4632 = dma.done [#allocation5], 3456
    $region49: #{tpu_custom_call.1} parent=1 // pred_fallthru
      _
    %4633 = vsyncpa [#allocation4], 1
    %4634 = vsyncpa [#allocation7], 1
    %4635 = vsyncpa [#allocation10], 1
    %4636 = vsyncpa [#allocation5], 1

</llo_original>
